<compile_context>
chip_gen: v7x
topology: tpu7x:2x2x1
jax: 0.10.0
libtpu: 0.0.40
codegen_flags: <defaults>
</compile_context>

<pallas_src>
import math
import numpy as np

import jax
import jax.numpy as jnp
from jax import lax
from jax.experimental import pallas as pl
from jax.experimental.pallas import tpu as pltpu

# ------------------------- configuration (small) -------------------------
D_MODEL = 32
D_STATE = 16
D_CONV = 4
EXPAND = 2
D_INNER = EXPAND * D_MODEL              # 64
DT_RANK = math.ceil(D_MODEL / 16)       # 2
BATCH = 2
SEQLEN = 8
LN_EPS = 1e-5

# -------- row offsets of the packed (lane-dense) weight slab (rows, 128) --------
_R_WIN = 0                               # (32, 128) in_proj.weight.T
_R_WC = _R_WIN + D_MODEL                 # (32, 128) in_proj_x folded with channel DFT
_R_WDT = _R_WC + D_MODEL                 # (128,128) block-diag folded dt_proj @ x_proj_dt
_R_WBC = _R_WDT + 2 * D_INNER            # (64, 128) [j,d] B/C projection, both dirs
_R_AT = _R_WBC + 4 * D_STATE             # (16, 128) A (negative), transposed, fused
_R_CONV = _R_AT + D_STATE                # (8, 128)  rows 0..3: fused depthwise conv taps
_R_VEC = _R_CONV + 8                     # (8, 128)  conv_b / dt_b / D / fft_conv_b rows
_R_FDI = _R_VEC + 8                      # (128,128) [[FDre,-FDim],[FDim,FDre]] (inverse)
_R_FL = _R_FDI + 2 * D_INNER             # (8, 128)  lanes 0:8 FLre, 8:16 FLim (seq DFT)
_R_FCW = _R_FL + SEQLEN                  # (640,128) fft_conv weights, 5 x (128,128) [c,o]
_R_WOUT = _R_FCW + 5 * 2 * D_INNER       # (64, 128) out_proj.weight.T (lanes 0:32 valid)
_W_ROWS = _R_WOUT + D_INNER              # 1128


# ------------------------- small helpers -------------------------
def _dft_mats(n):
    k = np.arange(n)
    ang = -2.0 * np.pi * np.outer(k, k) / n           # exp(-2*pi*i*j*k/n)
    return (jnp.asarray(np.cos(ang), jnp.float32),
            jnp.asarray(np.sin(ang), jnp.float32))


# ------------------------- the Pallas kernel -------------------------
def _mamba_fft_kernel(hs_ref, w_ref, o_ref):
    f32 = jnp.float32
    L = hs_ref.shape[1]
    DI, DI2, DS, DM = D_INNER, 2 * D_INNER, D_STATE, D_MODEL
    HIGH = lax.Precision.HIGHEST

    def mm(a, b, prec=None):                  # a @ b
        return lax.dot_general(a, b, (((1,), (0,)), ((), ())),
                               preferred_element_type=f32, precision=prec)

    def mm_nt(a, b, prec=None):               # a @ b.T
        return lax.dot_general(a, b, (((1,), (1,)), ((), ())),
                               preferred_element_type=f32, precision=prec)

    def silu(x):
        return x * jax.nn.sigmoid(x)

    def rev_rows(a):                          # flip along seq (sublane) axis
        n = a.shape[0]
        return jnp.concatenate([a[n - 1 - i:n - i, :] for i in range(n)], axis=0)

    h = hs_ref[0]                                                 # (L, D_MODEL)

    # lane masks built in-register (no extra inputs)
    lane = lax.broadcasted_iota(jnp.int32, (1, DI2), 1)
    mask_f = (lane < DI).astype(f32)                              # fwd channels
    mask_b = 1.0 - mask_f                                         # bwd channels

    # ---- in_proj; bwd branch gets the seq-reversed x in lanes 64:128 -----
    xz = mm(h, w_ref[_R_WIN:_R_WIN + DM, :], HIGH)                # (L,128)=[x|z]
    x_f = xz[:, :DI]                                              # (L,64)
    sz = silu(xz[:, DI:])                                         # silu(z), (L,64)
    X2 = jnp.concatenate([x_f, rev_rows(x_f)], axis=1)            # (L,128)

    # ---- fused causal depthwise conv1d + SiLU ---------------------------
    xpad = jnp.concatenate([jnp.zeros((D_CONV - 1, DI2), f32), X2], axis=0)
    acc = w_ref[_R_VEC:_R_VEC + 1, :]                             # conv bias (1,128)
    for k in range(D_CONV):
        acc = acc + w_ref[_R_CONV + k:_R_CONV + k + 1, :] * xpad[k:k + L, :]
    xa = silu(acc)                                                # (L,128)

    # ---- folded dt projection + softplus, fused B/C projection ----------
    dt = mm(xa, w_ref[_R_WDT:_R_WDT + DI2, :]) + w_ref[_R_VEC + 1:_R_VEC + 2, :]
    dt = jnp.maximum(dt, 0.0) + jnp.log(1.0 + jnp.exp(-jnp.abs(dt)))  # softplus
    bc = mm_nt(w_ref[_R_WBC:_R_WBC + 4 * DS, :], xa)              # (4*DS, L)
    A_t = w_ref[_R_AT:_R_AT + DS, :]                              # (DS, 128)
    D_row = w_ref[_R_VEC + 2:_R_VEC + 3, :]                       # (1, 128)

    # ---- hoisted scan prep (all loop-invariant wrt the recurrence) ------
    dtx = dt * xa                                                 # (L,128)
    dBx, Csel = [], []
    for l in range(L):
        b_l = bc[0 * DS:1 * DS, l:l + 1] * mask_f + bc[2 * DS:3 * DS, l:l + 1] * mask_b
        c_l = bc[1 * DS:2 * DS, l:l + 1] * mask_f + bc[3 * DS:4 * DS, l:l + 1] * mask_b
        dBx.append(dtx[l:l + 1, :] * b_l)                         # (DS,128)
        Csel.append(c_l)                                          # (DS,128)
    dA = [jnp.exp(dt[l:l + 1, :] * A_t) for l in range(1, L)]     # (DS,128) each

    # ---- serial recurrence: one FMA per step; reduce is off the chain ----
    hstate = dBx[0]                                               # h_0 (state is 0 before)
    y_rows = [jnp.sum(hstate * Csel[0], axis=0, keepdims=True)]
    for l in range(1, L):
        hstate = dA[l - 1] * hstate + dBx[l]
        y_rows.append(jnp.sum(hstate * Csel[l], axis=0, keepdims=True))
    y = jnp.concatenate(y_rows, axis=0)                           # (L,128)

    # + D*u, un-flip the bwd half, shared silu(z) gate (fwd order for both halves)
    yDu = y + D_row * xa
    out_mamba = (yDu[:, :DI] + rev_rows(yDu[:, DI:])) * sz        # (L, 64)

    # ---- spectral branch: 2-D FFT as real block matmuls -----------------
    # channel DFT folded into in_proj at pack time: C = h @ (Win_x @ [FDre|FDim])
    C = mm(h, w_ref[_R_WC:_R_WC + DM, :], HIGH)                   # (L,128)=[Cre|Cim]
    FL = w_ref[_R_FL:_R_FL + L, 0:2 * L]                          # (L,2L)=[FLre|FLim]
    Cswap = jnp.concatenate([-C[:, DI:], C[:, :DI]], axis=1)
    G = mm(FL, jnp.concatenate([C, Cswap], axis=0), HIGH)         # full 2-D FFT (L,128)

    # fft_conv: Conv1d(128,128,k=5,pad=2) along seq fused into ONE dot + SiLU
    zp = jnp.zeros((2, DI2), f32)
    Gpad = jnp.concatenate([zp, G, zp], axis=0)                   # (L+4, 128)
    Gwin = jnp.concatenate([Gpad[k:k + L, :] for k in range(5)], axis=1)  # (L, 640)
    cf = silu(w_ref[_R_VEC + 3:_R_VEC + 4, :]
              + mm(Gwin, w_ref[_R_FCW:_R_FCW + 5 * DI2, :]))

    # inverse 2-D DFT (unscaled) + magnitude
    Hc = mm(cf, w_ref[_R_FDI:_R_FDI + DI2, :], HIGH)              # inverse channel DFT
    Hswap = jnp.concatenate([Hc[:, DI:], -Hc[:, :DI]], axis=1)
    Y = mm(FL, jnp.concatenate([Hc, Hswap], axis=0), HIGH)        # inverse seq DFT
    yre, yim = Y[:, :DI], Y[:, DI:]
    absy = jnp.sqrt(yre * yre + yim * yim) * (1.0 / (DI * L))     # |ifftn(.)|

    # z max-pool gate + layer_norm over the seq axis
    z_max = jnp.max(sz, axis=0, keepdims=True)                    # (1, 64)
    v = absy * jnp.abs(z_max)
    mean = jnp.mean(v, axis=0, keepdims=True)
    var = jnp.mean((v - mean) ** 2, axis=0, keepdims=True)
    out_f = (v - mean) * lax.rsqrt(var + LN_EPS)

    # ---- output projection, full-lane (L, 128) store ---------------------
    total = out_mamba + out_f                                     # (L, 64)
    o_ref[0] = mm(total, w_ref[_R_WOUT:_R_WOUT + DI, :])          # lanes 0:32 valid


# ------------------------- wrapper: weight packing + pallas_call -------------------------
def _pack_weights(p):
    f32 = jnp.float32
    PH = lax.Precision.HIGHEST
    DI, DI2, DS = D_INNER, 2 * D_INNER, D_STATE

    def lane_pad(a):
        return jnp.pad(a.astype(f32), ((0, 0), (0, DI2 - a.shape[1])))

    w_in = p["in_proj_w"].T.astype(f32)                                  # (32,128)

    # channel DFT folded into in_proj (spectral branch only): W_C = Win_x @ [FDre|FDim]
    fd_re, fd_im = _dft_mats(DI)
    fd_cat = jnp.concatenate([fd_re, fd_im], axis=1)                     # (64,128)
    w_c = jnp.dot(w_in[:, :DI], fd_cat, precision=PH)                    # (32,128)

    # folded dt projection, block-diagonal (exact zeros off-diagonal)
    wdt_f = jnp.dot(p["dt_proj_w"], p["x_proj_w"][:DT_RANK, :], precision=PH)
    wdt_b = jnp.dot(p["dt_proj_w_b"], p["x_proj_w_b"][:DT_RANK, :], precision=PH)
    wdt = jnp.zeros((DI2, DI2), f32)
    wdt = wdt.at[:DI, :DI].set(wdt_f.T)
    wdt = wdt.at[DI:, DI:].set(wdt_b.T)

    # fused B/C projection stored as [j, d]
    wbc = jnp.zeros((4 * DS, DI2), f32)
    wbc = wbc.at[0 * DS:1 * DS, :DI].set(p["x_proj_w"][DT_RANK:DT_RANK + DS, :])
    wbc = wbc.at[1 * DS:2 * DS, :DI].set(p["x_proj_w"][DT_RANK + DS:, :])
    wbc = wbc.at[2 * DS:3 * DS, DI:].set(p["x_proj_w_b"][DT_RANK:DT_RANK + DS, :])
    wbc = wbc.at[3 * DS:4 * DS, DI:].set(p["x_proj_w_b"][DT_RANK + DS:, :])

    a_t = jnp.concatenate([-jnp.exp(p["A_log"]).T, -jnp.exp(p["A_b_log"]).T], axis=1)

    conv_rows = jnp.concatenate([p["conv_w"], p["conv_w_b"]], axis=0).T   # (4,128)
    conv_rows = jnp.pad(conv_rows, ((0, 8 - D_CONV), (0, 0)))

    vec = jnp.stack([
        jnp.concatenate([p["conv_bias"], p["conv_bias_b"]]),
        jnp.concatenate([p["dt_proj_bias"], p["dt_proj_bias_b"]]),
        jnp.concatenate([p["D"], p["D_b"]]),
        p["fft_conv_b"],
    ], axis=0)
    vec = jnp.pad(vec, ((0, 4), (0, 0)))                                  # (8,128)

    fl_re, fl_im = _dft_mats(SEQLEN)
    fd_inv = jnp.concatenate(
        [jnp.concatenate([fd_re, -fd_im], axis=1),
         jnp.concatenate([fd_im, fd_re], axis=1)], axis=0)                # (128,128)
    fl_row = lane_pad(jnp.concatenate([fl_re, fl_im], axis=1))            # (8,128)

    wfc = jnp.concatenate([p["fft_conv_w"][:, :, k].T for k in range(5)], axis=0)
    wout = lane_pad(p["out_proj_w"].T)                                    # (64,128)

    slab = jnp.concatenate(
        [w_in, w_c, wdt, wbc, a_t, conv_rows, vec, fd_inv, fl_row, wfc, wout],
        axis=0).astype(f32)
    assert slab.shape == (_W_ROWS, DI2)
    return slab


@jax.jit
def mamba_fft_forward(hs, p):
    B_, L, _ = hs.shape
    assert L == SEQLEN
    w_slab = _pack_weights(p)
    # grid=(B,) "parallel": one batch element per TensorCore on v7x.  On single-TC
    # v5e/v6e the two steps run back-to-back; sublane-stacking both batch elements
    # into one grid step would shave the remaining per-step overhead there at the
    # cost of idling a v7x core -- a single configuration is kept here.
    out = pl.pallas_call(
        _mamba_fft_kernel,
        out_shape=jax.ShapeDtypeStruct((B_, L, 2 * D_INNER), jnp.float32),
        grid=(B_,),
        in_specs=[
            pl.BlockSpec((1, L, D_MODEL), lambda b: (b, 0, 0)),
            pl.BlockSpec((_W_ROWS, 2 * D_INNER), lambda b: (0, 0)),
        ],
        out_specs=pl.BlockSpec((1, L, 2 * D_INNER), lambda b: (b, 0, 0)),
        compiler_params=pltpu.CompilerParams(dimension_semantics=("parallel",)),
    )(hs, w_slab)
    return out[..., :D_MODEL]


# ------------------------- deterministic parameter init -------------------------
def init_params(key):
    ks = jax.random.split(key, 16)
    u = lambda k, shape, s: jax.random.uniform(k, shape, jnp.float32, -s, s)
    p = {}
    p["in_proj_w"] = u(ks[0], (2 * D_INNER, D_MODEL), D_MODEL ** -0.5)
    p["conv_w"] = u(ks[1], (D_INNER, D_CONV), D_CONV ** -0.5)
    p["conv_bias"] = u(ks[2], (D_INNER,), D_CONV ** -0.5)
    p["x_proj_w"] = u(ks[3], (DT_RANK + 2 * D_STATE, D_INNER), D_INNER ** -0.5)
    p["dt_proj_w"] = u(ks[4], (D_INNER, DT_RANK), DT_RANK ** -0.5)
    dt = jnp.exp(jax.random.uniform(ks[5], (D_INNER,)) *
                 (math.log(0.1) - math.log(0.001)) + math.log(0.001))
    dt = jnp.maximum(dt, 1e-4)
    p["dt_proj_bias"] = dt + jnp.log(-jnp.expm1(-dt))
    p["A_log"] = jnp.log(jnp.tile(
        jnp.arange(1, D_STATE + 1, dtype=jnp.float32)[None, :], (D_INNER, 1)))
    p["D"] = jnp.ones((D_INNER,), jnp.float32)
    # backward (bimamba v2) parameters
    p["conv_w_b"] = u(ks[6], (D_INNER, D_CONV), D_CONV ** -0.5)
    p["conv_bias_b"] = u(ks[7], (D_INNER,), D_CONV ** -0.5)
    p["x_proj_w_b"] = u(ks[8], (DT_RANK + 2 * D_STATE, D_INNER), D_INNER ** -0.5)
    p["dt_proj_w_b"] = u(ks[9], (D_INNER, DT_RANK), DT_RANK ** -0.5)
    dt_b = jnp.exp(jax.random.uniform(ks[10], (D_INNER,)) *
                   (math.log(0.1) - math.log(0.001)) + math.log(0.001))
    dt_b = jnp.maximum(dt_b, 1e-4)
    p["dt_proj_bias_b"] = dt_b + jnp.log(-jnp.expm1(-dt_b))
    p["A_b_log"] = p["A_log"]
    p["D_b"] = jnp.ones((D_INNER,), jnp.float32)
    # spectral conv + output projection
    p["fft_conv_w"] = u(ks[11], (2 * D_INNER, 2 * D_INNER, 5), (2 * D_INNER * 5) ** -0.5)
    p["fft_conv_b"] = u(ks[12], (2 * D_INNER,), (2 * D_INNER * 5) ** -0.5)
    p["out_proj_w"] = u(ks[13], (D_MODEL, D_INNER), D_INNER ** -0.5)
    return p


# ------------------------- pure-JAX reference (for validation) -------------------------
def reference_forward(hs, p):
    B_, L, _ = hs.shape
    PH = lax.Precision.HIGHEST
    xz = jnp.einsum("od,bld->bol", p["in_proj_w"], hs, precision=PH)

    def mamba_inner(xz_, conv_w, conv_b, xproj_w, dtproj_w, dtproj_b, A, Dv):
        x, z = xz_[:, :D_INNER], xz_[:, D_INNER:]
        xpad = jnp.pad(x, ((0, 0), (0, 0), (D_CONV - 1, 0)))
        conv = conv_b[None, :, None]
        for k in range(D_CONV):
            conv = conv + conv_w[None, :, k, None] * xpad[:, :, k:k + L]
        xa = conv * jax.nn.sigmoid(conv)
        xdbl = jnp.einsum("rd,bdl->brl", xproj_w, xa, precision=PH)
        dt_low = xdbl[:, :DT_RANK]
        Bm = xdbl[:, DT_RANK:DT_RANK + D_STATE]
        Cm = xdbl[:, DT_RANK + D_STATE:]
        dt = jax.nn.softplus(
            jnp.einsum("dr,brl->bdl", dtproj_w, dt_low, precision=PH)
            + dtproj_b[None, :, None])
        h = jnp.zeros((B_, D_INNER, D_STATE), jnp.float32)
        ys = []
        for l in range(L):
            dA = jnp.exp(dt[:, :, l, None] * A[None])
            dBu = (dt[:, :, l] * xa[:, :, l])[:, :, None] * Bm[:, None, :, l]
            h = dA * h + dBu
            ys.append(jnp.einsum("bdn,bn->bd", h, Cm[:, :, l], precision=PH))
        y = jnp.stack(ys, axis=-1) + Dv[None, :, None] * xa
        return y * (z * jax.nn.sigmoid(z))

    A = -jnp.exp(p["A_log"])
    A_b = -jnp.exp(p["A_b_log"])
    out_fwd = mamba_inner(xz, p["conv_w"], p["conv_bias"], p["x_proj_w"],
                          p["dt_proj_w"], p["dt_proj_bias"], A, p["D"])
    out_bwd = mamba_inner(xz[:, :, ::-1], p["conv_w_b"], p["conv_bias_b"],
                          p["x_proj_w_b"], p["dt_proj_w_b"], p["dt_proj_bias_b"],
                          A_b, p["D_b"])

    x, z = xz[:, :D_INNER], xz[:, D_INNER:]
    xf_c = jnp.fft.fftn(x, axes=(-2, -1))
    xf = jnp.concatenate([xf_c.real, xf_c.imag], axis=1)
    xf_pad = jnp.pad(xf, ((0, 0), (0, 0), (2, 2)))
    conv_f = p["fft_conv_b"][None, :, None]
    for k in range(5):
        conv_f = conv_f + jnp.einsum("oc,bcl->bol", p["fft_conv_w"][:, :, k],
                                     xf_pad[:, :, k:k + L], precision=PH)
    conv_f = conv_f * jax.nn.sigmoid(conv_f)
    x_c = conv_f[:, :D_INNER] + 1j * conv_f[:, D_INNER:]
    x_out = jnp.fft.ifftn(x_c, axes=(-2, -1))
    z_out = jnp.max(z * jax.nn.sigmoid(z), axis=-1, keepdims=True)
    v = jnp.abs(x_out * z_out)
    mean = jnp.mean(v, axis=-1, keepdims=True)
    var = jnp.mean((v - mean) ** 2, axis=-1, keepdims=True)
    out_f = (v - mean) / jnp.sqrt(var + LN_EPS)

    total = out_fwd + out_bwd[:, :, ::-1] + out_f
    return jnp.einsum("bdl,md->blm", total, p["out_proj_w"], precision=PH)


# ------------------------- main -------------------------
if __name__ == "__main__":
    key = jax.random.PRNGKey(0)
    k_param, k_hs = jax.random.split(key)
    params = init_params(k_param)
    hidden_states = jax.random.normal(k_hs, (BATCH, SEQLEN, D_MODEL), jnp.float32)

    out = mamba_fft_forward(hidden_states, params)
    out = jax.block_until_ready(out)

    ref = jax.block_until_ready(reference_forward(hidden_states, params))

    assert out.shape == (BATCH, SEQLEN, D_MODEL)
    assert np.isfinite(np.asarray(out)).all()
    # dt/BC, fft_conv and out_proj dots intentionally run at the default
    # (bf16-input) MXU precision per the perf guidance; tolerance is sized for
    # that rounding (DFT/IDFT + in_proj keep HIGHEST, so structure is exact).
    max_err = float(jnp.max(jnp.abs(out - ref)))
    assert max_err < 2.5e-2, f"kernel/reference mismatch: {max_err}"

    print("KERNEL_OK")
</pallas_src>

<mosaic_0001>
module attributes {stable_mosaic.version = 11 : i64} {
  func.func @_mamba_fft_kernel(%arg0: i32, %arg1: memref<1x8x32xf32, #tpu.memory_space<vmem>>, %arg2: memref<1128x128xf32, #tpu.memory_space<vmem>>, %arg3: memref<1x8x128xf32, #tpu.memory_space<vmem>>) attributes {dimension_semantics = [#tpu.dimension_semantics<parallel>], iteration_bounds = array<i64: 2>, scalar_prefetch = 0 : i64, scratch_operands = 0 : i64, tpu.core_type = #tpu.core_type<tc>, window_params = [{transform_indices = @transform_0, window_bounds = array<i64: 1, 8, 32>}, {pipeline_mode = #tpu.pipeline_mode<synchronous>, transform_indices = @transform_1, window_bounds = array<i64: 1128, 128>}, {transform_indices = @transform_2, window_bounds = array<i64: 1, 8, 128>}]} {
    %c0 = arith.constant 0 : index
    %c0_0 = arith.constant 0 : index
    %c0_1 = arith.constant 0 : index
    %0 = vector.load %arg1[%c0, %c0_0, %c0_1] : memref<1x8x32xf32, #tpu.memory_space<vmem>>, vector<1x8x32xf32>
    %1 = vector.shape_cast %0 : vector<1x8x32xf32> to vector<8x32xf32>
    %2 = tpu.iota {dimensions = array<i32: 1>} : vector<1x128xi32>
    %c64_i32 = arith.constant 64 : i32
    %3 = vector.broadcast %c64_i32 : i32 to vector<1x128xi32>
    %4 = arith.cmpi slt, %2, %3 : vector<1x128xi32>
    %5 = arith.extui %4 : vector<1x128xi1> to vector<1x128xi32>
    %6 = arith.sitofp %5 : vector<1x128xi32> to vector<1x128xf32>
    %cst = arith.constant 1.000000e+00 : f32
    %7 = vector.broadcast %cst : f32 to vector<1x128xf32>
    %8 = arith.subf %7, %6 : vector<1x128xf32>
    %c0_2 = arith.constant 0 : index
    %c0_3 = arith.constant 0 : index
    %9 = vector.load %arg2[%c0_2, %c0_3] : memref<1128x128xf32, #tpu.memory_space<vmem>>, vector<32x128xf32>
    %cst_4 = arith.constant dense<0.000000e+00> : vector<8x128xf32>
    %10 = tpu.matmul %1, %9, %cst_4 {dimension_numbers = #tpu.dot_dimension_numbers<[1], [0], [0], [1], [0, 0, 1, 1], [], []>, precision = #tpu.contract_precision<fp32>} : vector<8x32xf32>, vector<32x128xf32>, vector<8x128xf32> -> vector<8x128xf32>
    %11 = vector.extract_strided_slice %10 {offsets = [0, 0], sizes = [8, 64], strides = [1, 1]} : vector<8x128xf32> to vector<8x64xf32>
    %12 = vector.extract_strided_slice %10 {offsets = [0, 64], sizes = [8, 64], strides = [1, 1]} : vector<8x128xf32> to vector<8x64xf32>
    %13 = arith.negf %12 : vector<8x64xf32>
    %14 = math.exp %13 : vector<8x64xf32>
    %cst_5 = arith.constant 1.000000e+00 : f32
    %15 = vector.broadcast %cst_5 : f32 to vector<8x64xf32>
    %16 = arith.addf %15, %14 : vector<8x64xf32>
    %17 = arith.divf %15, %16 : vector<8x64xf32>
    %18 = arith.mulf %12, %17 : vector<8x64xf32>
    %19 = vector.extract_strided_slice %11 {offsets = [7, 0], sizes = [1, 64], strides = [1, 1]} : vector<8x64xf32> to vector<1x64xf32>
    %20 = vector.extract_strided_slice %11 {offsets = [6, 0], sizes = [1, 64], strides = [1, 1]} : vector<8x64xf32> to vector<1x64xf32>
    %21 = vector.extract_strided_slice %11 {offsets = [5, 0], sizes = [1, 64], strides = [1, 1]} : vector<8x64xf32> to vector<1x64xf32>
    %22 = vector.extract_strided_slice %11 {offsets = [4, 0], sizes = [1, 64], strides = [1, 1]} : vector<8x64xf32> to vector<1x64xf32>
    %23 = vector.extract_strided_slice %11 {offsets = [3, 0], sizes = [1, 64], strides = [1, 1]} : vector<8x64xf32> to vector<1x64xf32>
    %24 = vector.extract_strided_slice %11 {offsets = [2, 0], sizes = [1, 64], strides = [1, 1]} : vector<8x64xf32> to vector<1x64xf32>
    %25 = vector.extract_strided_slice %11 {offsets = [1, 0], sizes = [1, 64], strides = [1, 1]} : vector<8x64xf32> to vector<1x64xf32>
    %26 = vector.extract_strided_slice %11 {offsets = [0, 0], sizes = [1, 64], strides = [1, 1]} : vector<8x64xf32> to vector<1x64xf32>
    %27 = tpu.concatenate %19, %20, %21, %22, %23, %24, %25, %26 in 0 : vector<1x64xf32>, vector<1x64xf32>, vector<1x64xf32>, vector<1x64xf32>, vector<1x64xf32>, vector<1x64xf32>, vector<1x64xf32>, vector<1x64xf32> -> vector<8x64xf32>
    %28 = tpu.concatenate %11, %27 in 1 : vector<8x64xf32>, vector<8x64xf32> -> vector<8x128xf32>
    %cst_6 = arith.constant 0.000000e+00 : f32
    %29 = vector.broadcast %cst_6 : f32 to vector<3x128xf32>
    %30 = tpu.concatenate %29, %28 in 0 : vector<3x128xf32>, vector<8x128xf32> -> vector<11x128xf32>
    %c280 = arith.constant 280 : index
    %c0_7 = arith.constant 0 : index
    %31 = vector.load %arg2[%c280, %c0_7] : memref<1128x128xf32, #tpu.memory_space<vmem>>, vector<1x128xf32>
    %c272 = arith.constant 272 : index
    %c0_8 = arith.constant 0 : index
    %32 = vector.load %arg2[%c272, %c0_8] : memref<1128x128xf32, #tpu.memory_space<vmem>>, vector<1x128xf32>
    %33 = vector.extract_strided_slice %30 {offsets = [0, 0], sizes = [8, 128], strides = [1, 1]} : vector<11x128xf32> to vector<8x128xf32>
    %34 = vector.broadcast %32 : vector<1x128xf32> to vector<8x128xf32>
    %35 = arith.mulf %34, %33 : vector<8x128xf32>
    %36 = vector.broadcast %31 : vector<1x128xf32> to vector<8x128xf32>
    %37 = arith.addf %36, %35 : vector<8x128xf32>
    %c273 = arith.constant 273 : index
    %c0_9 = arith.constant 0 : index
    %38 = vector.load %arg2[%c273, %c0_9] : memref<1128x128xf32, #tpu.memory_space<vmem>>, vector<1x128xf32>
    %39 = vector.extract_strided_slice %30 {offsets = [1, 0], sizes = [8, 128], strides = [1, 1]} : vector<11x128xf32> to vector<8x128xf32>
    %40 = vector.broadcast %38 : vector<1x128xf32> to vector<8x128xf32>
    %41 = arith.mulf %40, %39 : vector<8x128xf32>
    %42 = arith.addf %37, %41 : vector<8x128xf32>
    %c274 = arith.constant 274 : index
    %c0_10 = arith.constant 0 : index
    %43 = vector.load %arg2[%c274, %c0_10] : memref<1128x128xf32, #tpu.memory_space<vmem>>, vector<1x128xf32>
    %44 = vector.extract_strided_slice %30 {offsets = [2, 0], sizes = [8, 128], strides = [1, 1]} : vector<11x128xf32> to vector<8x128xf32>
    %45 = vector.broadcast %43 : vector<1x128xf32> to vector<8x128xf32>
    %46 = arith.mulf %45, %44 : vector<8x128xf32>
    %47 = arith.addf %42, %46 : vector<8x128xf32>
    %c275 = arith.constant 275 : index
    %c0_11 = arith.constant 0 : index
    %48 = vector.load %arg2[%c275, %c0_11] : memref<1128x128xf32, #tpu.memory_space<vmem>>, vector<1x128xf32>
    %49 = vector.extract_strided_slice %30 {offsets = [3, 0], sizes = [8, 128], strides = [1, 1]} : vector<11x128xf32> to vector<8x128xf32>
    %50 = vector.broadcast %48 : vector<1x128xf32> to vector<8x128xf32>
    %51 = arith.mulf %50, %49 : vector<8x128xf32>
    %52 = arith.addf %47, %51 : vector<8x128xf32>
    %53 = arith.negf %52 : vector<8x128xf32>
    %54 = math.exp %53 : vector<8x128xf32>
    %cst_12 = arith.constant 1.000000e+00 : f32
    %55 = vector.broadcast %cst_12 : f32 to vector<8x128xf32>
    %56 = arith.addf %55, %54 : vector<8x128xf32>
    %57 = arith.divf %55, %56 : vector<8x128xf32>
    %58 = arith.mulf %52, %57 : vector<8x128xf32>
    %c64 = arith.constant 64 : index
    %c0_13 = arith.constant 0 : index
    %59 = vector.load %arg2[%c64, %c0_13] : memref<1128x128xf32, #tpu.memory_space<vmem>>, vector<128x128xf32>
    %cst_14 = arith.constant dense<0.000000e+00> : vector<8x128xf32>
    %60 = tpu.matmul %58, %59, %cst_14 {dimension_numbers = #tpu.dot_dimension_numbers<[1], [0], [0], [1], [0, 0, 1, 1], [], []>} : vector<8x128xf32>, vector<128x128xf32>, vector<8x128xf32> -> vector<8x128xf32>
    %c281 = arith.constant 281 : index
    %c0_15 = arith.constant 0 : index
    %61 = vector.load %arg2[%c281, %c0_15] : memref<1128x128xf32, #tpu.memory_space<vmem>>, vector<1x128xf32>
    %62 = vector.broadcast %61 : vector<1x128xf32> to vector<8x128xf32>
    %63 = arith.addf %60, %62 : vector<8x128xf32>
    %cst_16 = arith.constant 0.000000e+00 : f32
    %64 = vector.broadcast %cst_16 : f32 to vector<8x128xf32>
    %65 = arith.maximumf %63, %64 : vector<8x128xf32>
    %66 = math.absf %63 : vector<8x128xf32>
    %cst_17 = arith.constant 0.000000e+00 : f32
    %67 = vector.broadcast %cst_17 : f32 to vector<8x128xf32>
    %68 = arith.subf %67, %66 : vector<8x128xf32>
    %69 = math.exp %68 : vector<8x128xf32>
    %cst_18 = arith.constant 1.000000e+00 : f32
    %70 = vector.broadcast %cst_18 : f32 to vector<8x128xf32>
    %71 = arith.addf %70, %69 : vector<8x128xf32>
    %72 = math.log %71 : vector<8x128xf32>
    %73 = arith.addf %65, %72 : vector<8x128xf32>
    %c192 = arith.constant 192 : index
    %c0_19 = arith.constant 0 : index
    %74 = vector.load %arg2[%c192, %c0_19] : memref<1128x128xf32, #tpu.memory_space<vmem>>, vector<64x128xf32>
    %cst_20 = arith.constant dense<0.000000e+00> : vector<64x8xf32>
    %75 = tpu.matmul %74, %58, %cst_20 {dimension_numbers = #tpu.dot_dimension_numbers<[1], [1], [0], [0], [0, 0, 1, 0], [], []>} : vector<64x128xf32>, vector<8x128xf32>, vector<64x8xf32> -> vector<64x8xf32>
    %c256 = arith.constant 256 : index
    %c0_21 = arith.constant 0 : index
    %76 = vector.load %arg2[%c256, %c0_21] : memref<1128x128xf32, #tpu.memory_space<vmem>>, vector<16x128xf32>
    %c282 = arith.constant 282 : index
    %c0_22 = arith.constant 0 : index
    %77 = vector.load %arg2[%c282, %c0_22] : memref<1128x128xf32, #tpu.memory_space<vmem>>, vector<1x128xf32>
    %78 = arith.mulf %73, %58 : vector<8x128xf32>
    %79 = vector.extract_strided_slice %75 {offsets = [0, 0], sizes = [16, 1], strides = [1, 1]} : vector<64x8xf32> to vector<16x1xf32>
    %80 = vector.broadcast %79 : vector<16x1xf32> to vector<16x128xf32>
    %81 = vector.broadcast %6 : vector<1x128xf32> to vector<16x128xf32>
    %82 = arith.mulf %80, %81 : vector<16x128xf32>
    %83 = vector.extract_strided_slice %75 {offsets = [32, 0], sizes = [16, 1], strides = [1, 1]} : vector<64x8xf32> to vector<16x1xf32>
    %84 = vector.broadcast %83 : vector<16x1xf32> to vector<16x128xf32>
    %85 = vector.broadcast %8 : vector<1x128xf32> to vector<16x128xf32>
    %86 = arith.mulf %84, %85 : vector<16x128xf32>
    %87 = arith.addf %82, %86 : vector<16x128xf32>
    %88 = vector.extract_strided_slice %75 {offsets = [16, 0], sizes = [16, 1], strides = [1, 1]} : vector<64x8xf32> to vector<16x1xf32>
    %89 = vector.broadcast %88 : vector<16x1xf32> to vector<16x128xf32>
    %90 = vector.broadcast %6 : vector<1x128xf32> to vector<16x128xf32>
    %91 = arith.mulf %89, %90 : vector<16x128xf32>
    %92 = vector.extract_strided_slice %75 {offsets = [48, 0], sizes = [16, 1], strides = [1, 1]} : vector<64x8xf32> to vector<16x1xf32>
    %93 = vector.broadcast %92 : vector<16x1xf32> to vector<16x128xf32>
    %94 = vector.broadcast %8 : vector<1x128xf32> to vector<16x128xf32>
    %95 = arith.mulf %93, %94 : vector<16x128xf32>
    %96 = arith.addf %91, %95 : vector<16x128xf32>
    %97 = vector.extract_strided_slice %78 {offsets = [0, 0], sizes = [1, 128], strides = [1, 1]} : vector<8x128xf32> to vector<1x128xf32>
    %98 = vector.broadcast %97 : vector<1x128xf32> to vector<16x128xf32>
    %99 = arith.mulf %98, %87 : vector<16x128xf32>
    %100 = vector.extract_strided_slice %75 {offsets = [0, 1], sizes = [16, 1], strides = [1, 1]} : vector<64x8xf32> to vector<16x1xf32>
    %101 = vector.broadcast %100 : vector<16x1xf32> to vector<16x128xf32>
    %102 = vector.broadcast %6 : vector<1x128xf32> to vector<16x128xf32>
    %103 = arith.mulf %101, %102 : vector<16x128xf32>
    %104 = vector.extract_strided_slice %75 {offsets = [32, 1], sizes = [16, 1], strides = [1, 1]} : vector<64x8xf32> to vector<16x1xf32>
    %105 = vector.broadcast %104 : vector<16x1xf32> to vector<16x128xf32>
    %106 = vector.broadcast %8 : vector<1x128xf32> to vector<16x128xf32>
    %107 = arith.mulf %105, %106 : vector<16x128xf32>
    %108 = arith.addf %103, %107 : vector<16x128xf32>
    %109 = vector.extract_strided_slice %75 {offsets = [16, 1], sizes = [16, 1], strides = [1, 1]} : vector<64x8xf32> to vector<16x1xf32>
    %110 = vector.broadcast %109 : vector<16x1xf32> to vector<16x128xf32>
    %111 = vector.broadcast %6 : vector<1x128xf32> to vector<16x128xf32>
    %112 = arith.mulf %110, %111 : vector<16x128xf32>
    %113 = vector.extract_strided_slice %75 {offsets = [48, 1], sizes = [16, 1], strides = [1, 1]} : vector<64x8xf32> to vector<16x1xf32>
    %114 = vector.broadcast %113 : vector<16x1xf32> to vector<16x128xf32>
    %115 = vector.broadcast %8 : vector<1x128xf32> to vector<16x128xf32>
    %116 = arith.mulf %114, %115 : vector<16x128xf32>
    %117 = arith.addf %112, %116 : vector<16x128xf32>
    %118 = vector.extract_strided_slice %78 {offsets = [1, 0], sizes = [1, 128], strides = [1, 1]} : vector<8x128xf32> to vector<1x128xf32>
    %119 = vector.broadcast %118 : vector<1x128xf32> to vector<16x128xf32>
    %120 = arith.mulf %119, %108 : vector<16x128xf32>
    %121 = vector.extract_strided_slice %75 {offsets = [0, 2], sizes = [16, 1], strides = [1, 1]} : vector<64x8xf32> to vector<16x1xf32>
    %122 = vector.broadcast %121 : vector<16x1xf32> to vector<16x128xf32>
    %123 = vector.broadcast %6 : vector<1x128xf32> to vector<16x128xf32>
    %124 = arith.mulf %122, %123 : vector<16x128xf32>
    %125 = vector.extract_strided_slice %75 {offsets = [32, 2], sizes = [16, 1], strides = [1, 1]} : vector<64x8xf32> to vector<16x1xf32>
    %126 = vector.broadcast %125 : vector<16x1xf32> to vector<16x128xf32>
    %127 = vector.broadcast %8 : vector<1x128xf32> to vector<16x128xf32>
    %128 = arith.mulf %126, %127 : vector<16x128xf32>
    %129 = arith.addf %124, %128 : vector<16x128xf32>
    %130 = vector.extract_strided_slice %75 {offsets = [16, 2], sizes = [16, 1], strides = [1, 1]} : vector<64x8xf32> to vector<16x1xf32>
    %131 = vector.broadcast %130 : vector<16x1xf32> to vector<16x128xf32>
    %132 = vector.broadcast %6 : vector<1x128xf32> to vector<16x128xf32>
    %133 = arith.mulf %131, %132 : vector<16x128xf32>
    %134 = vector.extract_strided_slice %75 {offsets = [48, 2], sizes = [16, 1], strides = [1, 1]} : vector<64x8xf32> to vector<16x1xf32>
    %135 = vector.broadcast %134 : vector<16x1xf32> to vector<16x128xf32>
    %136 = vector.broadcast %8 : vector<1x128xf32> to vector<16x128xf32>
    %137 = arith.mulf %135, %136 : vector<16x128xf32>
    %138 = arith.addf %133, %137 : vector<16x128xf32>
    %139 = vector.extract_strided_slice %78 {offsets = [2, 0], sizes = [1, 128], strides = [1, 1]} : vector<8x128xf32> to vector<1x128xf32>
    %140 = vector.broadcast %139 : vector<1x128xf32> to vector<16x128xf32>
    %141 = arith.mulf %140, %129 : vector<16x128xf32>
    %142 = vector.extract_strided_slice %75 {offsets = [0, 3], sizes = [16, 1], strides = [1, 1]} : vector<64x8xf32> to vector<16x1xf32>
    %143 = vector.broadcast %142 : vector<16x1xf32> to vector<16x128xf32>
    %144 = vector.broadcast %6 : vector<1x128xf32> to vector<16x128xf32>
    %145 = arith.mulf %143, %144 : vector<16x128xf32>
    %146 = vector.extract_strided_slice %75 {offsets = [32, 3], sizes = [16, 1], strides = [1, 1]} : vector<64x8xf32> to vector<16x1xf32>
    %147 = vector.broadcast %146 : vector<16x1xf32> to vector<16x128xf32>
    %148 = vector.broadcast %8 : vector<1x128xf32> to vector<16x128xf32>
    %149 = arith.mulf %147, %148 : vector<16x128xf32>
    %150 = arith.addf %145, %149 : vector<16x128xf32>
    %151 = vector.extract_strided_slice %75 {offsets = [16, 3], sizes = [16, 1], strides = [1, 1]} : vector<64x8xf32> to vector<16x1xf32>
    %152 = vector.broadcast %151 : vector<16x1xf32> to vector<16x128xf32>
    %153 = vector.broadcast %6 : vector<1x128xf32> to vector<16x128xf32>
    %154 = arith.mulf %152, %153 : vector<16x128xf32>
    %155 = vector.extract_strided_slice %75 {offsets = [48, 3], sizes = [16, 1], strides = [1, 1]} : vector<64x8xf32> to vector<16x1xf32>
    %156 = vector.broadcast %155 : vector<16x1xf32> to vector<16x128xf32>
    %157 = vector.broadcast %8 : vector<1x128xf32> to vector<16x128xf32>
    %158 = arith.mulf %156, %157 : vector<16x128xf32>
    %159 = arith.addf %154, %158 : vector<16x128xf32>
    %160 = vector.extract_strided_slice %78 {offsets = [3, 0], sizes = [1, 128], strides = [1, 1]} : vector<8x128xf32> to vector<1x128xf32>
    %161 = vector.broadcast %160 : vector<1x128xf32> to vector<16x128xf32>
    %162 = arith.mulf %161, %150 : vector<16x128xf32>
    %163 = vector.extract_strided_slice %75 {offsets = [0, 4], sizes = [16, 1], strides = [1, 1]} : vector<64x8xf32> to vector<16x1xf32>
    %164 = vector.broadcast %163 : vector<16x1xf32> to vector<16x128xf32>
    %165 = vector.broadcast %6 : vector<1x128xf32> to vector<16x128xf32>
    %166 = arith.mulf %164, %165 : vector<16x128xf32>
    %167 = vector.extract_strided_slice %75 {offsets = [32, 4], sizes = [16, 1], strides = [1, 1]} : vector<64x8xf32> to vector<16x1xf32>
    %168 = vector.broadcast %167 : vector<16x1xf32> to vector<16x128xf32>
    %169 = vector.broadcast %8 : vector<1x128xf32> to vector<16x128xf32>
    %170 = arith.mulf %168, %169 : vector<16x128xf32>
    %171 = arith.addf %166, %170 : vector<16x128xf32>
    %172 = vector.extract_strided_slice %75 {offsets = [16, 4], sizes = [16, 1], strides = [1, 1]} : vector<64x8xf32> to vector<16x1xf32>
    %173 = vector.broadcast %172 : vector<16x1xf32> to vector<16x128xf32>
    %174 = vector.broadcast %6 : vector<1x128xf32> to vector<16x128xf32>
    %175 = arith.mulf %173, %174 : vector<16x128xf32>
    %176 = vector.extract_strided_slice %75 {offsets = [48, 4], sizes = [16, 1], strides = [1, 1]} : vector<64x8xf32> to vector<16x1xf32>
    %177 = vector.broadcast %176 : vector<16x1xf32> to vector<16x128xf32>
    %178 = vector.broadcast %8 : vector<1x128xf32> to vector<16x128xf32>
    %179 = arith.mulf %177, %178 : vector<16x128xf32>
    %180 = arith.addf %175, %179 : vector<16x128xf32>
    %181 = vector.extract_strided_slice %78 {offsets = [4, 0], sizes = [1, 128], strides = [1, 1]} : vector<8x128xf32> to vector<1x128xf32>
    %182 = vector.broadcast %181 : vector<1x128xf32> to vector<16x128xf32>
    %183 = arith.mulf %182, %171 : vector<16x128xf32>
    %184 = vector.extract_strided_slice %75 {offsets = [0, 5], sizes = [16, 1], strides = [1, 1]} : vector<64x8xf32> to vector<16x1xf32>
    %185 = vector.broadcast %184 : vector<16x1xf32> to vector<16x128xf32>
    %186 = vector.broadcast %6 : vector<1x128xf32> to vector<16x128xf32>
    %187 = arith.mulf %185, %186 : vector<16x128xf32>
    %188 = vector.extract_strided_slice %75 {offsets = [32, 5], sizes = [16, 1], strides = [1, 1]} : vector<64x8xf32> to vector<16x1xf32>
    %189 = vector.broadcast %188 : vector<16x1xf32> to vector<16x128xf32>
    %190 = vector.broadcast %8 : vector<1x128xf32> to vector<16x128xf32>
    %191 = arith.mulf %189, %190 : vector<16x128xf32>
    %192 = arith.addf %187, %191 : vector<16x128xf32>
    %193 = vector.extract_strided_slice %75 {offsets = [16, 5], sizes = [16, 1], strides = [1, 1]} : vector<64x8xf32> to vector<16x1xf32>
    %194 = vector.broadcast %193 : vector<16x1xf32> to vector<16x128xf32>
    %195 = vector.broadcast %6 : vector<1x128xf32> to vector<16x128xf32>
    %196 = arith.mulf %194, %195 : vector<16x128xf32>
    %197 = vector.extract_strided_slice %75 {offsets = [48, 5], sizes = [16, 1], strides = [1, 1]} : vector<64x8xf32> to vector<16x1xf32>
    %198 = vector.broadcast %197 : vector<16x1xf32> to vector<16x128xf32>
    %199 = vector.broadcast %8 : vector<1x128xf32> to vector<16x128xf32>
    %200 = arith.mulf %198, %199 : vector<16x128xf32>
    %201 = arith.addf %196, %200 : vector<16x128xf32>
    %202 = vector.extract_strided_slice %78 {offsets = [5, 0], sizes = [1, 128], strides = [1, 1]} : vector<8x128xf32> to vector<1x128xf32>
    %203 = vector.broadcast %202 : vector<1x128xf32> to vector<16x128xf32>
    %204 = arith.mulf %203, %192 : vector<16x128xf32>
    %205 = vector.extract_strided_slice %75 {offsets = [0, 6], sizes = [16, 1], strides = [1, 1]} : vector<64x8xf32> to vector<16x1xf32>
    %206 = vector.broadcast %205 : vector<16x1xf32> to vector<16x128xf32>
    %207 = vector.broadcast %6 : vector<1x128xf32> to vector<16x128xf32>
    %208 = arith.mulf %206, %207 : vector<16x128xf32>
    %209 = vector.extract_strided_slice %75 {offsets = [32, 6], sizes = [16, 1], strides = [1, 1]} : vector<64x8xf32> to vector<16x1xf32>
    %210 = vector.broadcast %209 : vector<16x1xf32> to vector<16x128xf32>
    %211 = vector.broadcast %8 : vector<1x128xf32> to vector<16x128xf32>
    %212 = arith.mulf %210, %211 : vector<16x128xf32>
    %213 = arith.addf %208, %212 : vector<16x128xf32>
    %214 = vector.extract_strided_slice %75 {offsets = [16, 6], sizes = [16, 1], strides = [1, 1]} : vector<64x8xf32> to vector<16x1xf32>
    %215 = vector.broadcast %214 : vector<16x1xf32> to vector<16x128xf32>
    %216 = vector.broadcast %6 : vector<1x128xf32> to vector<16x128xf32>
    %217 = arith.mulf %215, %216 : vector<16x128xf32>
    %218 = vector.extract_strided_slice %75 {offsets = [48, 6], sizes = [16, 1], strides = [1, 1]} : vector<64x8xf32> to vector<16x1xf32>
    %219 = vector.broadcast %218 : vector<16x1xf32> to vector<16x128xf32>
    %220 = vector.broadcast %8 : vector<1x128xf32> to vector<16x128xf32>
    %221 = arith.mulf %219, %220 : vector<16x128xf32>
    %222 = arith.addf %217, %221 : vector<16x128xf32>
    %223 = vector.extract_strided_slice %78 {offsets = [6, 0], sizes = [1, 128], strides = [1, 1]} : vector<8x128xf32> to vector<1x128xf32>
    %224 = vector.broadcast %223 : vector<1x128xf32> to vector<16x128xf32>
    %225 = arith.mulf %224, %213 : vector<16x128xf32>
    %226 = vector.extract_strided_slice %75 {offsets = [0, 7], sizes = [16, 1], strides = [1, 1]} : vector<64x8xf32> to vector<16x1xf32>
    %227 = vector.broadcast %226 : vector<16x1xf32> to vector<16x128xf32>
    %228 = vector.broadcast %6 : vector<1x128xf32> to vector<16x128xf32>
    %229 = arith.mulf %227, %228 : vector<16x128xf32>
    %230 = vector.extract_strided_slice %75 {offsets = [32, 7], sizes = [16, 1], strides = [1, 1]} : vector<64x8xf32> to vector<16x1xf32>
    %231 = vector.broadcast %230 : vector<16x1xf32> to vector<16x128xf32>
    %232 = vector.broadcast %8 : vector<1x128xf32> to vector<16x128xf32>
    %233 = arith.mulf %231, %232 : vector<16x128xf32>
    %234 = arith.addf %229, %233 : vector<16x128xf32>
    %235 = vector.extract_strided_slice %75 {offsets = [16, 7], sizes = [16, 1], strides = [1, 1]} : vector<64x8xf32> to vector<16x1xf32>
    %236 = vector.broadcast %235 : vector<16x1xf32> to vector<16x128xf32>
    %237 = vector.broadcast %6 : vector<1x128xf32> to vector<16x128xf32>
    %238 = arith.mulf %236, %237 : vector<16x128xf32>
    %239 = vector.extract_strided_slice %75 {offsets = [48, 7], sizes = [16, 1], strides = [1, 1]} : vector<64x8xf32> to vector<16x1xf32>
    %240 = vector.broadcast %239 : vector<16x1xf32> to vector<16x128xf32>
    %241 = vector.broadcast %8 : vector<1x128xf32> to vector<16x128xf32>
    %242 = arith.mulf %240, %241 : vector<16x128xf32>
    %243 = arith.addf %238, %242 : vector<16x128xf32>
    %244 = vector.extract_strided_slice %78 {offsets = [7, 0], sizes = [1, 128], strides = [1, 1]} : vector<8x128xf32> to vector<1x128xf32>
    %245 = vector.broadcast %244 : vector<1x128xf32> to vector<16x128xf32>
    %246 = arith.mulf %245, %234 : vector<16x128xf32>
    %247 = vector.extract_strided_slice %73 {offsets = [1, 0], sizes = [1, 128], strides = [1, 1]} : vector<8x128xf32> to vector<1x128xf32>
    %248 = vector.broadcast %247 : vector<1x128xf32> to vector<16x128xf32>
    %249 = arith.mulf %248, %76 : vector<16x128xf32>
    %250 = math.exp %249 : vector<16x128xf32>
    %251 = vector.extract_strided_slice %73 {offsets = [2, 0], sizes = [1, 128], strides = [1, 1]} : vector<8x128xf32> to vector<1x128xf32>
    %252 = vector.broadcast %251 : vector<1x128xf32> to vector<16x128xf32>
    %253 = arith.mulf %252, %76 : vector<16x128xf32>
    %254 = math.exp %253 : vector<16x128xf32>
    %255 = vector.extract_strided_slice %73 {offsets = [3, 0], sizes = [1, 128], strides = [1, 1]} : vector<8x128xf32> to vector<1x128xf32>
    %256 = vector.broadcast %255 : vector<1x128xf32> to vector<16x128xf32>
    %257 = arith.mulf %256, %76 : vector<16x128xf32>
    %258 = math.exp %257 : vector<16x128xf32>
    %259 = vector.extract_strided_slice %73 {offsets = [4, 0], sizes = [1, 128], strides = [1, 1]} : vector<8x128xf32> to vector<1x128xf32>
    %260 = vector.broadcast %259 : vector<1x128xf32> to vector<16x128xf32>
    %261 = arith.mulf %260, %76 : vector<16x128xf32>
    %262 = math.exp %261 : vector<16x128xf32>
    %263 = vector.extract_strided_slice %73 {offsets = [5, 0], sizes = [1, 128], strides = [1, 1]} : vector<8x128xf32> to vector<1x128xf32>
    %264 = vector.broadcast %263 : vector<1x128xf32> to vector<16x128xf32>
    %265 = arith.mulf %264, %76 : vector<16x128xf32>
    %266 = math.exp %265 : vector<16x128xf32>
    %267 = vector.extract_strided_slice %73 {offsets = [6, 0], sizes = [1, 128], strides = [1, 1]} : vector<8x128xf32> to vector<1x128xf32>
    %268 = vector.broadcast %267 : vector<1x128xf32> to vector<16x128xf32>
    %269 = arith.mulf %268, %76 : vector<16x128xf32>
    %270 = math.exp %269 : vector<16x128xf32>
    %271 = vector.extract_strided_slice %73 {offsets = [7, 0], sizes = [1, 128], strides = [1, 1]} : vector<8x128xf32> to vector<1x128xf32>
    %272 = vector.broadcast %271 : vector<1x128xf32> to vector<16x128xf32>
    %273 = arith.mulf %272, %76 : vector<16x128xf32>
    %274 = math.exp %273 : vector<16x128xf32>
    %275 = arith.mulf %99, %96 : vector<16x128xf32>
    %cst_23 = arith.constant dense<0.000000e+00> : vector<128xf32>
    %276 = vector.multi_reduction <add>, %275, %cst_23 [0] : vector<16x128xf32> to vector<128xf32>
    %277 = vector.shape_cast %276 : vector<128xf32> to vector<1x128xf32>
    %278 = arith.mulf %250, %99 : vector<16x128xf32>
    %279 = arith.addf %278, %120 : vector<16x128xf32>
    %280 = arith.mulf %279, %117 : vector<16x128xf32>
    %cst_24 = arith.constant dense<0.000000e+00> : vector<128xf32>
    %281 = vector.multi_reduction <add>, %280, %cst_24 [0] : vector<16x128xf32> to vector<128xf32>
    %282 = vector.shape_cast %281 : vector<128xf32> to vector<1x128xf32>
    %283 = arith.mulf %254, %279 : vector<16x128xf32>
    %284 = arith.addf %283, %141 : vector<16x128xf32>
    %285 = arith.mulf %284, %138 : vector<16x128xf32>
    %cst_25 = arith.constant dense<0.000000e+00> : vector<128xf32>
    %286 = vector.multi_reduction <add>, %285, %cst_25 [0] : vector<16x128xf32> to vector<128xf32>
    %287 = vector.shape_cast %286 : vector<128xf32> to vector<1x128xf32>
    %288 = arith.mulf %258, %284 : vector<16x128xf32>
    %289 = arith.addf %288, %162 : vector<16x128xf32>
    %290 = arith.mulf %289, %159 : vector<16x128xf32>
    %cst_26 = arith.constant dense<0.000000e+00> : vector<128xf32>
    %291 = vector.multi_reduction <add>, %290, %cst_26 [0] : vector<16x128xf32> to vector<128xf32>
    %292 = vector.shape_cast %291 : vector<128xf32> to vector<1x128xf32>
    %293 = arith.mulf %262, %289 : vector<16x128xf32>
    %294 = arith.addf %293, %183 : vector<16x128xf32>
    %295 = arith.mulf %294, %180 : vector<16x128xf32>
    %cst_27 = arith.constant dense<0.000000e+00> : vector<128xf32>
    %296 = vector.multi_reduction <add>, %295, %cst_27 [0] : vector<16x128xf32> to vector<128xf32>
    %297 = vector.shape_cast %296 : vector<128xf32> to vector<1x128xf32>
    %298 = arith.mulf %266, %294 : vector<16x128xf32>
    %299 = arith.addf %298, %204 : vector<16x128xf32>
    %300 = arith.mulf %299, %201 : vector<16x128xf32>
    %cst_28 = arith.constant dense<0.000000e+00> : vector<128xf32>
    %301 = vector.multi_reduction <add>, %300, %cst_28 [0] : vector<16x128xf32> to vector<128xf32>
    %302 = vector.shape_cast %301 : vector<128xf32> to vector<1x128xf32>
    %303 = arith.mulf %270, %299 : vector<16x128xf32>
    %304 = arith.addf %303, %225 : vector<16x128xf32>
    %305 = arith.mulf %304, %222 : vector<16x128xf32>
    %cst_29 = arith.constant dense<0.000000e+00> : vector<128xf32>
    %306 = vector.multi_reduction <add>, %305, %cst_29 [0] : vector<16x128xf32> to vector<128xf32>
    %307 = vector.shape_cast %306 : vector<128xf32> to vector<1x128xf32>
    %308 = arith.mulf %274, %304 : vector<16x128xf32>
    %309 = arith.addf %308, %246 : vector<16x128xf32>
    %310 = arith.mulf %309, %243 : vector<16x128xf32>
    %cst_30 = arith.constant dense<0.000000e+00> : vector<128xf32>
    %311 = vector.multi_reduction <add>, %310, %cst_30 [0] : vector<16x128xf32> to vector<128xf32>
    %312 = vector.shape_cast %311 : vector<128xf32> to vector<1x128xf32>
    %313 = tpu.concatenate %277, %282, %287, %292, %297, %302, %307, %312 in 0 : vector<1x128xf32>, vector<1x128xf32>, vector<1x128xf32>, vector<1x128xf32>, vector<1x128xf32>, vector<1x128xf32>, vector<1x128xf32>, vector<1x128xf32> -> vector<8x128xf32>
    %314 = vector.broadcast %77 : vector<1x128xf32> to vector<8x128xf32>
    %315 = arith.mulf %314, %58 : vector<8x128xf32>
    %316 = arith.addf %313, %315 : vector<8x128xf32>
    %317 = vector.extract_strided_slice %316 {offsets = [0, 0], sizes = [8, 64], strides = [1, 1]} : vector<8x128xf32> to vector<8x64xf32>
    %318 = vector.extract_strided_slice %316 {offsets = [0, 64], sizes = [8, 64], strides = [1, 1]} : vector<8x128xf32> to vector<8x64xf32>
    %319 = vector.extract_strided_slice %318 {offsets = [7, 0], sizes = [1, 64], strides = [1, 1]} : vector<8x64xf32> to vector<1x64xf32>
    %320 = vector.extract_strided_slice %318 {offsets = [6, 0], sizes = [1, 64], strides = [1, 1]} : vector<8x64xf32> to vector<1x64xf32>
    %321 = vector.extract_strided_slice %318 {offsets = [5, 0], sizes = [1, 64], strides = [1, 1]} : vector<8x64xf32> to vector<1x64xf32>
    %322 = vector.extract_strided_slice %318 {offsets = [4, 0], sizes = [1, 64], strides = [1, 1]} : vector<8x64xf32> to vector<1x64xf32>
    %323 = vector.extract_strided_slice %318 {offsets = [3, 0], sizes = [1, 64], strides = [1, 1]} : vector<8x64xf32> to vector<1x64xf32>
    %324 = vector.extract_strided_slice %318 {offsets = [2, 0], sizes = [1, 64], strides = [1, 1]} : vector<8x64xf32> to vector<1x64xf32>
    %325 = vector.extract_strided_slice %318 {offsets = [1, 0], sizes = [1, 64], strides = [1, 1]} : vector<8x64xf32> to vector<1x64xf32>
    %326 = vector.extract_strided_slice %318 {offsets = [0, 0], sizes = [1, 64], strides = [1, 1]} : vector<8x64xf32> to vector<1x64xf32>
    %327 = tpu.concatenate %319, %320, %321, %322, %323, %324, %325, %326 in 0 : vector<1x64xf32>, vector<1x64xf32>, vector<1x64xf32>, vector<1x64xf32>, vector<1x64xf32>, vector<1x64xf32>, vector<1x64xf32>, vector<1x64xf32> -> vector<8x64xf32>
    %328 = arith.addf %317, %327 : vector<8x64xf32>
    %329 = arith.mulf %328, %18 : vector<8x64xf32>
    %c32 = arith.constant 32 : index
    %c0_31 = arith.constant 0 : index
    %330 = vector.load %arg2[%c32, %c0_31] : memref<1128x128xf32, #tpu.memory_space<vmem>>, vector<32x128xf32>
    %cst_32 = arith.constant dense<0.000000e+00> : vector<8x128xf32>
    %331 = tpu.matmul %1, %330, %cst_32 {dimension_numbers = #tpu.dot_dimension_numbers<[1], [0], [0], [1], [0, 0, 1, 1], [], []>, precision = #tpu.contract_precision<fp32>} : vector<8x32xf32>, vector<32x128xf32>, vector<8x128xf32> -> vector<8x128xf32>
    %c416 = arith.constant 416 : index
    %c0_33 = arith.constant 0 : index
    %332 = vector.load %arg2[%c416, %c0_33] : memref<1128x128xf32, #tpu.memory_space<vmem>>, vector<8x16xf32>
    %333 = vector.extract_strided_slice %331 {offsets = [0, 64], sizes = [8, 64], strides = [1, 1]} : vector<8x128xf32> to vector<8x64xf32>
    %cst_34 = arith.constant 0.000000e+00 : f32
    %334 = vector.broadcast %cst_34 : f32 to vector<8x64xf32>
    %335 = arith.subf %334, %333 : vector<8x64xf32>
    %336 = vector.extract_strided_slice %331 {offsets = [0, 0], sizes = [8, 64], strides = [1, 1]} : vector<8x128xf32> to vector<8x64xf32>
    %337 = tpu.concatenate %335, %336 in 1 : vector<8x64xf32>, vector<8x64xf32> -> vector<8x128xf32>
    %338 = tpu.concatenate %331, %337 in 0 : vector<8x128xf32>, vector<8x128xf32> -> vector<16x128xf32>
    %cst_35 = arith.constant dense<0.000000e+00> : vector<8x128xf32>
    %339 = tpu.matmul %332, %338, %cst_35 {dimension_numbers = #tpu.dot_dimension_numbers<[1], [0], [0], [1], [0, 0, 1, 1], [], []>, precision = #tpu.contract_precision<fp32>} : vector<8x16xf32>, vector<16x128xf32>, vector<8x128xf32> -> vector<8x128xf32>
    %cst_36 = arith.constant 0.000000e+00 : f32
    %340 = vector.broadcast %cst_36 : f32 to vector<2x128xf32>
    %341 = tpu.concatenate %340, %339, %340 in 0 : vector<2x128xf32>, vector<8x128xf32>, vector<2x128xf32> -> vector<12x128xf32>
    %342 = vector.extract_strided_slice %341 {offsets = [0, 0], sizes = [8, 128], strides = [1, 1]} : vector<12x128xf32> to vector<8x128xf32>
    %343 = vector.extract_strided_slice %341 {offsets = [1, 0], sizes = [8, 128], strides = [1, 1]} : vector<12x128xf32> to vector<8x128xf32>
    %344 = vector.extract_strided_slice %341 {offsets = [2, 0], sizes = [8, 128], strides = [1, 1]} : vector<12x128xf32> to vector<8x128xf32>
    %345 = vector.extract_strided_slice %341 {offsets = [3, 0], sizes = [8, 128], strides = [1, 1]} : vector<12x128xf32> to vector<8x128xf32>
    %346 = vector.extract_strided_slice %341 {offsets = [4, 0], sizes = [8, 128], strides = [1, 1]} : vector<12x128xf32> to vector<8x128xf32>
    %347 = tpu.concatenate %342, %343, %344, %345, %346 in 1 : vector<8x128xf32>, vector<8x128xf32>, vector<8x128xf32>, vector<8x128xf32>, vector<8x128xf32> -> vector<8x640xf32>
    %c283 = arith.constant 283 : index
    %c0_37 = arith.constant 0 : index
    %348 = vector.load %arg2[%c283, %c0_37] : memref<1128x128xf32, #tpu.memory_space<vmem>>, vector<1x128xf32>
    %c424 = arith.constant 424 : index
    %c0_38 = arith.constant 0 : index
    %349 = vector.load %arg2[%c424, %c0_38] : memref<1128x128xf32, #tpu.memory_space<vmem>>, vector<640x128xf32>
    %cst_39 = arith.constant dense<0.000000e+00> : vector<8x128xf32>
    %350 = tpu.matmul %347, %349, %cst_39 {dimension_numbers = #tpu.dot_dimension_numbers<[1], [0], [0], [1], [0, 0, 1, 1], [], []>} : vector<8x640xf32>, vector<640x128xf32>, vector<8x128xf32> -> vector<8x128xf32>
    %351 = vector.broadcast %348 : vector<1x128xf32> to vector<8x128xf32>
    %352 = arith.addf %351, %350 : vector<8x128xf32>
    %353 = arith.negf %352 : vector<8x128xf32>
    %354 = math.exp %353 : vector<8x128xf32>
    %cst_40 = arith.constant 1.000000e+00 : f32
    %355 = vector.broadcast %cst_40 : f32 to vector<8x128xf32>
    %356 = arith.addf %355, %354 : vector<8x128xf32>
    %357 = arith.divf %355, %356 : vector<8x128xf32>
    %358 = arith.mulf %352, %357 : vector<8x128xf32>
    %c288 = arith.constant 288 : index
    %c0_41 = arith.constant 0 : index
    %359 = vector.load %arg2[%c288, %c0_41] : memref<1128x128xf32, #tpu.memory_space<vmem>>, vector<128x128xf32>
    %cst_42 = arith.constant dense<0.000000e+00> : vector<8x128xf32>
    %360 = tpu.matmul %358, %359, %cst_42 {dimension_numbers = #tpu.dot_dimension_numbers<[1], [0], [0], [1], [0, 0, 1, 1], [], []>, precision = #tpu.contract_precision<fp32>} : vector<8x128xf32>, vector<128x128xf32>, vector<8x128xf32> -> vector<8x128xf32>
    %361 = vector.extract_strided_slice %360 {offsets = [0, 64], sizes = [8, 64], strides = [1, 1]} : vector<8x128xf32> to vector<8x64xf32>
    %362 = vector.extract_strided_slice %360 {offsets = [0, 0], sizes = [8, 64], strides = [1, 1]} : vector<8x128xf32> to vector<8x64xf32>
    %cst_43 = arith.constant 0.000000e+00 : f32
    %363 = vector.broadcast %cst_43 : f32 to vector<8x64xf32>
    %364 = arith.subf %363, %362 : vector<8x64xf32>
    %365 = tpu.concatenate %361, %364 in 1 : vector<8x64xf32>, vector<8x64xf32> -> vector<8x128xf32>
    %366 = tpu.concatenate %360, %365 in 0 : vector<8x128xf32>, vector<8x128xf32> -> vector<16x128xf32>
    %cst_44 = arith.constant dense<0.000000e+00> : vector<8x128xf32>
    %367 = tpu.matmul %332, %366, %cst_44 {dimension_numbers = #tpu.dot_dimension_numbers<[1], [0], [0], [1], [0, 0, 1, 1], [], []>, precision = #tpu.contract_precision<fp32>} : vector<8x16xf32>, vector<16x128xf32>, vector<8x128xf32> -> vector<8x128xf32>
    %368 = vector.extract_strided_slice %367 {offsets = [0, 0], sizes = [8, 64], strides = [1, 1]} : vector<8x128xf32> to vector<8x64xf32>
    %369 = vector.extract_strided_slice %367 {offsets = [0, 64], sizes = [8, 64], strides = [1, 1]} : vector<8x128xf32> to vector<8x64xf32>
    %370 = arith.mulf %368, %368 : vector<8x64xf32>
    %371 = arith.mulf %369, %369 : vector<8x64xf32>
    %372 = arith.addf %370, %371 : vector<8x64xf32>
    %373 = math.sqrt %372 : vector<8x64xf32>
    %cst_45 = arith.constant 0.001953125 : f32
    %374 = vector.broadcast %cst_45 : f32 to vector<8x64xf32>
    %375 = arith.mulf %373, %374 : vector<8x64xf32>
    %cst_46 = arith.constant dense<0xFF800000> : vector<64xf32>
    %376 = vector.multi_reduction <maximumf>, %18, %cst_46 [0] : vector<8x64xf32> to vector<64xf32>
    %377 = vector.shape_cast %376 : vector<64xf32> to vector<1x64xf32>
    %378 = math.absf %377 : vector<1x64xf32>
    %379 = vector.broadcast %378 : vector<1x64xf32> to vector<8x64xf32>
    %380 = arith.mulf %375, %379 : vector<8x64xf32>
    %cst_47 = arith.constant dense<0.000000e+00> : vector<64xf32>
    %381 = vector.multi_reduction <add>, %380, %cst_47 [0] : vector<8x64xf32> to vector<64xf32>
    %382 = vector.shape_cast %381 : vector<64xf32> to vector<1x64xf32>
    %cst_48 = arith.constant 8.000000e+00 : f32
    %383 = vector.broadcast %cst_48 : f32 to vector<1x64xf32>
    %384 = arith.divf %382, %383 : vector<1x64xf32>
    %385 = vector.broadcast %384 : vector<1x64xf32> to vector<8x64xf32>
    %386 = arith.subf %380, %385 : vector<8x64xf32>
    %387 = arith.mulf %386, %386 : vector<8x64xf32>
    %cst_49 = arith.constant dense<0.000000e+00> : vector<64xf32>
    %388 = vector.multi_reduction <add>, %387, %cst_49 [0] : vector<8x64xf32> to vector<64xf32>
    %389 = vector.shape_cast %388 : vector<64xf32> to vector<1x64xf32>
    %cst_50 = arith.constant 8.000000e+00 : f32
    %390 = vector.broadcast %cst_50 : f32 to vector<1x64xf32>
    %391 = arith.divf %389, %390 : vector<1x64xf32>
    %392 = vector.broadcast %384 : vector<1x64xf32> to vector<8x64xf32>
    %393 = arith.subf %380, %392 : vector<8x64xf32>
    %cst_51 = arith.constant 9.99999974E-6 : f32
    %394 = vector.broadcast %cst_51 : f32 to vector<1x64xf32>
    %395 = arith.addf %391, %394 : vector<1x64xf32>
    %396 = math.rsqrt %395 : vector<1x64xf32>
    %397 = vector.broadcast %396 : vector<1x64xf32> to vector<8x64xf32>
    %398 = arith.mulf %393, %397 : vector<8x64xf32>
    %399 = arith.addf %329, %398 : vector<8x64xf32>
    %c1064 = arith.constant 1064 : index
    %c0_52 = arith.constant 0 : index
    %400 = vector.load %arg2[%c1064, %c0_52] : memref<1128x128xf32, #tpu.memory_space<vmem>>, vector<64x128xf32>
    %cst_53 = arith.constant dense<0.000000e+00> : vector<8x128xf32>
    %401 = tpu.matmul %399, %400, %cst_53 {dimension_numbers = #tpu.dot_dimension_numbers<[1], [0], [0], [1], [0, 0, 1, 1], [], []>} : vector<8x64xf32>, vector<64x128xf32>, vector<8x128xf32> -> vector<8x128xf32>
    %c0_54 = arith.constant 0 : index
    %c0_55 = arith.constant 0 : index
    %c0_56 = arith.constant 0 : index
    %402 = vector.load %arg3[%c0_54, %c0_55, %c0_56] : memref<1x8x128xf32, #tpu.memory_space<vmem>>, vector<1x8x128xf32>
    %403 = vector.shape_cast %402 : vector<1x8x128xf32> to vector<8x128xf32>
    %404 = vector.shape_cast %401 : vector<8x128xf32> to vector<1x8x128xf32>
    tpu.vector_store %arg3[%c0_54, %c0_55, %c0_56], %404 {strides = array<i32>} : memref<1x8x128xf32, #tpu.memory_space<vmem>>, vector<1x8x128xf32>,
    return
  }
  func.func @transform_0(%arg0: i32) -> (i32, i32, i32) {
    %c0_i32 = arith.constant 0 : i32
    %c0_i32_0 = arith.constant 0 : i32
    %c0_i32_1 = arith.constant 0 : i32
    return %arg0, %c0_i32, %c0_i32_0 : i32, i32, i32
  }
  func.func @transform_1(%arg0: i32) -> (i32, i32) {
    %c0_i32 = arith.constant 0 : i32
    %c0_i32_0 = arith.constant 0 : i32
    %c0_i32_1 = arith.constant 0 : i32
    return %c0_i32, %c0_i32_0 : i32, i32
  }
  func.func @transform_2(%arg0: i32) -> (i32, i32, i32) {
    %c0_i32 = arith.constant 0 : i32
    %c0_i32_0 = arith.constant 0 : i32
    %c0_i32_1 = arith.constant 0 : i32
    return %arg0, %c0_i32, %c0_i32_0 : i32, i32, i32
  }
}

</mosaic_0001>

<llo_original>
// kernel: mamba_fft_forward.1
$region0: #{mamba_fft_forward.1}
  #allocation0 [shape = 'u32[]', space=smem, size = 0x4, offset = 0x4, fixed_abs, tag = 'smem constant byte address 0x4 - core index']
  #allocation1 [shape = 'u32[144,128]{1,0:T(1,128)}', space=vmem, size = 0x12000, scoped, tag = 'internal scratch']
  %s0 = inlined_call_operand.vmem [shape: f32[2,8,32], index: 0, kind: input, shape index: {}]
  %s1 = inlined_call_operand.vmem [shape: f32[1128,128], index: 1, kind: input, shape index: {}]
  %s2 = inlined_call_operand.hbm [shape: f32[2,8,128], index: 2, kind: output, shape index: {}]
  %s3 = sld [smem:[#allocation0]]
  $region41: #{mamba_fft_forward.1} parent=0
    _
  %s5 = ssub.s32 1, %s3
  %s6 = scalar_select 0, %s5, %s3
  $region1: #{mamba_fft_forward.1} parent=0
    #allocation2 [shape = 'u8[8192]{0}', space=vmem, size = 0x2000, scoped, tag = 'output window, operand 0']
    #allocation3 [shape = 's32[2]{0}', space=sflag, size = 0x8, scoped, tag = 'scoped memory for mamba_fft_forward.1']
    %7 = vsyncpa [#allocation3], 0
    %s8 = scalar_lea.sflag [#allocation3], 1
    %9 = vsyncpa %s8, 0
    loop: start=0, step=1, limit=4
    $region2: #{mamba_fft_forward.1} parent=1 // loop_pre_header
      _
    $region3: #{mamba_fft_forward.1} parent=1 // loop_header
      %s11 = sphi 0, %s15
      %p12 = scmp.ge.s32.totalorder %s11, 4
      %s21 = sphi 0, %s23
      %s24 = sphi 0, %s21
      %s25 = sphi 0, %s24
      %s41 = sphi 0, %s25
      %s45 = sphi 0, %s45
      %s47 = sphi 0, %s45
      %s48 = sphi 0, %s47
      %s62 = sphi 0, %s48
      %s68 = sphi 0, %s70
      %s71 = sphi 0, %s68
      %s72 = sphi 0, %s71
      %s88 = sphi 0, %s72
    $region4: #{mamba_fft_forward.1} parent=1 // loop_header_branch
      %14 = sbr.rel (%p12) target = $region8
    $region5: #{mamba_fft_forward.1} parent=1 // loop_body
      %s16 = ssub.s32 %s11, 1
      %s17 = ssub.s32 %s11, 2
      %s18 = sadd.s32 %s11, 1
      %s19 = ssub.s32 %s11, %s18
      %p20 = scmp.eq.s32.totalorder %s19, 0
      %s22 = sadd.s32 %s21, 1
      %s23 = scalar_select %p20, %s21, %s22
      %p26 = pneg %p20
      %p27 = scmp.eq.s32.totalorder %s11, 1
      %p28 = por %p26, %p27
      %p29 = scmp.ne.s32.totalorder %s21, %s24
      %p30 = scmp.eq.s32.totalorder %s11, 0
      %p31 = por %p29, %p30
      %p32 = scmp.ne.s32.totalorder %s21, %s24
      %p33 = scmp.eq.s32.totalorder %s16, 1
      %p34 = por %p32, %p33
      %p35 = scmp.ne.s32.totalorder %s24, %s25
      %p36 = scmp.eq.s32.totalorder %s16, 0
      %p37 = por %p35, %p36
      %p38 = scmp.ne.s32.totalorder %s24, %s25
      %p39 = scmp.eq.s32.totalorder %s17, 1
      %p40 = por %p38, %p39
      %p42 = scmp.ne.s32.totalorder %s25, %s41
      %p43 = scmp.eq.s32.totalorder %s17, 0
      %p44 = por %p42, %p43
      %s46 = sadd.s32 %s45, 1
      %p49 = scmp.eq.s32.totalorder %s11, 1
      %p50 = scmp.ne.s32.totalorder %s45, %s47
      %p51 = scmp.eq.s32.totalorder %s11, 0
      %p52 = por %p50, %p51
      %p53 = scmp.ne.s32.totalorder %s45, %s47
      %p54 = scmp.eq.s32.totalorder %s16, 1
      %p55 = por %p53, %p54
      %p56 = scmp.ne.s32.totalorder %s47, %s48
      %p57 = scmp.eq.s32.totalorder %s16, 0
      %p58 = por %p56, %p57
      %p59 = scmp.ne.s32.totalorder %s47, %s48
      %p60 = scmp.eq.s32.totalorder %s17, 1
      %p61 = por %p59, %p60
      %p63 = scmp.ne.s32.totalorder %s48, %s62
      %p64 = scmp.eq.s32.totalorder %s17, 0
      %p65 = por %p63, %p64
      %s66 = ssub.s32 %s11, %s18
      %p67 = scmp.eq.s32.totalorder %s66, 0
      %s69 = sadd.s32 %s68, 1
      %s70 = scalar_select %p67, %s68, %s69
      %p73 = pneg %p67
      %p74 = scmp.eq.s32.totalorder %s11, 1
      %p75 = por %p73, %p74
      %p76 = scmp.ne.s32.totalorder %s68, %s71
      %p77 = scmp.eq.s32.totalorder %s11, 0
      %p78 = por %p76, %p77
      %p79 = scmp.ne.s32.totalorder %s68, %s71
      %p80 = scmp.eq.s32.totalorder %s16, 1
      %p81 = por %p79, %p80
      %p82 = scmp.ne.s32.totalorder %s71, %s72
      %p83 = scmp.eq.s32.totalorder %s16, 0
      %p84 = por %p82, %p83
      %p85 = scmp.ne.s32.totalorder %s71, %s72
      %p86 = scmp.eq.s32.totalorder %s17, 1
      %p87 = por %p85, %p86
      %p89 = scmp.ne.s32.totalorder %s72, %s88
      %p90 = scmp.eq.s32.totalorder %s17, 0
      %p91 = por %p89, %p90
      %p92 = scmp.le.s32.totalorder 1, %s11
      %p93 = scmp.lt.s32.totalorder %s11, 3
      %p94 = pnand %p92, %p93
      %p95 = pneg %p94
      // Predicated region
      $region9: #{mamba_fft_forward.1} parent=5 // pred_check
        _
      $region10: #{mamba_fft_forward.1} parent=5 // pred_check_branch
        %97 = sbr.rel (%p94) target = $region12
      $region11: #{mamba_fft_forward.1} parent=5 // pred_region
        %s98 = ssub.s32 %s11, 1
        // Predicated region
        $region13: #{mamba_fft_forward.1} parent=11 // pred_check
          %p99 = pneg %p58
        $region14: #{mamba_fft_forward.1} parent=11 // pred_check_branch
          %101 = sbr.rel (%p99) target = $region16
        $region15: #{mamba_fft_forward.1} parent=11 // pred_region
          _
        $region16: #{mamba_fft_forward.1} parent=11 // pred_fallthru
          _
      $region12: #{mamba_fft_forward.1} parent=5 // pred_fallthru
        _
      %p102 = scmp.lt.s32.totalorder %s11, 2
      // Predicated region
      $region17: #{mamba_fft_forward.1} parent=5 // pred_check
        %p103 = pneg %p102
      $region18: #{mamba_fft_forward.1} parent=5 // pred_check_branch
        %105 = sbr.rel (%p103) target = $region20
      $region19: #{mamba_fft_forward.1} parent=5 // pred_region
        // Predicated region
        $region21: #{mamba_fft_forward.1} parent=19 // pred_check
          %p106 = pneg %p31
        $region22: #{mamba_fft_forward.1} parent=19 // pred_check_branch
          %108 = sbr.rel (%p106) target = $region24
        $region23: #{mamba_fft_forward.1} parent=19 // pred_region
          %p109 = scmp.lt.s32.totalorder %s11, 1
          %s110 = scalar_select %p109, %s11, 1
          %s111 = smul.addr %s110, 8
          %s112 = scalar_lea.vmem %s0, %s111
        $region24: #{mamba_fft_forward.1} parent=19 // pred_fallthru
          _
      $region20: #{mamba_fft_forward.1} parent=5 // pred_fallthru
        _
      %p113 = scmp.le.s32.totalorder 1, %s11
      %p114 = scmp.lt.s32.totalorder %s11, 3
      %p115 = pnand %p113, %p114
      %p116 = pneg %p115
      // Predicated region
      $region25: #{mamba_fft_forward.1} parent=5 // pred_check
        _
      $region26: #{mamba_fft_forward.1} parent=5 // pred_check_branch
        %118 = sbr.rel (%p115) target = $region28
      $region27: #{mamba_fft_forward.1} parent=5 // pred_region
        %s119 = ssub.s32 %s11, 1
        %p120 = scmp.lt.s32.totalorder %s16, 1
        %s121 = scalar_select %p120, %s16, 1
        %s122 = smul.addr %s121, 8
        %s123 = scalar_lea.vmem %s0, %s122
        %p124 = pneg %p37
        %p125 = pneg %p34
        %p126 = pneg %p58
        %p127 = pneg %p55
        %p128 = pneg %p84
        %p129 = pneg %p81
        %s130 = sand.u32 %s71, 1
        %s131 = scalar_lea.sflag [#allocation3], %s130
        %s132 = sand.u32 %s71, 1
        %s133 = smul.addr %s132, 8
        %s134 = scalar_lea.vmem [#allocation2], %s133
        %p135 = scmp.lt.s32.totalorder %s16, 1
        %s136 = scalar_select %p135, %s16, 1
        %s137 = smul.addr %s136, 8
        %s138 = scalar_lea.vmem %s0, %s137
        %v139 = vld [vmem:[%s138] sm:$0xff]
        %v140 = vlaneseq
        %v141 = vand.u32 %v140, 127
        %vm142 = vcmp.lt.s32.totalorder %v141, 64
        %v143 = vsel %vm142, 1, 0
        %v144 = vcvt.s32.f32 %v143
        %v145 = vsub.f32 1.0, %v144
        %v146 = vld [vmem:[%s1] sm:$0xff]
        %v147 = vld [vmem:[%s1 + $0x8] sm:$0xff]
        %v148 = vld [vmem:[%s1 + $0x10] sm:$0xff]
        %v149 = vld [vmem:[%s1 + $0x18] sm:$0xff]
        %vm150 = vcmask 261120
        %v152 = vsel %vm150, %v139, 0
        %154 = vmatprep.subr.mxu0 0.0
        %v155 = vand.u32 %v146, 4294901760
        %156 = vmatpush1.msra.mxu0 %v155
        %157 = vmatprep.subr.mxu0 0.0
        %v158 = vand.u32 %v147, 4294901760
        %159 = vmatpush1.msra.mxu0 %v158
        %160 = vmatprep.subr.mxu0 0.0
        %v161 = vand.u32 %v148, 4294901760
        %162 = vmatpush1.msra.mxu0 %v161
        %163 = vmatprep.subr.mxu0 0.0
        %v164 = vand.u32 %v149, 4294901760
        %165 = vmatpush1.msra.mxu0 %v164
        %166 = vmatprep.subr.mxu0 0.0
        %167 = vmatpush1.msra.mxu0 0.0
        %168 = vmatprep.subr.mxu0 0.0
        %169 = vmatpush1.msra.mxu0 0.0
        %170 = vmatprep.subr.mxu0 0.0
        %171 = vmatpush1.msra.mxu0 0.0
        %172 = vmatprep.subr.mxu0 0.0
        %173 = vmatpush1.msra.mxu0 0.0
        %174 = vmatprep.subr.mxu0 0.0
        %175 = vmatpush1.msra.mxu0 0.0
        %176 = vmatprep.subr.mxu0 0.0
        %177 = vmatpush1.msra.mxu0 0.0
        %178 = vmatprep.subr.mxu0 0.0
        %179 = vmatpush1.msra.mxu0 0.0
        %180 = vmatprep.subr.mxu0 0.0
        %181 = vmatpush1.msra.mxu0 0.0
        %182 = vmatprep.subr.mxu0 0.0
        %183 = vmatpush1.msra.mxu0 0.0
        %184 = vmatprep.subr.mxu0 0.0
        %185 = vmatpush1.msra.mxu0 0.0
        %186 = vmatprep.subr.mxu0 0.0
        %187 = vmatpush1.msra.mxu0 0.0
        %188 = vmatprep.subr.mxu0 0.0
        %189 = vmatpush1.msra.mxu0 0.0
        %190 = vmatprep.subr.mxu0 0.0
        %191 = vmatpush1.msra.mxu0 0.0
        %192 = vmatprep.subr.mxu0 0.0
        %193 = vmatpush1.msra.mxu0 0.0
        %194 = vmatprep.subr.mxu0 0.0
        %195 = vmatpush1.msra.mxu0 0.0
        %196 = vmatprep.subr.mxu0 0.0
        %197 = vmatpush1.msra.mxu0 0.0
        %198 = vmatprep.subr.mxu0 0.0
        %199 = vmatpush1.msra.mxu0 0.0
        %200 = vmatprep.subr.mxu0 0.0
        %201 = vmatpush1.msra.mxu0 0.0
        %202 = vmatprep.subr.mxu0 0.0
        %203 = vmatpush1.msra.mxu0 0.0
        %204 = vmatprep.subr.mxu0 0.0
        %205 = vmatpush1.msra.mxu0 0.0
        %206 = vmatprep.subr.mxu0 0.0
        %207 = vmatpush1.msra.mxu0 0.0
        %208 = vmatprep.subr.mxu0 0.0
        %209 = vmatpush1.msra.mxu0 0.0
        %210 = vmatprep.subr.mxu0 0.0
        %211 = vmatpush1.msra.mxu0 0.0
        %212 = vmatprep.subr.mxu0 0.0
        %213 = vmatpush1.msra.mxu0 0.0
        %214 = vmatprep.subr.mxu0 0.0
        %215 = vmatpush1.msra.mxu0 0.0
        %216 = vmatprep.subr.mxu0 0.0
        %217 = vmatpush1.msra.mxu0 0.0
        %218 = vmatprep.subr.mxu0 0.0
        %219 = vmatpush1.msra.mxu0 0.0
        %220 = vmatprep.subr.mxu0 0.0
        %221 = vmatpush1.msra.mxu0 0.0
        %222 = vmatprep.mubr.f32.mxu0 0.0
        %v223 = vand.u32 %v152, 4294901760
        %v224 = vsub.f32 %v152, %v223
        %v225 = vand.u32 %v224, 4294901760
        %v226 = vsub.f32 %v224, %v225
        %v227 = vand.u32 %v226, 4294901760
        %228 = vmatmul.mubr.f32.gmra.mrb[0].mxu0 %v227
        %v229 = vpop.f32.mrb[0].mxu0
        %v230 = vadd.f32 0.0, %v229
        %v231 = vpop.f32.mrb[0].mxu0
        %232 = vdwg.mxu0
        %233 = vmatprep.subr.mxu0 0.0
        %v234 = vand.u32 %v146, 4294901760
        %v235 = vsub.f32 %v146, %v234
        %v236 = vand.u32 %v235, 4294901760
        %v237 = vsub.f32 %v235, %v236
        %v238 = vand.u32 %v237, 4294901760
        %239 = vmatpush1.msra.mxu0 %v238
        %240 = vmatprep.subr.mxu0 0.0
        %v241 = vand.u32 %v147, 4294901760
        %v242 = vsub.f32 %v147, %v241
        %v243 = vand.u32 %v242, 4294901760
        %v244 = vsub.f32 %v242, %v243
        %v245 = vand.u32 %v244, 4294901760
        %246 = vmatpush1.msra.mxu0 %v245
        %247 = vmatprep.subr.mxu0 0.0
        %v248 = vand.u32 %v148, 4294901760
        %v249 = vsub.f32 %v148, %v248
        %v250 = vand.u32 %v249, 4294901760
        %v251 = vsub.f32 %v249, %v250
        %v252 = vand.u32 %v251, 4294901760
        %253 = vmatpush1.msra.mxu0 %v252
        %254 = vmatprep.subr.mxu0 0.0
        %v255 = vand.u32 %v149, 4294901760
        %v256 = vsub.f32 %v149, %v255
        %v257 = vand.u32 %v256, 4294901760
        %v258 = vsub.f32 %v256, %v257
        %v259 = vand.u32 %v258, 4294901760
        %260 = vmatpush1.msra.mxu0 %v259
        %261 = vmatprep.subr.mxu0 0.0
        %262 = vmatpush1.msra.mxu0 0.0
        %263 = vmatprep.subr.mxu0 0.0
        %264 = vmatpush1.msra.mxu0 0.0
        %265 = vmatprep.subr.mxu0 0.0
        %266 = vmatpush1.msra.mxu0 0.0
        %267 = vmatprep.subr.mxu0 0.0
        %268 = vmatpush1.msra.mxu0 0.0
        %269 = vmatprep.subr.mxu0 0.0
        %270 = vmatpush1.msra.mxu0 0.0
        %271 = vmatprep.subr.mxu0 0.0
        %272 = vmatpush1.msra.mxu0 0.0
        %273 = vmatprep.subr.mxu0 0.0
        %274 = vmatpush1.msra.mxu0 0.0
        %275 = vmatprep.subr.mxu0 0.0
        %276 = vmatpush1.msra.mxu0 0.0
        %277 = vmatprep.subr.mxu0 0.0
        %278 = vmatpush1.msra.mxu0 0.0
        %279 = vmatprep.subr.mxu0 0.0
        %280 = vmatpush1.msra.mxu0 0.0
        %281 = vmatprep.subr.mxu0 0.0
        %282 = vmatpush1.msra.mxu0 0.0
        %283 = vmatprep.subr.mxu0 0.0
        %284 = vmatpush1.msra.mxu0 0.0
        %285 = vmatprep.subr.mxu0 0.0
        %286 = vmatpush1.msra.mxu0 0.0
        %287 = vmatprep.subr.mxu0 0.0
        %288 = vmatpush1.msra.mxu0 0.0
        %289 = vmatprep.subr.mxu0 0.0
        %290 = vmatpush1.msra.mxu0 0.0
        %291 = vmatprep.subr.mxu0 0.0
        %292 = vmatpush1.msra.mxu0 0.0
        %293 = vmatprep.subr.mxu0 0.0
        %294 = vmatpush1.msra.mxu0 0.0
        %295 = vmatprep.subr.mxu0 0.0
        %296 = vmatpush1.msra.mxu0 0.0
        %297 = vmatprep.subr.mxu0 0.0
        %298 = vmatpush1.msra.mxu0 0.0
        %299 = vmatprep.subr.mxu0 0.0
        %300 = vmatpush1.msra.mxu0 0.0
        %301 = vmatprep.subr.mxu0 0.0
        %302 = vmatpush1.msra.mxu0 0.0
        %303 = vmatprep.subr.mxu0 0.0
        %304 = vmatpush1.msra.mxu0 0.0
        %305 = vmatprep.subr.mxu0 0.0
        %306 = vmatpush1.msra.mxu0 0.0
        %307 = vmatprep.subr.mxu0 0.0
        %308 = vmatpush1.msra.mxu0 0.0
        %309 = vmatprep.subr.mxu0 0.0
        %310 = vmatpush1.msra.mxu0 0.0
        %311 = vmatprep.subr.mxu0 0.0
        %312 = vmatpush1.msra.mxu0 0.0
        %313 = vmatprep.subr.mxu0 0.0
        %314 = vmatpush1.msra.mxu0 0.0
        %315 = vmatprep.subr.mxu0 0.0
        %316 = vmatpush1.msra.mxu0 0.0
        %317 = vmatprep.mubr.f32.mxu0 0.0
        %v318 = vand.u32 %v152, 4294901760
        %319 = vmatmul.mubr.f32.gmra.mrb[0].mxu0 %v318
        %v320 = vpop.f32.mrb[0].mxu0
        %v321 = vadd.f32 %v230, %v320
        %v322 = vpop.f32.mrb[0].mxu0
        %323 = vdwg.mxu0
        %324 = vmatprep.subr.mxu0 0.0
        %v325 = vand.u32 %v146, 4294901760
        %v326 = vsub.f32 %v146, %v325
        %327 = vmatpush1.msra.mxu0 %v326
        %328 = vmatprep.subr.mxu0 0.0
        %v329 = vand.u32 %v147, 4294901760
        %v330 = vsub.f32 %v147, %v329
        %331 = vmatpush1.msra.mxu0 %v330
        %332 = vmatprep.subr.mxu0 0.0
        %v333 = vand.u32 %v148, 4294901760
        %v334 = vsub.f32 %v148, %v333
        %335 = vmatpush1.msra.mxu0 %v334
        %336 = vmatprep.subr.mxu0 0.0
        %v337 = vand.u32 %v149, 4294901760
        %v338 = vsub.f32 %v149, %v337
        %339 = vmatpush1.msra.mxu0 %v338
        %340 = vmatprep.subr.mxu0 0.0
        %341 = vmatpush1.msra.mxu0 0.0
        %342 = vmatprep.subr.mxu0 0.0
        %343 = vmatpush1.msra.mxu0 0.0
        %344 = vmatprep.subr.mxu0 0.0
        %345 = vmatpush1.msra.mxu0 0.0
        %346 = vmatprep.subr.mxu0 0.0
        %347 = vmatpush1.msra.mxu0 0.0
        %348 = vmatprep.subr.mxu0 0.0
        %349 = vmatpush1.msra.mxu0 0.0
        %350 = vmatprep.subr.mxu0 0.0
        %351 = vmatpush1.msra.mxu0 0.0
        %352 = vmatprep.subr.mxu0 0.0
        %353 = vmatpush1.msra.mxu0 0.0
        %354 = vmatprep.subr.mxu0 0.0
        %355 = vmatpush1.msra.mxu0 0.0
        %356 = vmatprep.subr.mxu0 0.0
        %357 = vmatpush1.msra.mxu0 0.0
        %358 = vmatprep.subr.mxu0 0.0
        %359 = vmatpush1.msra.mxu0 0.0
        %360 = vmatprep.subr.mxu0 0.0
        %361 = vmatpush1.msra.mxu0 0.0
        %362 = vmatprep.subr.mxu0 0.0
        %363 = vmatpush1.msra.mxu0 0.0
        %364 = vmatprep.subr.mxu0 0.0
        %365 = vmatpush1.msra.mxu0 0.0
        %366 = vmatprep.subr.mxu0 0.0
        %367 = vmatpush1.msra.mxu0 0.0
        %368 = vmatprep.subr.mxu0 0.0
        %369 = vmatpush1.msra.mxu0 0.0
        %370 = vmatprep.subr.mxu0 0.0
        %371 = vmatpush1.msra.mxu0 0.0
        %372 = vmatprep.subr.mxu0 0.0
        %373 = vmatpush1.msra.mxu0 0.0
        %374 = vmatprep.subr.mxu0 0.0
        %375 = vmatpush1.msra.mxu0 0.0
        %376 = vmatprep.subr.mxu0 0.0
        %377 = vmatpush1.msra.mxu0 0.0
        %378 = vmatprep.subr.mxu0 0.0
        %379 = vmatpush1.msra.mxu0 0.0
        %380 = vmatprep.subr.mxu0 0.0
        %381 = vmatpush1.msra.mxu0 0.0
        %382 = vmatprep.subr.mxu0 0.0
        %383 = vmatpush1.msra.mxu0 0.0
        %384 = vmatprep.subr.mxu0 0.0
        %385 = vmatpush1.msra.mxu0 0.0
        %386 = vmatprep.subr.mxu0 0.0
        %387 = vmatpush1.msra.mxu0 0.0
        %388 = vmatprep.subr.mxu0 0.0
        %389 = vmatpush1.msra.mxu0 0.0
        %390 = vmatprep.subr.mxu0 0.0
        %391 = vmatpush1.msra.mxu0 0.0
        %392 = vmatprep.subr.mxu0 0.0
        %393 = vmatpush1.msra.mxu0 0.0
        %394 = vmatprep.subr.mxu0 0.0
        %395 = vmatpush1.msra.mxu0 0.0
        %396 = vmatprep.mubr.f32.mxu0 0.0
        %v397 = vand.u32 %v152, 4294901760
        %v398 = vsub.f32 %v152, %v397
        %399 = vmatmul.mubr.f32.gmra.mrb[0].mxu0 %v398
        %v400 = vpop.f32.mrb[0].mxu0
        %v401 = vadd.f32 %v321, %v400
        %v402 = vpop.f32.mrb[0].mxu0
        %403 = vdwg.mxu0
        %404 = vmatprep.subr.mxu0 0.0
        %v405 = vand.u32 %v146, 4294901760
        %406 = vmatpush1.msra.mxu0 %v405
        %407 = vmatprep.subr.mxu0 0.0
        %v408 = vand.u32 %v147, 4294901760
        %409 = vmatpush1.msra.mxu0 %v408
        %410 = vmatprep.subr.mxu0 0.0
        %v411 = vand.u32 %v148, 4294901760
        %412 = vmatpush1.msra.mxu0 %v411
        %413 = vmatprep.subr.mxu0 0.0
        %v414 = vand.u32 %v149, 4294901760
        %415 = vmatpush1.msra.mxu0 %v414
        %416 = vmatprep.subr.mxu0 0.0
        %417 = vmatpush1.msra.mxu0 0.0
        %418 = vmatprep.subr.mxu0 0.0
        %419 = vmatpush1.msra.mxu0 0.0
        %420 = vmatprep.subr.mxu0 0.0
        %421 = vmatpush1.msra.mxu0 0.0
        %422 = vmatprep.subr.mxu0 0.0
        %423 = vmatpush1.msra.mxu0 0.0
        %424 = vmatprep.subr.mxu0 0.0
        %425 = vmatpush1.msra.mxu0 0.0
        %426 = vmatprep.subr.mxu0 0.0
        %427 = vmatpush1.msra.mxu0 0.0
        %428 = vmatprep.subr.mxu0 0.0
        %429 = vmatpush1.msra.mxu0 0.0
        %430 = vmatprep.subr.mxu0 0.0
        %431 = vmatpush1.msra.mxu0 0.0
        %432 = vmatprep.subr.mxu0 0.0
        %433 = vmatpush1.msra.mxu0 0.0
        %434 = vmatprep.subr.mxu0 0.0
        %435 = vmatpush1.msra.mxu0 0.0
        %436 = vmatprep.subr.mxu0 0.0
        %437 = vmatpush1.msra.mxu0 0.0
        %438 = vmatprep.subr.mxu0 0.0
        %439 = vmatpush1.msra.mxu0 0.0
        %440 = vmatprep.subr.mxu0 0.0
        %441 = vmatpush1.msra.mxu0 0.0
        %442 = vmatprep.subr.mxu0 0.0
        %443 = vmatpush1.msra.mxu0 0.0
        %444 = vmatprep.subr.mxu0 0.0
        %445 = vmatpush1.msra.mxu0 0.0
        %446 = vmatprep.subr.mxu0 0.0
        %447 = vmatpush1.msra.mxu0 0.0
        %448 = vmatprep.subr.mxu0 0.0
        %449 = vmatpush1.msra.mxu0 0.0
        %450 = vmatprep.subr.mxu0 0.0
        %451 = vmatpush1.msra.mxu0 0.0
        %452 = vmatprep.subr.mxu0 0.0
        %453 = vmatpush1.msra.mxu0 0.0
        %454 = vmatprep.subr.mxu0 0.0
        %455 = vmatpush1.msra.mxu0 0.0
        %456 = vmatprep.subr.mxu0 0.0
        %457 = vmatpush1.msra.mxu0 0.0
        %458 = vmatprep.subr.mxu0 0.0
        %459 = vmatpush1.msra.mxu0 0.0
        %460 = vmatprep.subr.mxu0 0.0
        %461 = vmatpush1.msra.mxu0 0.0
        %462 = vmatprep.subr.mxu0 0.0
        %463 = vmatpush1.msra.mxu0 0.0
        %464 = vmatprep.subr.mxu0 0.0
        %465 = vmatpush1.msra.mxu0 0.0
        %466 = vmatprep.subr.mxu0 0.0
        %467 = vmatpush1.msra.mxu0 0.0
        %468 = vmatprep.subr.mxu0 0.0
        %469 = vmatpush1.msra.mxu0 0.0
        %470 = vmatprep.subr.mxu0 0.0
        %471 = vmatpush1.msra.mxu0 0.0
        %472 = vmatprep.mubr.f32.mxu0 0.0
        %v473 = vand.u32 %v152, 4294901760
        %v474 = vsub.f32 %v152, %v473
        %v475 = vand.u32 %v474, 4294901760
        %476 = vmatmul.mubr.f32.gmra.mrb[0].mxu0 %v475
        %v477 = vpop.f32.mrb[0].mxu0
        %v478 = vadd.f32 %v401, %v477
        %v479 = vpop.f32.mrb[0].mxu0
        %480 = vdwg.mxu0
        %481 = vmatprep.subr.mxu0 0.0
        %v482 = vand.u32 %v146, 4294901760
        %v483 = vsub.f32 %v146, %v482
        %v484 = vand.u32 %v483, 4294901760
        %485 = vmatpush1.msra.mxu0 %v484
        %486 = vmatprep.subr.mxu0 0.0
        %v487 = vand.u32 %v147, 4294901760
        %v488 = vsub.f32 %v147, %v487
        %v489 = vand.u32 %v488, 4294901760
        %490 = vmatpush1.msra.mxu0 %v489
        %491 = vmatprep.subr.mxu0 0.0
        %v492 = vand.u32 %v148, 4294901760
        %v493 = vsub.f32 %v148, %v492
        %v494 = vand.u32 %v493, 4294901760
        %495 = vmatpush1.msra.mxu0 %v494
        %496 = vmatprep.subr.mxu0 0.0
        %v497 = vand.u32 %v149, 4294901760
        %v498 = vsub.f32 %v149, %v497
        %v499 = vand.u32 %v498, 4294901760
        %500 = vmatpush1.msra.mxu0 %v499
        %501 = vmatprep.subr.mxu0 0.0
        %502 = vmatpush1.msra.mxu0 0.0
        %503 = vmatprep.subr.mxu0 0.0
        %504 = vmatpush1.msra.mxu0 0.0
        %505 = vmatprep.subr.mxu0 0.0
        %506 = vmatpush1.msra.mxu0 0.0
        %507 = vmatprep.subr.mxu0 0.0
        %508 = vmatpush1.msra.mxu0 0.0
        %509 = vmatprep.subr.mxu0 0.0
        %510 = vmatpush1.msra.mxu0 0.0
        %511 = vmatprep.subr.mxu0 0.0
        %512 = vmatpush1.msra.mxu0 0.0
        %513 = vmatprep.subr.mxu0 0.0
        %514 = vmatpush1.msra.mxu0 0.0
        %515 = vmatprep.subr.mxu0 0.0
        %516 = vmatpush1.msra.mxu0 0.0
        %517 = vmatprep.subr.mxu0 0.0
        %518 = vmatpush1.msra.mxu0 0.0
        %519 = vmatprep.subr.mxu0 0.0
        %520 = vmatpush1.msra.mxu0 0.0
        %521 = vmatprep.subr.mxu0 0.0
        %522 = vmatpush1.msra.mxu0 0.0
        %523 = vmatprep.subr.mxu0 0.0
        %524 = vmatpush1.msra.mxu0 0.0
        %525 = vmatprep.subr.mxu0 0.0
        %526 = vmatpush1.msra.mxu0 0.0
        %527 = vmatprep.subr.mxu0 0.0
        %528 = vmatpush1.msra.mxu0 0.0
        %529 = vmatprep.subr.mxu0 0.0
        %530 = vmatpush1.msra.mxu0 0.0
        %531 = vmatprep.subr.mxu0 0.0
        %532 = vmatpush1.msra.mxu0 0.0
        %533 = vmatprep.subr.mxu0 0.0
        %534 = vmatpush1.msra.mxu0 0.0
        %535 = vmatprep.subr.mxu0 0.0
        %536 = vmatpush1.msra.mxu0 0.0
        %537 = vmatprep.subr.mxu0 0.0
        %538 = vmatpush1.msra.mxu0 0.0
        %539 = vmatprep.subr.mxu0 0.0
        %540 = vmatpush1.msra.mxu0 0.0
        %541 = vmatprep.subr.mxu0 0.0
        %542 = vmatpush1.msra.mxu0 0.0
        %543 = vmatprep.subr.mxu0 0.0
        %544 = vmatpush1.msra.mxu0 0.0
        %545 = vmatprep.subr.mxu0 0.0
        %546 = vmatpush1.msra.mxu0 0.0
        %547 = vmatprep.subr.mxu0 0.0
        %548 = vmatpush1.msra.mxu0 0.0
        %549 = vmatprep.subr.mxu0 0.0
        %550 = vmatpush1.msra.mxu0 0.0
        %551 = vmatprep.subr.mxu0 0.0
        %552 = vmatpush1.msra.mxu0 0.0
        %553 = vmatprep.subr.mxu0 0.0
        %554 = vmatpush1.msra.mxu0 0.0
        %555 = vmatprep.subr.mxu0 0.0
        %556 = vmatpush1.msra.mxu0 0.0
        %557 = vmatprep.mubr.f32.mxu0 0.0
        %v558 = vand.u32 %v152, 4294901760
        %559 = vmatmul.mubr.f32.gmra.mrb[0].mxu0 %v558
        %v560 = vpop.f32.mrb[0].mxu0
        %v561 = vadd.f32 %v478, %v560
        %v562 = vpop.f32.mrb[0].mxu0
        %563 = vdwg.mxu0
        %564 = vmatprep.subr.mxu0 0.0
        %v565 = vand.u32 %v146, 4294901760
        %566 = vmatpush1.msra.mxu0 %v565
        %567 = vmatprep.subr.mxu0 0.0
        %v568 = vand.u32 %v147, 4294901760
        %569 = vmatpush1.msra.mxu0 %v568
        %570 = vmatprep.subr.mxu0 0.0
        %v571 = vand.u32 %v148, 4294901760
        %572 = vmatpush1.msra.mxu0 %v571
        %573 = vmatprep.subr.mxu0 0.0
        %v574 = vand.u32 %v149, 4294901760
        %575 = vmatpush1.msra.mxu0 %v574
        %576 = vmatprep.subr.mxu0 0.0
        %577 = vmatpush1.msra.mxu0 0.0
        %578 = vmatprep.subr.mxu0 0.0
        %579 = vmatpush1.msra.mxu0 0.0
        %580 = vmatprep.subr.mxu0 0.0
        %581 = vmatpush1.msra.mxu0 0.0
        %582 = vmatprep.subr.mxu0 0.0
        %583 = vmatpush1.msra.mxu0 0.0
        %584 = vmatprep.subr.mxu0 0.0
        %585 = vmatpush1.msra.mxu0 0.0
        %586 = vmatprep.subr.mxu0 0.0
        %587 = vmatpush1.msra.mxu0 0.0
        %588 = vmatprep.subr.mxu0 0.0
        %589 = vmatpush1.msra.mxu0 0.0
        %590 = vmatprep.subr.mxu0 0.0
        %591 = vmatpush1.msra.mxu0 0.0
        %592 = vmatprep.subr.mxu0 0.0
        %593 = vmatpush1.msra.mxu0 0.0
        %594 = vmatprep.subr.mxu0 0.0
        %595 = vmatpush1.msra.mxu0 0.0
        %596 = vmatprep.subr.mxu0 0.0
        %597 = vmatpush1.msra.mxu0 0.0
        %598 = vmatprep.subr.mxu0 0.0
        %599 = vmatpush1.msra.mxu0 0.0
        %600 = vmatprep.subr.mxu0 0.0
        %601 = vmatpush1.msra.mxu0 0.0
        %602 = vmatprep.subr.mxu0 0.0
        %603 = vmatpush1.msra.mxu0 0.0
        %604 = vmatprep.subr.mxu0 0.0
        %605 = vmatpush1.msra.mxu0 0.0
        %606 = vmatprep.subr.mxu0 0.0
        %607 = vmatpush1.msra.mxu0 0.0
        %608 = vmatprep.subr.mxu0 0.0
        %609 = vmatpush1.msra.mxu0 0.0
        %610 = vmatprep.subr.mxu0 0.0
        %611 = vmatpush1.msra.mxu0 0.0
        %612 = vmatprep.subr.mxu0 0.0
        %613 = vmatpush1.msra.mxu0 0.0
        %614 = vmatprep.subr.mxu0 0.0
        %615 = vmatpush1.msra.mxu0 0.0
        %616 = vmatprep.subr.mxu0 0.0
        %617 = vmatpush1.msra.mxu0 0.0
        %618 = vmatprep.subr.mxu0 0.0
        %619 = vmatpush1.msra.mxu0 0.0
        %620 = vmatprep.subr.mxu0 0.0
        %621 = vmatpush1.msra.mxu0 0.0
        %622 = vmatprep.subr.mxu0 0.0
        %623 = vmatpush1.msra.mxu0 0.0
        %624 = vmatprep.subr.mxu0 0.0
        %625 = vmatpush1.msra.mxu0 0.0
        %626 = vmatprep.subr.mxu0 0.0
        %627 = vmatpush1.msra.mxu0 0.0
        %628 = vmatprep.subr.mxu0 0.0
        %629 = vmatpush1.msra.mxu0 0.0
        %630 = vmatprep.subr.mxu0 0.0
        %631 = vmatpush1.msra.mxu0 0.0
        %632 = vmatprep.mubr.f32.mxu0 0.0
        %v633 = vand.u32 %v152, 4294901760
        %634 = vmatmul.mubr.f32.gmra.mrb[0].mxu0 %v633
        %v635 = vpop.f32.mrb[0].mxu0
        %v636 = vadd.f32 %v561, %v635
        %v637 = vpop.f32.mrb[0].mxu0
        %638 = vdwg.mxu0
        %v639 = vxor.u32 %v636, 2147483648
        %v640 = vmul.f32 %v639, 1.442695
        %v641 = vpow.pop %v640
        %v642 = vadd.f32 %v641, 1.0
        %v643 = vrcp.pop %v642
        %v644 = vmul.f32 1.0, %v643
        %v645 = vmul.f32 %v636, %v644
        %v647 = vrot.slane %v636, 7
        %v649 = vrot.slane %v636, 5
        %v651 = vrot.slane %v636, 3
        %v653 = vrot.slane %v636, 1
        %vm655 = vcmask 1040384
        %v656 = vsel %vm655, %v647, %v649
        %vm657 = vcmask 1041408
        %v658 = vsel %vm657, %v656, %v651
        %vm659 = vcmask 1042432
        %v660 = vsel %vm659, %v658, %v653
        %vm661 = vcmask 1043456
        %v662 = vsel %vm661, %v660, %v647
        %vm663 = vcmask 1044480
        %v664 = vsel %vm663, %v662, %v649
        %vm665 = vcmask 1045504
        %v666 = vsel %vm665, %v664, %v651
        %vm667 = vcmask 1046528
        %v668 = vsel %vm667, %v666, %v653
        %670 = vrot.lane.b32.xlu0 %v668, 64
        %v671 = vpop.permute.xlu0 %670
        %vm673 = vcmask 523264
        %v674 = vsel %vm673, %v636, %v671
        %v676 = vrot.slane %v674, 5
        %v678 = vsel %vm659, 0.0, %v676
        %v679 = vld [vmem:[%s1 + $0x118] sm:$0x1]
        %v680 = vld [vmem:[%s1 + $0x110] sm:$0x1]
        %v681 = vlaneseq
        %v682 = vshrl.u32 %v681, 7
        %v683 = vsub.s32 0, %v682
        %v684 = vrot.slane %v680, %v683
        %v685 = vmul.f32 %v684, %v678
        %v686 = vlaneseq
        %v687 = vshrl.u32 %v686, 7
        %v688 = vsub.s32 0, %v687
        %v689 = vrot.slane %v679, %v688
        %v690 = vadd.f32 %v689, %v685
        %v691 = vld [vmem:[%s1 + $0x111] sm:$0x1]
        %v692 = vlaneseq
        %v693 = vshrl.u32 %v692, 7
        %v694 = vsub.s32 0, %v693
        %v695 = vrot.slane %v691, %v694
        %v696 = vmul.f32 %v695, %v678
        %v697 = vmul.f32 %v695, %v676
        %v700 = vrot.slane %v696, 1
        %v701 = vrot.slane %v697, 1
        %v702 = vsel %vm667, %v700, %v701
        %v704 = vadd.f32 %v690, %v702
        %v705 = vld [vmem:[%s1 + $0x112] sm:$0x1]
        %v706 = vlaneseq
        %v707 = vshrl.u32 %v706, 7
        %v708 = vsub.s32 0, %v707
        %v709 = vrot.slane %v705, %v708
        %v710 = vmul.f32 %v709, %v678
        %v711 = vmul.f32 %v709, %v676
        %v714 = vrot.slane %v710, 2
        %v715 = vrot.slane %v711, 2
        %v716 = vsel %vm665, %v714, %v715
        %v718 = vadd.f32 %v704, %v716
        %v719 = vld [vmem:[%s1 + $0x113] sm:$0x1]
        %v720 = vlaneseq
        %v721 = vshrl.u32 %v720, 7
        %v722 = vsub.s32 0, %v721
        %v723 = vrot.slane %v719, %v722
        %v724 = vmul.f32 %v723, %v678
        %v725 = vmul.f32 %v723, %v676
        %v728 = vrot.slane %v724, 3
        %v729 = vrot.slane %v725, 3
        %v730 = vsel %vm663, %v728, %v729
        %v732 = vadd.f32 %v718, %v730
        %v733 = vxor.u32 %v732, 2147483648
        %v734 = vmul.f32 %v733, 1.442695
        %v735 = vpow.pop %v734
        %v736 = vadd.f32 %v735, 1.0
        %v737 = vrcp.pop %v736
        %v738 = vmul.f32 1.0, %v737
        %v739 = vmul.f32 %v732, %v738
        %v740 = vld [vmem:[%s1 + $0x40] sm:$0xff]
        %v741 = vld [vmem:[%s1 + $0x48] sm:$0xff]
        %v742 = vld [vmem:[%s1 + $0x50] sm:$0xff]
        %v743 = vld [vmem:[%s1 + $0x58] sm:$0xff]
        %v744 = vld [vmem:[%s1 + $0x60] sm:$0xff]
        %v745 = vld [vmem:[%s1 + $0x68] sm:$0xff]
        %v746 = vld [vmem:[%s1 + $0x70] sm:$0xff]
        %v747 = vld [vmem:[%s1 + $0x78] sm:$0xff]
        %v748 = vld [vmem:[%s1 + $0x80] sm:$0xff]
        %v749 = vld [vmem:[%s1 + $0x88] sm:$0xff]
        %v750 = vld [vmem:[%s1 + $0x90] sm:$0xff]
        %v751 = vld [vmem:[%s1 + $0x98] sm:$0xff]
        %v752 = vld [vmem:[%s1 + $0xa0] sm:$0xff]
        %v753 = vld [vmem:[%s1 + $0xa8] sm:$0xff]
        %v754 = vld [vmem:[%s1 + $0xb0] sm:$0xff]
        %v755 = vld [vmem:[%s1 + $0xb8] sm:$0xff]
        %v756 = vld [vmem:[%s1 + $0x119] sm:$0x1]
        %v757 = vlaneseq
        %v758 = vshrl.u32 %v757, 7
        %v759 = vsub.s32 0, %v758
        %v760 = vrot.slane %v756, %v759
        %761 = vmatprep.subr.mxu0 0.0
        %762 = vmatpush1.msra.mxu0 %v740
        %763 = vmatprep.subr.mxu0 0.0
        %764 = vmatpush1.msra.mxu0 %v741
        %765 = vmatprep.subr.mxu0 0.0
        %766 = vmatpush1.msra.mxu0 %v742
        %767 = vmatprep.subr.mxu0 0.0
        %768 = vmatpush1.msra.mxu0 %v743
        %769 = vmatprep.subr.mxu0 0.0
        %770 = vmatpush1.msra.mxu0 %v744
        %771 = vmatprep.subr.mxu0 0.0
        %772 = vmatpush1.msra.mxu0 %v745
        %773 = vmatprep.subr.mxu0 0.0
        %774 = vmatpush1.msra.mxu0 %v746
        %775 = vmatprep.subr.mxu0 0.0
        %776 = vmatpush1.msra.mxu0 %v747
        %777 = vmatprep.subr.mxu0 0.0
        %778 = vmatpush1.msra.mxu0 %v748
        %779 = vmatprep.subr.mxu0 0.0
        %780 = vmatpush1.msra.mxu0 %v749
        %781 = vmatprep.subr.mxu0 0.0
        %782 = vmatpush1.msra.mxu0 %v750
        %783 = vmatprep.subr.mxu0 0.0
        %784 = vmatpush1.msra.mxu0 %v751
        %785 = vmatprep.subr.mxu0 0.0
        %786 = vmatpush1.msra.mxu0 %v752
        %787 = vmatprep.subr.mxu0 0.0
        %788 = vmatpush1.msra.mxu0 %v753
        %789 = vmatprep.subr.mxu0 0.0
        %790 = vmatpush1.msra.mxu0 %v754
        %791 = vmatprep.subr.mxu0 0.0
        %792 = vmatpush1.msra.mxu0 %v755
        %793 = vmatprep.subr.mxu0 0.0
        %794 = vmatpush1.msra.mxu0 0.0
        %795 = vmatprep.subr.mxu0 0.0
        %796 = vmatpush1.msra.mxu0 0.0
        %797 = vmatprep.subr.mxu0 0.0
        %798 = vmatpush1.msra.mxu0 0.0
        %799 = vmatprep.subr.mxu0 0.0
        %800 = vmatpush1.msra.mxu0 0.0
        %801 = vmatprep.subr.mxu0 0.0
        %802 = vmatpush1.msra.mxu0 0.0
        %803 = vmatprep.subr.mxu0 0.0
        %804 = vmatpush1.msra.mxu0 0.0
        %805 = vmatprep.subr.mxu0 0.0
        %806 = vmatpush1.msra.mxu0 0.0
        %807 = vmatprep.subr.mxu0 0.0
        %808 = vmatpush1.msra.mxu0 0.0
        %809 = vmatprep.subr.mxu0 0.0
        %810 = vmatpush1.msra.mxu0 0.0
        %811 = vmatprep.subr.mxu0 0.0
        %812 = vmatpush1.msra.mxu0 0.0
        %813 = vmatprep.subr.mxu0 0.0
        %814 = vmatpush1.msra.mxu0 0.0
        %815 = vmatprep.subr.mxu0 0.0
        %816 = vmatpush1.msra.mxu0 0.0
        %817 = vmatprep.subr.mxu0 0.0
        %818 = vmatpush1.msra.mxu0 0.0
        %819 = vmatprep.subr.mxu0 0.0
        %820 = vmatpush1.msra.mxu0 0.0
        %821 = vmatprep.subr.mxu0 0.0
        %822 = vmatpush1.msra.mxu0 0.0
        %823 = vmatprep.subr.mxu0 0.0
        %824 = vmatpush1.msra.mxu0 0.0
        %825 = vmatprep.mubr.f32.mxu0 0.0
        %826 = vmatmul.mubr.f32.gmra.mrb[0].mxu0 %v739
        %v827 = vpop.f32.mrb[0].mxu0
        %v828 = vadd.f32 %v760, %v827
        %v829 = vpop.f32.mrb[0].mxu0
        %830 = vdwg.mxu0
        %v831 = vmax.f32 %v828, 0.0
        %v832 = vand.u32 2147483647, %v828
        %v833 = vsub.f32 0.0, %v832
        %v834 = vmul.f32 %v833, 1.442695
        %v835 = vpow.pop %v834
        %v836 = vadd.f32 %v835, 1.0
        %v837 = vlog2.pop %v836
        %v838 = vmul.f32 %v837, 0.6931472
        %v839 = vadd.f32 %v831, %v838
        %v840 = vld [vmem:[%s1 + $0xc0] sm:$0xff]
        %v841 = vld [vmem:[%s1 + $0xc8] sm:$0xff]
        %v842 = vld [vmem:[%s1 + $0xd0] sm:$0xff]
        %v843 = vld [vmem:[%s1 + $0xd8] sm:$0xff]
        %v844 = vld [vmem:[%s1 + $0xe0] sm:$0xff]
        %v845 = vld [vmem:[%s1 + $0xe8] sm:$0xff]
        %v846 = vld [vmem:[%s1 + $0xf0] sm:$0xff]
        %v847 = vld [vmem:[%s1 + $0xf8] sm:$0xff]
        %848 = vmatprep.subr.mxu0 0.0
        %849 = vmatpush1.xpose.msra.mxu0 %v739
        %850 = vmatprep.subr.mxu0 0.0
        %851 = vmatpush1.xpose.msra.mxu0 0.0
        %852 = vmatprep.subr.mxu0 0.0
        %853 = vmatpush1.xpose.msra.mxu0 0.0
        %854 = vmatprep.subr.mxu0 0.0
        %855 = vmatpush1.xpose.msra.mxu0 0.0
        %856 = vmatprep.subr.mxu0 0.0
        %857 = vmatpush1.xpose.msra.mxu0 0.0
        %858 = vmatprep.subr.mxu0 0.0
        %859 = vmatpush1.xpose.msra.mxu0 0.0
        %860 = vmatprep.subr.mxu0 0.0
        %861 = vmatpush1.xpose.msra.mxu0 0.0
        %862 = vmatprep.subr.mxu0 0.0
        %863 = vmatpush1.xpose.msra.mxu0 0.0
        %864 = vmatprep.subr.mxu0 0.0
        %865 = vmatpush1.xpose.msra.mxu0 0.0
        %866 = vmatprep.subr.mxu0 0.0
        %867 = vmatpush1.xpose.msra.mxu0 0.0
        %868 = vmatprep.subr.mxu0 0.0
        %869 = vmatpush1.xpose.msra.mxu0 0.0
        %870 = vmatprep.subr.mxu0 0.0
        %871 = vmatpush1.xpose.msra.mxu0 0.0
        %872 = vmatprep.subr.mxu0 0.0
        %873 = vmatpush1.xpose.msra.mxu0 0.0
        %874 = vmatprep.subr.mxu0 0.0
        %875 = vmatpush1.xpose.msra.mxu0 0.0
        %876 = vmatprep.subr.mxu0 0.0
        %877 = vmatpush1.xpose.msra.mxu0 0.0
        %878 = vmatprep.subr.mxu0 0.0
        %879 = vmatpush1.xpose.msra.mxu0 0.0
        %880 = vmatprep.subr.mxu0 0.0
        %881 = vmatpush1.xpose.msra.mxu0 0.0
        %882 = vmatprep.subr.mxu0 0.0
        %883 = vmatpush1.xpose.msra.mxu0 0.0
        %884 = vmatprep.subr.mxu0 0.0
        %885 = vmatpush1.xpose.msra.mxu0 0.0
        %886 = vmatprep.subr.mxu0 0.0
        %887 = vmatpush1.xpose.msra.mxu0 0.0
        %888 = vmatprep.subr.mxu0 0.0
        %889 = vmatpush1.xpose.msra.mxu0 0.0
        %890 = vmatprep.subr.mxu0 0.0
        %891 = vmatpush1.xpose.msra.mxu0 0.0
        %892 = vmatprep.subr.mxu0 0.0
        %893 = vmatpush1.xpose.msra.mxu0 0.0
        %894 = vmatprep.subr.mxu0 0.0
        %895 = vmatpush1.xpose.msra.mxu0 0.0
        %896 = vmatprep.subr.mxu0 0.0
        %897 = vmatpush1.xpose.msra.mxu0 0.0
        %898 = vmatprep.subr.mxu0 0.0
        %899 = vmatpush1.xpose.msra.mxu0 0.0
        %900 = vmatprep.subr.mxu0 0.0
        %901 = vmatpush1.xpose.msra.mxu0 0.0
        %902 = vmatprep.subr.mxu0 0.0
        %903 = vmatpush1.xpose.msra.mxu0 0.0
        %904 = vmatprep.subr.mxu0 0.0
        %905 = vmatpush1.xpose.msra.mxu0 0.0
        %906 = vmatprep.subr.mxu0 0.0
        %907 = vmatpush1.xpose.msra.mxu0 0.0
        %908 = vmatprep.subr.mxu0 0.0
        %909 = vmatpush1.xpose.msra.mxu0 0.0
        %910 = vmatprep.subr.mxu0 0.0
        %911 = vmatpush1.xpose.msra.mxu0 0.0
        %912 = vmatprep.mubr.f32.mxu0 0.0
        %913 = vmatmul.mubr.f32.gmra.mrb[0].mxu0 %v840
        %v914 = vpop.f32.mrb[0].mxu0
        %v915 = vadd.f32 0.0, %v914
        %v916 = vpop.f32.mrb[0].mxu0
        %917 = vmatprep.mubr.f32.mxu0 0.0
        %918 = vmatmul.mubr.f32.gmra.mrb[0].mxu0 %v841
        %v919 = vpop.f32.mrb[0].mxu0
        %v920 = vadd.f32 0.0, %v919
        %v921 = vpop.f32.mrb[0].mxu0
        %922 = vmatprep.mubr.f32.mxu0 0.0
        %923 = vmatmul.mubr.f32.gmra.mrb[0].mxu0 %v842
        %v924 = vpop.f32.mrb[0].mxu0
        %v925 = vadd.f32 0.0, %v924
        %v926 = vpop.f32.mrb[0].mxu0
        %927 = vmatprep.mubr.f32.mxu0 0.0
        %928 = vmatmul.mubr.f32.gmra.mrb[0].mxu0 %v843
        %v929 = vpop.f32.mrb[0].mxu0
        %v930 = vadd.f32 0.0, %v929
        %v931 = vpop.f32.mrb[0].mxu0
        %932 = vmatprep.mubr.f32.mxu0 0.0
        %933 = vmatmul.mubr.f32.gmra.mrb[0].mxu0 %v844
        %v934 = vpop.f32.mrb[0].mxu0
        %v935 = vadd.f32 0.0, %v934
        %v936 = vpop.f32.mrb[0].mxu0
        %937 = vmatprep.mubr.f32.mxu0 0.0
        %938 = vmatmul.mubr.f32.gmra.mrb[0].mxu0 %v845
        %v939 = vpop.f32.mrb[0].mxu0
        %v940 = vadd.f32 0.0, %v939
        %v941 = vpop.f32.mrb[0].mxu0
        %942 = vmatprep.mubr.f32.mxu0 0.0
        %943 = vmatmul.mubr.f32.gmra.mrb[0].mxu0 %v846
        %v944 = vpop.f32.mrb[0].mxu0
        %v945 = vadd.f32 0.0, %v944
        %v946 = vpop.f32.mrb[0].mxu0
        %947 = vmatprep.mubr.f32.mxu0 0.0
        %948 = vmatmul.mubr.f32.gmra.mrb[0].mxu0 %v847
        %v949 = vpop.f32.mrb[0].mxu0
        %v950 = vadd.f32 0.0, %v949
        %v951 = vpop.f32.mrb[0].mxu0
        %952 = vdwg.mxu0
        %v953 = vld [vmem:[%s1 + $0x100] sm:$0xff]
        %v954 = vld [vmem:[%s1 + $0x108] sm:$0xff]
        %v955 = vld [vmem:[%s1 + $0x11a] sm:$0x1]
        %v956 = vmul.f32 %v839, %v739
        %958 = vset.pattern.permute.xlu0 0
        %959 = vperm.xlu0 %958, %v915
        %v960 = vpop.permute.xlu0 %959
        %963 = vset.pattern.permute.xlu0 0
        %964 = vperm.xlu0 %963, %v920
        %v965 = vpop.permute.xlu0 %964
        %v967 = vmul.f32 %v960, %v144
        %v968 = vmul.f32 %v965, %v144
        %970 = vset.pattern.permute.xlu0 0
        %971 = vperm.xlu0 %970, %v935
        %v972 = vpop.permute.xlu0 %971
        %975 = vset.pattern.permute.xlu0 0
        %976 = vperm.xlu0 %975, %v940
        %v977 = vpop.permute.xlu0 %976
        %v979 = vmul.f32 %v972, %v145
        %v980 = vmul.f32 %v977, %v145
        %v981 = vadd.f32 %v967, %v979
        %v982 = vadd.f32 %v968, %v980
        %984 = vset.pattern.permute.xlu0 0
        %985 = vperm.xlu0 %984, %v925
        %v986 = vpop.permute.xlu0 %985
        %989 = vset.pattern.permute.xlu0 0
        %990 = vperm.xlu0 %989, %v930
        %v991 = vpop.permute.xlu0 %990
        %v993 = vmul.f32 %v986, %v144
        %v994 = vmul.f32 %v991, %v144
        %996 = vset.pattern.permute.xlu0 0
        %997 = vperm.xlu0 %996, %v945
        %v998 = vpop.permute.xlu0 %997
        %1001 = vset.pattern.permute.xlu0 0
        %1002 = vperm.xlu0 %1001, %v950
        %v1003 = vpop.permute.xlu0 %1002
        %v1005 = vmul.f32 %v998, %v145
        %v1006 = vmul.f32 %v1003, %v145
        %v1007 = vadd.f32 %v993, %v1005
        %v1008 = vadd.f32 %v994, %v1006
        %v1009 = vlaneseq
        %v1010 = vshrl.u32 %v1009, 7
        %v1011 = vsub.s32 0, %v1010
        %v1012 = vrot.slane %v956, %v1011
        %v1013 = vmul.f32 %v1012, %v981
        %v1014 = vmul.f32 %v1012, %v982
        %1015 = vset.pattern.permute.xlu0 1
        %1016 = vperm.xlu0 %1015, %v915
        %v1017 = vpop.permute.xlu0 %1016
        %1019 = vset.pattern.permute.xlu0 1
        %1020 = vperm.xlu0 %1019, %v920
        %v1021 = vpop.permute.xlu0 %1020
        %v1023 = vmul.f32 %v1017, %v144
        %v1024 = vmul.f32 %v1021, %v144
        %1025 = vset.pattern.permute.xlu0 1
        %1026 = vperm.xlu0 %1025, %v935
        %v1027 = vpop.permute.xlu0 %1026
        %1029 = vset.pattern.permute.xlu0 1
        %1030 = vperm.xlu0 %1029, %v940
        %v1031 = vpop.permute.xlu0 %1030
        %v1033 = vmul.f32 %v1027, %v145
        %v1034 = vmul.f32 %v1031, %v145
        %v1035 = vadd.f32 %v1023, %v1033
        %v1036 = vadd.f32 %v1024, %v1034
        %1037 = vset.pattern.permute.xlu0 1
        %1038 = vperm.xlu0 %1037, %v925
        %v1039 = vpop.permute.xlu0 %1038
        %1041 = vset.pattern.permute.xlu0 1
        %1042 = vperm.xlu0 %1041, %v930
        %v1043 = vpop.permute.xlu0 %1042
        %v1045 = vmul.f32 %v1039, %v144
        %v1046 = vmul.f32 %v1043, %v144
        %1047 = vset.pattern.permute.xlu0 1
        %1048 = vperm.xlu0 %1047, %v945
        %v1049 = vpop.permute.xlu0 %1048
        %1051 = vset.pattern.permute.xlu0 1
        %1052 = vperm.xlu0 %1051, %v950
        %v1053 = vpop.permute.xlu0 %1052
        %v1055 = vmul.f32 %v1049, %v145
        %v1056 = vmul.f32 %v1053, %v145
        %v1057 = vadd.f32 %v1045, %v1055
        %v1058 = vadd.f32 %v1046, %v1056
        %v1059 = vlaneseq
        %v1060 = vshrl.u32 %v1059, 7
        %v1061 = vsub.s32 1, %v1060
        %v1062 = vrot.slane %v956, %v1061
        %v1063 = vmul.f32 %v1062, %v1035
        %v1064 = vmul.f32 %v1062, %v1036
        %1065 = vset.pattern.permute.xlu0 2
        %1066 = vperm.xlu0 %1065, %v915
        %v1067 = vpop.permute.xlu0 %1066
        %1069 = vset.pattern.permute.xlu0 2
        %1070 = vperm.xlu0 %1069, %v920
        %v1071 = vpop.permute.xlu0 %1070
        %v1073 = vmul.f32 %v1067, %v144
        %v1074 = vmul.f32 %v1071, %v144
        %1075 = vset.pattern.permute.xlu0 2
        %1076 = vperm.xlu0 %1075, %v935
        %v1077 = vpop.permute.xlu0 %1076
        %1079 = vset.pattern.permute.xlu0 2
        %1080 = vperm.xlu0 %1079, %v940
        %v1081 = vpop.permute.xlu0 %1080
        %v1083 = vmul.f32 %v1077, %v145
        %v1084 = vmul.f32 %v1081, %v145
        %v1085 = vadd.f32 %v1073, %v1083
        %v1086 = vadd.f32 %v1074, %v1084
        %1087 = vset.pattern.permute.xlu0 2
        %1088 = vperm.xlu0 %1087, %v925
        %v1089 = vpop.permute.xlu0 %1088
        %1091 = vset.pattern.permute.xlu0 2
        %1092 = vperm.xlu0 %1091, %v930
        %v1093 = vpop.permute.xlu0 %1092
        %v1095 = vmul.f32 %v1089, %v144
        %v1096 = vmul.f32 %v1093, %v144
        %1097 = vset.pattern.permute.xlu0 2
        %1098 = vperm.xlu0 %1097, %v945
        %v1099 = vpop.permute.xlu0 %1098
        %1101 = vset.pattern.permute.xlu0 2
        %1102 = vperm.xlu0 %1101, %v950
        %v1103 = vpop.permute.xlu0 %1102
        %v1105 = vmul.f32 %v1099, %v145
        %v1106 = vmul.f32 %v1103, %v145
        %v1107 = vadd.f32 %v1095, %v1105
        %v1108 = vadd.f32 %v1096, %v1106
        %v1109 = vlaneseq
        %v1110 = vshrl.u32 %v1109, 7
        %v1111 = vsub.s32 2, %v1110
        %v1112 = vrot.slane %v956, %v1111
        %v1113 = vmul.f32 %v1112, %v1085
        %v1114 = vmul.f32 %v1112, %v1086
        %1115 = vset.pattern.permute.xlu0 3
        %1116 = vperm.xlu0 %1115, %v915
        %v1117 = vpop.permute.xlu0 %1116
        %1119 = vset.pattern.permute.xlu0 3
        %1120 = vperm.xlu0 %1119, %v920
        %v1121 = vpop.permute.xlu0 %1120
        %v1123 = vmul.f32 %v1117, %v144
        %v1124 = vmul.f32 %v1121, %v144
        %1125 = vset.pattern.permute.xlu0 3
        %1126 = vperm.xlu0 %1125, %v935
        %v1127 = vpop.permute.xlu0 %1126
        %1129 = vset.pattern.permute.xlu0 3
        %1130 = vperm.xlu0 %1129, %v940
        %v1131 = vpop.permute.xlu0 %1130
        %v1133 = vmul.f32 %v1127, %v145
        %v1134 = vmul.f32 %v1131, %v145
        %v1135 = vadd.f32 %v1123, %v1133
        %v1136 = vadd.f32 %v1124, %v1134
        %1137 = vset.pattern.permute.xlu0 3
        %1138 = vperm.xlu0 %1137, %v925
        %v1139 = vpop.permute.xlu0 %1138
        %1141 = vset.pattern.permute.xlu0 3
        %1142 = vperm.xlu0 %1141, %v930
        %v1143 = vpop.permute.xlu0 %1142
        %v1145 = vmul.f32 %v1139, %v144
        %v1146 = vmul.f32 %v1143, %v144
        %1147 = vset.pattern.permute.xlu0 3
        %1148 = vperm.xlu0 %1147, %v945
        %v1149 = vpop.permute.xlu0 %1148
        %1151 = vset.pattern.permute.xlu0 3
        %1152 = vperm.xlu0 %1151, %v950
        %v1153 = vpop.permute.xlu0 %1152
        %v1155 = vmul.f32 %v1149, %v145
        %v1156 = vmul.f32 %v1153, %v145
        %v1157 = vadd.f32 %v1145, %v1155
        %v1158 = vadd.f32 %v1146, %v1156
        %v1159 = vlaneseq
        %v1160 = vshrl.u32 %v1159, 7
        %v1161 = vsub.s32 3, %v1160
        %v1162 = vrot.slane %v956, %v1161
        %v1163 = vmul.f32 %v1162, %v1135
        %v1164 = vmul.f32 %v1162, %v1136
        %1165 = vset.pattern.permute.xlu0 4
        %1166 = vperm.xlu0 %1165, %v915
        %v1167 = vpop.permute.xlu0 %1166
        %1169 = vset.pattern.permute.xlu0 4
        %1170 = vperm.xlu0 %1169, %v920
        %v1171 = vpop.permute.xlu0 %1170
        %v1173 = vmul.f32 %v1167, %v144
        %v1174 = vmul.f32 %v1171, %v144
        %1175 = vset.pattern.permute.xlu0 4
        %1176 = vperm.xlu0 %1175, %v935
        %v1177 = vpop.permute.xlu0 %1176
        %1179 = vset.pattern.permute.xlu0 4
        %1180 = vperm.xlu0 %1179, %v940
        %v1181 = vpop.permute.xlu0 %1180
        %v1183 = vmul.f32 %v1177, %v145
        %v1184 = vmul.f32 %v1181, %v145
        %v1185 = vadd.f32 %v1173, %v1183
        %v1186 = vadd.f32 %v1174, %v1184
        %1187 = vset.pattern.permute.xlu0 4
        %1188 = vperm.xlu0 %1187, %v925
        %v1189 = vpop.permute.xlu0 %1188
        %1191 = vset.pattern.permute.xlu0 4
        %1192 = vperm.xlu0 %1191, %v930
        %v1193 = vpop.permute.xlu0 %1192
        %v1195 = vmul.f32 %v1189, %v144
        %v1196 = vmul.f32 %v1193, %v144
        %1197 = vset.pattern.permute.xlu0 4
        %1198 = vperm.xlu0 %1197, %v945
        %v1199 = vpop.permute.xlu0 %1198
        %1201 = vset.pattern.permute.xlu0 4
        %1202 = vperm.xlu0 %1201, %v950
        %v1203 = vpop.permute.xlu0 %1202
        %v1205 = vmul.f32 %v1199, %v145
        %v1206 = vmul.f32 %v1203, %v145
        %v1207 = vadd.f32 %v1195, %v1205
        %v1208 = vadd.f32 %v1196, %v1206
        %v1209 = vlaneseq
        %v1210 = vshrl.u32 %v1209, 7
        %v1211 = vsub.s32 4, %v1210
        %v1212 = vrot.slane %v956, %v1211
        %v1213 = vmul.f32 %v1212, %v1185
        %v1214 = vmul.f32 %v1212, %v1186
        %1215 = vset.pattern.permute.xlu0 5
        %1216 = vperm.xlu0 %1215, %v915
        %v1217 = vpop.permute.xlu0 %1216
        %1219 = vset.pattern.permute.xlu0 5
        %1220 = vperm.xlu0 %1219, %v920
        %v1221 = vpop.permute.xlu0 %1220
        %v1223 = vmul.f32 %v1217, %v144
        %v1224 = vmul.f32 %v1221, %v144
        %1225 = vset.pattern.permute.xlu0 5
        %1226 = vperm.xlu0 %1225, %v935
        %v1227 = vpop.permute.xlu0 %1226
        %1229 = vset.pattern.permute.xlu0 5
        %1230 = vperm.xlu0 %1229, %v940
        %v1231 = vpop.permute.xlu0 %1230
        %v1233 = vmul.f32 %v1227, %v145
        %v1234 = vmul.f32 %v1231, %v145
        %v1235 = vadd.f32 %v1223, %v1233
        %v1236 = vadd.f32 %v1224, %v1234
        %1237 = vset.pattern.permute.xlu0 5
        %1238 = vperm.xlu0 %1237, %v925
        %v1239 = vpop.permute.xlu0 %1238
        %1241 = vset.pattern.permute.xlu0 5
        %1242 = vperm.xlu0 %1241, %v930
        %v1243 = vpop.permute.xlu0 %1242
        %v1245 = vmul.f32 %v1239, %v144
        %v1246 = vmul.f32 %v1243, %v144
        %1247 = vset.pattern.permute.xlu0 5
        %1248 = vperm.xlu0 %1247, %v945
        %v1249 = vpop.permute.xlu0 %1248
        %1251 = vset.pattern.permute.xlu0 5
        %1252 = vperm.xlu0 %1251, %v950
        %v1253 = vpop.permute.xlu0 %1252
        %v1255 = vmul.f32 %v1249, %v145
        %v1256 = vmul.f32 %v1253, %v145
        %v1257 = vadd.f32 %v1245, %v1255
        %v1258 = vadd.f32 %v1246, %v1256
        %v1259 = vlaneseq
        %v1260 = vshrl.u32 %v1259, 7
        %v1261 = vsub.s32 5, %v1260
        %v1262 = vrot.slane %v956, %v1261
        %v1263 = vmul.f32 %v1262, %v1235
        %v1264 = vmul.f32 %v1262, %v1236
        %1265 = vset.pattern.permute.xlu0 6
        %1266 = vperm.xlu0 %1265, %v915
        %v1267 = vpop.permute.xlu0 %1266
        %1269 = vset.pattern.permute.xlu0 6
        %1270 = vperm.xlu0 %1269, %v920
        %v1271 = vpop.permute.xlu0 %1270
        %v1273 = vmul.f32 %v1267, %v144
        %v1274 = vmul.f32 %v1271, %v144
        %1275 = vset.pattern.permute.xlu0 6
        %1276 = vperm.xlu0 %1275, %v935
        %v1277 = vpop.permute.xlu0 %1276
        %1279 = vset.pattern.permute.xlu0 6
        %1280 = vperm.xlu0 %1279, %v940
        %v1281 = vpop.permute.xlu0 %1280
        %v1283 = vmul.f32 %v1277, %v145
        %v1284 = vmul.f32 %v1281, %v145
        %v1285 = vadd.f32 %v1273, %v1283
        %v1286 = vadd.f32 %v1274, %v1284
        %1287 = vset.pattern.permute.xlu0 6
        %1288 = vperm.xlu0 %1287, %v925
        %v1289 = vpop.permute.xlu0 %1288
        %1291 = vset.pattern.permute.xlu0 6
        %1292 = vperm.xlu0 %1291, %v930
        %v1293 = vpop.permute.xlu0 %1292
        %v1295 = vmul.f32 %v1289, %v144
        %v1296 = vmul.f32 %v1293, %v144
        %1297 = vset.pattern.permute.xlu0 6
        %1298 = vperm.xlu0 %1297, %v945
        %v1299 = vpop.permute.xlu0 %1298
        %1301 = vset.pattern.permute.xlu0 6
        %1302 = vperm.xlu0 %1301, %v950
        %v1303 = vpop.permute.xlu0 %1302
        %v1305 = vmul.f32 %v1299, %v145
        %v1306 = vmul.f32 %v1303, %v145
        %v1307 = vadd.f32 %v1295, %v1305
        %v1308 = vadd.f32 %v1296, %v1306
        %v1309 = vlaneseq
        %v1310 = vshrl.u32 %v1309, 7
        %v1311 = vsub.s32 6, %v1310
        %v1312 = vrot.slane %v956, %v1311
        %v1313 = vmul.f32 %v1312, %v1285
        %v1314 = vmul.f32 %v1312, %v1286
        %1315 = vset.pattern.permute.xlu0 7
        %1316 = vperm.xlu0 %1315, %v915
        %v1317 = vpop.permute.xlu0 %1316
        %1319 = vset.pattern.permute.xlu0 7
        %1320 = vperm.xlu0 %1319, %v920
        %v1321 = vpop.permute.xlu0 %1320
        %v1323 = vmul.f32 %v1317, %v144
        %v1324 = vmul.f32 %v1321, %v144
        %1325 = vset.pattern.permute.xlu0 7
        %1326 = vperm.xlu0 %1325, %v935
        %v1327 = vpop.permute.xlu0 %1326
        %1329 = vset.pattern.permute.xlu0 7
        %1330 = vperm.xlu0 %1329, %v940
        %v1331 = vpop.permute.xlu0 %1330
        %v1333 = vmul.f32 %v1327, %v145
        %v1334 = vmul.f32 %v1331, %v145
        %v1335 = vadd.f32 %v1323, %v1333
        %v1336 = vadd.f32 %v1324, %v1334
        %1337 = vset.pattern.permute.xlu0 7
        %1338 = vperm.xlu0 %1337, %v925
        %v1339 = vpop.permute.xlu0 %1338
        %1341 = vset.pattern.permute.xlu0 7
        %1342 = vperm.xlu0 %1341, %v930
        %v1343 = vpop.permute.xlu0 %1342
        %v1345 = vmul.f32 %v1339, %v144
        %v1346 = vmul.f32 %v1343, %v144
        %1347 = vset.pattern.permute.xlu0 7
        %1348 = vperm.xlu0 %1347, %v945
        %v1349 = vpop.permute.xlu0 %1348
        %1351 = vset.pattern.permute.xlu0 7
        %1352 = vperm.xlu0 %1351, %v950
        %v1353 = vpop.permute.xlu0 %1352
        %v1355 = vmul.f32 %v1349, %v145
        %v1356 = vmul.f32 %v1353, %v145
        %v1357 = vadd.f32 %v1345, %v1355
        %v1358 = vadd.f32 %v1346, %v1356
        %v1359 = vlaneseq
        %v1360 = vshrl.u32 %v1359, 7
        %v1361 = vsub.s32 7, %v1360
        %v1362 = vrot.slane %v956, %v1361
        %v1363 = vmul.f32 %v1362, %v1335
        %v1364 = vmul.f32 %v1362, %v1336
        %v1365 = vlaneseq
        %v1366 = vshrl.u32 %v1365, 7
        %v1367 = vsub.s32 1, %v1366
        %v1368 = vrot.slane %v839, %v1367
        %v1369 = vmul.f32 %v1368, %v953
        %v1370 = vmul.f32 %v1368, %v954
        %v1371 = vmul.f32 %v1369, 1.442695
        %v1372 = vpow.pop %v1371
        %v1373 = vmul.f32 %v1370, 1.442695
        %v1374 = vpow.pop %v1373
        %v1375 = vlaneseq
        %v1376 = vshrl.u32 %v1375, 7
        %v1377 = vsub.s32 2, %v1376
        %v1378 = vrot.slane %v839, %v1377
        %v1379 = vmul.f32 %v1378, %v953
        %v1380 = vmul.f32 %v1378, %v954
        %v1381 = vmul.f32 %v1379, 1.442695
        %v1382 = vpow.pop %v1381
        %v1383 = vmul.f32 %v1380, 1.442695
        %v1384 = vpow.pop %v1383
        %v1385 = vlaneseq
        %v1386 = vshrl.u32 %v1385, 7
        %v1387 = vsub.s32 3, %v1386
        %v1388 = vrot.slane %v839, %v1387
        %v1389 = vmul.f32 %v1388, %v953
        %v1390 = vmul.f32 %v1388, %v954
        %v1391 = vmul.f32 %v1389, 1.442695
        %v1392 = vpow.pop %v1391
        %v1393 = vmul.f32 %v1390, 1.442695
        %v1394 = vpow.pop %v1393
        %v1395 = vlaneseq
        %v1396 = vshrl.u32 %v1395, 7
        %v1397 = vsub.s32 4, %v1396
        %v1398 = vrot.slane %v839, %v1397
        %v1399 = vmul.f32 %v1398, %v953
        %v1400 = vmul.f32 %v1398, %v954
        %v1401 = vmul.f32 %v1399, 1.442695
        %v1402 = vpow.pop %v1401
        %v1403 = vmul.f32 %v1400, 1.442695
        %v1404 = vpow.pop %v1403
        %v1405 = vlaneseq
        %v1406 = vshrl.u32 %v1405, 7
        %v1407 = vsub.s32 5, %v1406
        %v1408 = vrot.slane %v839, %v1407
        %v1409 = vmul.f32 %v1408, %v953
        %v1410 = vmul.f32 %v1408, %v954
        %v1411 = vmul.f32 %v1409, 1.442695
        %v1412 = vpow.pop %v1411
        %v1413 = vmul.f32 %v1410, 1.442695
        %v1414 = vpow.pop %v1413
        %v1415 = vlaneseq
        %v1416 = vshrl.u32 %v1415, 7
        %v1417 = vsub.s32 6, %v1416
        %v1418 = vrot.slane %v839, %v1417
        %v1419 = vmul.f32 %v1418, %v953
        %v1420 = vmul.f32 %v1418, %v954
        %v1421 = vmul.f32 %v1419, 1.442695
        %v1422 = vpow.pop %v1421
        %v1423 = vmul.f32 %v1420, 1.442695
        %v1424 = vpow.pop %v1423
        %v1425 = vlaneseq
        %v1426 = vshrl.u32 %v1425, 7
        %v1427 = vsub.s32 7, %v1426
        %v1428 = vrot.slane %v839, %v1427
        %v1429 = vmul.f32 %v1428, %v953
        %v1430 = vmul.f32 %v1428, %v954
        %v1431 = vmul.f32 %v1429, 1.442695
        %v1432 = vpow.pop %v1431
        %v1433 = vmul.f32 %v1430, 1.442695
        %v1434 = vpow.pop %v1433
        %v1435 = vmul.f32 %v1013, %v1007
        %v1436 = vmul.f32 %v1014, %v1008
        %v1437 = vadd.f32 %v1435, %v1436
        %v1438 = vrot.slane %v1437, 4
        %v1439 = vadd.f32 %v1437, %v1438
        %v1440 = vrot.slane %v1439, 2
        %v1441 = vadd.f32 %v1439, %v1440
        %v1442 = vrot.slane %v1441, 1
        %v1443 = vadd.f32 %v1441, %v1442
        %v1444 = vmul.f32 %v1372, %v1013
        %v1445 = vmul.f32 %v1374, %v1014
        %v1446 = vadd.f32 %v1444, %v1063
        %v1447 = vadd.f32 %v1445, %v1064
        %v1448 = vmul.f32 %v1446, %v1057
        %v1449 = vmul.f32 %v1447, %v1058
        %v1450 = vadd.f32 %v1448, %v1449
        %v1451 = vrot.slane %v1450, 4
        %v1452 = vadd.f32 %v1450, %v1451
        %v1453 = vrot.slane %v1452, 2
        %v1454 = vadd.f32 %v1452, %v1453
        %v1455 = vrot.slane %v1454, 1
        %v1456 = vadd.f32 %v1454, %v1455
        %v1457 = vmul.f32 %v1382, %v1446
        %v1458 = vmul.f32 %v1384, %v1447
        %v1459 = vadd.f32 %v1457, %v1113
        %v1460 = vadd.f32 %v1458, %v1114
        %v1461 = vmul.f32 %v1459, %v1107
        %v1462 = vmul.f32 %v1460, %v1108
        %v1463 = vadd.f32 %v1461, %v1462
        %v1464 = vrot.slane %v1463, 4
        %v1465 = vadd.f32 %v1463, %v1464
        %v1466 = vrot.slane %v1465, 2
        %v1467 = vadd.f32 %v1465, %v1466
        %v1468 = vrot.slane %v1467, 1
        %v1469 = vadd.f32 %v1467, %v1468
        %v1470 = vmul.f32 %v1392, %v1459
        %v1471 = vmul.f32 %v1394, %v1460
        %v1472 = vadd.f32 %v1470, %v1163
        %v1473 = vadd.f32 %v1471, %v1164
        %v1474 = vmul.f32 %v1472, %v1157
        %v1475 = vmul.f32 %v1473, %v1158
        %v1476 = vadd.f32 %v1474, %v1475
        %v1477 = vrot.slane %v1476, 4
        %v1478 = vadd.f32 %v1476, %v1477
        %v1479 = vrot.slane %v1478, 2
        %v1480 = vadd.f32 %v1478, %v1479
        %v1481 = vrot.slane %v1480, 1
        %v1482 = vadd.f32 %v1480, %v1481
        %v1483 = vmul.f32 %v1402, %v1472
        %v1484 = vmul.f32 %v1404, %v1473
        %v1485 = vadd.f32 %v1483, %v1213
        %v1486 = vadd.f32 %v1484, %v1214
        %v1487 = vmul.f32 %v1485, %v1207
        %v1488 = vmul.f32 %v1486, %v1208
        %v1489 = vadd.f32 %v1487, %v1488
        %v1490 = vrot.slane %v1489, 4
        %v1491 = vadd.f32 %v1489, %v1490
        %v1492 = vrot.slane %v1491, 2
        %v1493 = vadd.f32 %v1491, %v1492
        %v1494 = vrot.slane %v1493, 1
        %v1495 = vadd.f32 %v1493, %v1494
        %v1496 = vmul.f32 %v1412, %v1485
        %v1497 = vmul.f32 %v1414, %v1486
        %v1498 = vadd.f32 %v1496, %v1263
        %v1499 = vadd.f32 %v1497, %v1264
        %v1500 = vmul.f32 %v1498, %v1257
        %v1501 = vmul.f32 %v1499, %v1258
        %v1502 = vadd.f32 %v1500, %v1501
        %v1503 = vrot.slane %v1502, 4
        %v1504 = vadd.f32 %v1502, %v1503
        %v1505 = vrot.slane %v1504, 2
        %v1506 = vadd.f32 %v1504, %v1505
        %v1507 = vrot.slane %v1506, 1
        %v1508 = vadd.f32 %v1506, %v1507
        %v1509 = vmul.f32 %v1422, %v1498
        %v1510 = vmul.f32 %v1424, %v1499
        %v1511 = vadd.f32 %v1509, %v1313
        %v1512 = vadd.f32 %v1510, %v1314
        %v1513 = vmul.f32 %v1511, %v1307
        %v1514 = vmul.f32 %v1512, %v1308
        %v1515 = vadd.f32 %v1513, %v1514
        %v1516 = vrot.slane %v1515, 4
        %v1517 = vadd.f32 %v1515, %v1516
        %v1518 = vrot.slane %v1517, 2
        %v1519 = vadd.f32 %v1517, %v1518
        %v1520 = vrot.slane %v1519, 1
        %v1521 = vadd.f32 %v1519, %v1520
        %v1522 = vmul.f32 %v1432, %v1511
        %v1523 = vmul.f32 %v1434, %v1512
        %v1524 = vadd.f32 %v1522, %v1363
        %v1525 = vadd.f32 %v1523, %v1364
        %v1526 = vmul.f32 %v1524, %v1357
        %v1527 = vmul.f32 %v1525, %v1358
        %v1528 = vadd.f32 %v1526, %v1527
        %v1529 = vrot.slane %v1528, 4
        %v1530 = vadd.f32 %v1528, %v1529
        %v1531 = vrot.slane %v1530, 2
        %v1532 = vadd.f32 %v1530, %v1531
        %v1533 = vrot.slane %v1532, 1
        %v1534 = vadd.f32 %v1532, %v1533
        %v1535 = vsel %vm655, %v1443, %v1456
        %v1536 = vsel %vm657, %v1535, %v1469
        %v1537 = vsel %vm659, %v1536, %v1482
        %v1538 = vsel %vm661, %v1537, %v1495
        %v1539 = vsel %vm663, %v1538, %v1508
        %v1540 = vsel %vm665, %v1539, %v1521
        %v1541 = vsel %vm667, %v1540, %v1534
        %v1542 = vlaneseq
        %v1543 = vshrl.u32 %v1542, 7
        %v1544 = vsub.s32 0, %v1543
        %v1545 = vrot.slane %v955, %v1544
        %v1546 = vmul.f32 %v1545, %v739
        %v1547 = vadd.f32 %v1541, %v1546
        %v1549 = vrot.slane %v1547, 7
        %v1551 = vrot.slane %v1547, 5
        %v1553 = vrot.slane %v1547, 3
        %v1555 = vrot.slane %v1547, 1
        %v1557 = vsel %vm655, %v1549, %v1551
        %v1558 = vsel %vm657, %v1557, %v1553
        %v1559 = vsel %vm659, %v1558, %v1555
        %v1560 = vsel %vm661, %v1559, %v1549
        %v1561 = vsel %vm663, %v1560, %v1551
        %v1562 = vsel %vm665, %v1561, %v1553
        %v1563 = vsel %vm667, %v1562, %v1555
        %1565 = vrot.lane.b32.xlu0 %v1563, 64
        %v1566 = vpop.permute.xlu0 %1565
        %v1568 = vadd.f32 %v1547, %v1566
        %1570 = vrot.lane.b32.xlu0 %v645, 64
        %v1571 = vpop.permute.xlu0 %1570
        %v1573 = vmul.f32 %v1568, %v1571
        %v1574 = vld [vmem:[%s1 + $0x20] sm:$0xff]
        %v1575 = vld [vmem:[%s1 + $0x28] sm:$0xff]
        %v1576 = vld [vmem:[%s1 + $0x30] sm:$0xff]
        %v1577 = vld [vmem:[%s1 + $0x38] sm:$0xff]
        %1578 = vmatprep.subr.mxu0 0.0
        %v1579 = vand.u32 %v1574, 4294901760
        %1580 = vmatpush1.msra.mxu0 %v1579
        %1581 = vmatprep.subr.mxu0 0.0
        %v1582 = vand.u32 %v1575, 4294901760
        %1583 = vmatpush1.msra.mxu0 %v1582
        %1584 = vmatprep.subr.mxu0 0.0
        %v1585 = vand.u32 %v1576, 4294901760
        %1586 = vmatpush1.msra.mxu0 %v1585
        %1587 = vmatprep.subr.mxu0 0.0
        %v1588 = vand.u32 %v1577, 4294901760
        %1589 = vmatpush1.msra.mxu0 %v1588
        %1590 = vmatprep.subr.mxu0 0.0
        %1591 = vmatpush1.msra.mxu0 0.0
        %1592 = vmatprep.subr.mxu0 0.0
        %1593 = vmatpush1.msra.mxu0 0.0
        %1594 = vmatprep.subr.mxu0 0.0
        %1595 = vmatpush1.msra.mxu0 0.0
        %1596 = vmatprep.subr.mxu0 0.0
        %1597 = vmatpush1.msra.mxu0 0.0
        %1598 = vmatprep.subr.mxu0 0.0
        %1599 = vmatpush1.msra.mxu0 0.0
        %1600 = vmatprep.subr.mxu0 0.0
        %1601 = vmatpush1.msra.mxu0 0.0
        %1602 = vmatprep.subr.mxu0 0.0
        %1603 = vmatpush1.msra.mxu0 0.0
        %1604 = vmatprep.subr.mxu0 0.0
        %1605 = vmatpush1.msra.mxu0 0.0
        %1606 = vmatprep.subr.mxu0 0.0
        %1607 = vmatpush1.msra.mxu0 0.0
        %1608 = vmatprep.subr.mxu0 0.0
        %1609 = vmatpush1.msra.mxu0 0.0
        %1610 = vmatprep.subr.mxu0 0.0
        %1611 = vmatpush1.msra.mxu0 0.0
        %1612 = vmatprep.subr.mxu0 0.0
        %1613 = vmatpush1.msra.mxu0 0.0
        %1614 = vmatprep.subr.mxu0 0.0
        %1615 = vmatpush1.msra.mxu0 0.0
        %1616 = vmatprep.subr.mxu0 0.0
        %1617 = vmatpush1.msra.mxu0 0.0
        %1618 = vmatprep.subr.mxu0 0.0
        %1619 = vmatpush1.msra.mxu0 0.0
        %1620 = vmatprep.subr.mxu0 0.0
        %1621 = vmatpush1.msra.mxu0 0.0
        %1622 = vmatprep.subr.mxu0 0.0
        %1623 = vmatpush1.msra.mxu0 0.0
        %1624 = vmatprep.subr.mxu0 0.0
        %1625 = vmatpush1.msra.mxu0 0.0
        %1626 = vmatprep.subr.mxu0 0.0
        %1627 = vmatpush1.msra.mxu0 0.0
        %1628 = vmatprep.subr.mxu0 0.0
        %1629 = vmatpush1.msra.mxu0 0.0
        %1630 = vmatprep.subr.mxu0 0.0
        %1631 = vmatpush1.msra.mxu0 0.0
        %1632 = vmatprep.subr.mxu0 0.0
        %1633 = vmatpush1.msra.mxu0 0.0
        %1634 = vmatprep.subr.mxu0 0.0
        %1635 = vmatpush1.msra.mxu0 0.0
        %1636 = vmatprep.subr.mxu0 0.0
        %1637 = vmatpush1.msra.mxu0 0.0
        %1638 = vmatprep.subr.mxu0 0.0
        %1639 = vmatpush1.msra.mxu0 0.0
        %1640 = vmatprep.subr.mxu0 0.0
        %1641 = vmatpush1.msra.mxu0 0.0
        %1642 = vmatprep.subr.mxu0 0.0
        %1643 = vmatpush1.msra.mxu0 0.0
        %1644 = vmatprep.subr.mxu0 0.0
        %1645 = vmatpush1.msra.mxu0 0.0
        %1646 = vmatprep.mubr.f32.mxu0 0.0
        %v1647 = vand.u32 %v152, 4294901760
        %v1648 = vsub.f32 %v152, %v1647
        %v1649 = vand.u32 %v1648, 4294901760
        %v1650 = vsub.f32 %v1648, %v1649
        %v1651 = vand.u32 %v1650, 4294901760
        %1652 = vmatmul.mubr.f32.gmra.mrb[0].mxu0 %v1651
        %v1653 = vpop.f32.mrb[0].mxu0
        %v1654 = vadd.f32 0.0, %v1653
        %v1655 = vpop.f32.mrb[0].mxu0
        %1656 = vdwg.mxu0
        %1657 = vmatprep.subr.mxu0 0.0
        %v1658 = vand.u32 %v1574, 4294901760
        %v1659 = vsub.f32 %v1574, %v1658
        %v1660 = vand.u32 %v1659, 4294901760
        %v1661 = vsub.f32 %v1659, %v1660
        %v1662 = vand.u32 %v1661, 4294901760
        %1663 = vmatpush1.msra.mxu0 %v1662
        %1664 = vmatprep.subr.mxu0 0.0
        %v1665 = vand.u32 %v1575, 4294901760
        %v1666 = vsub.f32 %v1575, %v1665
        %v1667 = vand.u32 %v1666, 4294901760
        %v1668 = vsub.f32 %v1666, %v1667
        %v1669 = vand.u32 %v1668, 4294901760
        %1670 = vmatpush1.msra.mxu0 %v1669
        %1671 = vmatprep.subr.mxu0 0.0
        %v1672 = vand.u32 %v1576, 4294901760
        %v1673 = vsub.f32 %v1576, %v1672
        %v1674 = vand.u32 %v1673, 4294901760
        %v1675 = vsub.f32 %v1673, %v1674
        %v1676 = vand.u32 %v1675, 4294901760
        %1677 = vmatpush1.msra.mxu0 %v1676
        %1678 = vmatprep.subr.mxu0 0.0
        %v1679 = vand.u32 %v1577, 4294901760
        %v1680 = vsub.f32 %v1577, %v1679
        %v1681 = vand.u32 %v1680, 4294901760
        %v1682 = vsub.f32 %v1680, %v1681
        %v1683 = vand.u32 %v1682, 4294901760
        %1684 = vmatpush1.msra.mxu0 %v1683
        %1685 = vmatprep.subr.mxu0 0.0
        %1686 = vmatpush1.msra.mxu0 0.0
        %1687 = vmatprep.subr.mxu0 0.0
        %1688 = vmatpush1.msra.mxu0 0.0
        %1689 = vmatprep.subr.mxu0 0.0
        %1690 = vmatpush1.msra.mxu0 0.0
        %1691 = vmatprep.subr.mxu0 0.0
        %1692 = vmatpush1.msra.mxu0 0.0
        %1693 = vmatprep.subr.mxu0 0.0
        %1694 = vmatpush1.msra.mxu0 0.0
        %1695 = vmatprep.subr.mxu0 0.0
        %1696 = vmatpush1.msra.mxu0 0.0
        %1697 = vmatprep.subr.mxu0 0.0
        %1698 = vmatpush1.msra.mxu0 0.0
        %1699 = vmatprep.subr.mxu0 0.0
        %1700 = vmatpush1.msra.mxu0 0.0
        %1701 = vmatprep.subr.mxu0 0.0
        %1702 = vmatpush1.msra.mxu0 0.0
        %1703 = vmatprep.subr.mxu0 0.0
        %1704 = vmatpush1.msra.mxu0 0.0
        %1705 = vmatprep.subr.mxu0 0.0
        %1706 = vmatpush1.msra.mxu0 0.0
        %1707 = vmatprep.subr.mxu0 0.0
        %1708 = vmatpush1.msra.mxu0 0.0
        %1709 = vmatprep.subr.mxu0 0.0
        %1710 = vmatpush1.msra.mxu0 0.0
        %1711 = vmatprep.subr.mxu0 0.0
        %1712 = vmatpush1.msra.mxu0 0.0
        %1713 = vmatprep.subr.mxu0 0.0
        %1714 = vmatpush1.msra.mxu0 0.0
        %1715 = vmatprep.subr.mxu0 0.0
        %1716 = vmatpush1.msra.mxu0 0.0
        %1717 = vmatprep.subr.mxu0 0.0
        %1718 = vmatpush1.msra.mxu0 0.0
        %1719 = vmatprep.subr.mxu0 0.0
        %1720 = vmatpush1.msra.mxu0 0.0
        %1721 = vmatprep.subr.mxu0 0.0
        %1722 = vmatpush1.msra.mxu0 0.0
        %1723 = vmatprep.subr.mxu0 0.0
        %1724 = vmatpush1.msra.mxu0 0.0
        %1725 = vmatprep.subr.mxu0 0.0
        %1726 = vmatpush1.msra.mxu0 0.0
        %1727 = vmatprep.subr.mxu0 0.0
        %1728 = vmatpush1.msra.mxu0 0.0
        %1729 = vmatprep.subr.mxu0 0.0
        %1730 = vmatpush1.msra.mxu0 0.0
        %1731 = vmatprep.subr.mxu0 0.0
        %1732 = vmatpush1.msra.mxu0 0.0
        %1733 = vmatprep.subr.mxu0 0.0
        %1734 = vmatpush1.msra.mxu0 0.0
        %1735 = vmatprep.subr.mxu0 0.0
        %1736 = vmatpush1.msra.mxu0 0.0
        %1737 = vmatprep.subr.mxu0 0.0
        %1738 = vmatpush1.msra.mxu0 0.0
        %1739 = vmatprep.subr.mxu0 0.0
        %1740 = vmatpush1.msra.mxu0 0.0
        %1741 = vmatprep.mubr.f32.mxu0 0.0
        %v1742 = vand.u32 %v152, 4294901760
        %1743 = vmatmul.mubr.f32.gmra.mrb[0].mxu0 %v1742
        %v1744 = vpop.f32.mrb[0].mxu0
        %v1745 = vadd.f32 %v1654, %v1744
        %v1746 = vpop.f32.mrb[0].mxu0
        %1747 = vdwg.mxu0
        %1748 = vmatprep.subr.mxu0 0.0
        %v1749 = vand.u32 %v1574, 4294901760
        %v1750 = vsub.f32 %v1574, %v1749
        %1751 = vmatpush1.msra.mxu0 %v1750
        %1752 = vmatprep.subr.mxu0 0.0
        %v1753 = vand.u32 %v1575, 4294901760
        %v1754 = vsub.f32 %v1575, %v1753
        %1755 = vmatpush1.msra.mxu0 %v1754
        %1756 = vmatprep.subr.mxu0 0.0
        %v1757 = vand.u32 %v1576, 4294901760
        %v1758 = vsub.f32 %v1576, %v1757
        %1759 = vmatpush1.msra.mxu0 %v1758
        %1760 = vmatprep.subr.mxu0 0.0
        %v1761 = vand.u32 %v1577, 4294901760
        %v1762 = vsub.f32 %v1577, %v1761
        %1763 = vmatpush1.msra.mxu0 %v1762
        %1764 = vmatprep.subr.mxu0 0.0
        %1765 = vmatpush1.msra.mxu0 0.0
        %1766 = vmatprep.subr.mxu0 0.0
        %1767 = vmatpush1.msra.mxu0 0.0
        %1768 = vmatprep.subr.mxu0 0.0
        %1769 = vmatpush1.msra.mxu0 0.0
        %1770 = vmatprep.subr.mxu0 0.0
        %1771 = vmatpush1.msra.mxu0 0.0
        %1772 = vmatprep.subr.mxu0 0.0
        %1773 = vmatpush1.msra.mxu0 0.0
        %1774 = vmatprep.subr.mxu0 0.0
        %1775 = vmatpush1.msra.mxu0 0.0
        %1776 = vmatprep.subr.mxu0 0.0
        %1777 = vmatpush1.msra.mxu0 0.0
        %1778 = vmatprep.subr.mxu0 0.0
        %1779 = vmatpush1.msra.mxu0 0.0
        %1780 = vmatprep.subr.mxu0 0.0
        %1781 = vmatpush1.msra.mxu0 0.0
        %1782 = vmatprep.subr.mxu0 0.0
        %1783 = vmatpush1.msra.mxu0 0.0
        %1784 = vmatprep.subr.mxu0 0.0
        %1785 = vmatpush1.msra.mxu0 0.0
        %1786 = vmatprep.subr.mxu0 0.0
        %1787 = vmatpush1.msra.mxu0 0.0
        %1788 = vmatprep.subr.mxu0 0.0
        %1789 = vmatpush1.msra.mxu0 0.0
        %1790 = vmatprep.subr.mxu0 0.0
        %1791 = vmatpush1.msra.mxu0 0.0
        %1792 = vmatprep.subr.mxu0 0.0
        %1793 = vmatpush1.msra.mxu0 0.0
        %1794 = vmatprep.subr.mxu0 0.0
        %1795 = vmatpush1.msra.mxu0 0.0
        %1796 = vmatprep.subr.mxu0 0.0
        %1797 = vmatpush1.msra.mxu0 0.0
        %1798 = vmatprep.subr.mxu0 0.0
        %1799 = vmatpush1.msra.mxu0 0.0
        %1800 = vmatprep.subr.mxu0 0.0
        %1801 = vmatpush1.msra.mxu0 0.0
        %1802 = vmatprep.subr.mxu0 0.0
        %1803 = vmatpush1.msra.mxu0 0.0
        %1804 = vmatprep.subr.mxu0 0.0
        %1805 = vmatpush1.msra.mxu0 0.0
        %1806 = vmatprep.subr.mxu0 0.0
        %1807 = vmatpush1.msra.mxu0 0.0
        %1808 = vmatprep.subr.mxu0 0.0
        %1809 = vmatpush1.msra.mxu0 0.0
        %1810 = vmatprep.subr.mxu0 0.0
        %1811 = vmatpush1.msra.mxu0 0.0
        %1812 = vmatprep.subr.mxu0 0.0
        %1813 = vmatpush1.msra.mxu0 0.0
        %1814 = vmatprep.subr.mxu0 0.0
        %1815 = vmatpush1.msra.mxu0 0.0
        %1816 = vmatprep.subr.mxu0 0.0
        %1817 = vmatpush1.msra.mxu0 0.0
        %1818 = vmatprep.subr.mxu0 0.0
        %1819 = vmatpush1.msra.mxu0 0.0
        %1820 = vmatprep.mubr.f32.mxu0 0.0
        %v1821 = vand.u32 %v152, 4294901760
        %v1822 = vsub.f32 %v152, %v1821
        %1823 = vmatmul.mubr.f32.gmra.mrb[0].mxu0 %v1822
        %v1824 = vpop.f32.mrb[0].mxu0
        %v1825 = vadd.f32 %v1745, %v1824
        %v1826 = vpop.f32.mrb[0].mxu0
        %1827 = vdwg.mxu0
        %1828 = vmatprep.subr.mxu0 0.0
        %v1829 = vand.u32 %v1574, 4294901760
        %1830 = vmatpush1.msra.mxu0 %v1829
        %1831 = vmatprep.subr.mxu0 0.0
        %v1832 = vand.u32 %v1575, 4294901760
        %1833 = vmatpush1.msra.mxu0 %v1832
        %1834 = vmatprep.subr.mxu0 0.0
        %v1835 = vand.u32 %v1576, 4294901760
        %1836 = vmatpush1.msra.mxu0 %v1835
        %1837 = vmatprep.subr.mxu0 0.0
        %v1838 = vand.u32 %v1577, 4294901760
        %1839 = vmatpush1.msra.mxu0 %v1838
        %1840 = vmatprep.subr.mxu0 0.0
        %1841 = vmatpush1.msra.mxu0 0.0
        %1842 = vmatprep.subr.mxu0 0.0
        %1843 = vmatpush1.msra.mxu0 0.0
        %1844 = vmatprep.subr.mxu0 0.0
        %1845 = vmatpush1.msra.mxu0 0.0
        %1846 = vmatprep.subr.mxu0 0.0
        %1847 = vmatpush1.msra.mxu0 0.0
        %1848 = vmatprep.subr.mxu0 0.0
        %1849 = vmatpush1.msra.mxu0 0.0
        %1850 = vmatprep.subr.mxu0 0.0
        %1851 = vmatpush1.msra.mxu0 0.0
        %1852 = vmatprep.subr.mxu0 0.0
        %1853 = vmatpush1.msra.mxu0 0.0
        %1854 = vmatprep.subr.mxu0 0.0
        %1855 = vmatpush1.msra.mxu0 0.0
        %1856 = vmatprep.subr.mxu0 0.0
        %1857 = vmatpush1.msra.mxu0 0.0
        %1858 = vmatprep.subr.mxu0 0.0
        %1859 = vmatpush1.msra.mxu0 0.0
        %1860 = vmatprep.subr.mxu0 0.0
        %1861 = vmatpush1.msra.mxu0 0.0
        %1862 = vmatprep.subr.mxu0 0.0
        %1863 = vmatpush1.msra.mxu0 0.0
        %1864 = vmatprep.subr.mxu0 0.0
        %1865 = vmatpush1.msra.mxu0 0.0
        %1866 = vmatprep.subr.mxu0 0.0
        %1867 = vmatpush1.msra.mxu0 0.0
        %1868 = vmatprep.subr.mxu0 0.0
        %1869 = vmatpush1.msra.mxu0 0.0
        %1870 = vmatprep.subr.mxu0 0.0
        %1871 = vmatpush1.msra.mxu0 0.0
        %1872 = vmatprep.subr.mxu0 0.0
        %1873 = vmatpush1.msra.mxu0 0.0
        %1874 = vmatprep.subr.mxu0 0.0
        %1875 = vmatpush1.msra.mxu0 0.0
        %1876 = vmatprep.subr.mxu0 0.0
        %1877 = vmatpush1.msra.mxu0 0.0
        %1878 = vmatprep.subr.mxu0 0.0
        %1879 = vmatpush1.msra.mxu0 0.0
        %1880 = vmatprep.subr.mxu0 0.0
        %1881 = vmatpush1.msra.mxu0 0.0
        %1882 = vmatprep.subr.mxu0 0.0
        %1883 = vmatpush1.msra.mxu0 0.0
        %1884 = vmatprep.subr.mxu0 0.0
        %1885 = vmatpush1.msra.mxu0 0.0
        %1886 = vmatprep.subr.mxu0 0.0
        %1887 = vmatpush1.msra.mxu0 0.0
        %1888 = vmatprep.subr.mxu0 0.0
        %1889 = vmatpush1.msra.mxu0 0.0
        %1890 = vmatprep.subr.mxu0 0.0
        %1891 = vmatpush1.msra.mxu0 0.0
        %1892 = vmatprep.subr.mxu0 0.0
        %1893 = vmatpush1.msra.mxu0 0.0
        %1894 = vmatprep.subr.mxu0 0.0
        %1895 = vmatpush1.msra.mxu0 0.0
        %1896 = vmatprep.mubr.f32.mxu0 0.0
        %v1897 = vand.u32 %v152, 4294901760
        %v1898 = vsub.f32 %v152, %v1897
        %v1899 = vand.u32 %v1898, 4294901760
        %1900 = vmatmul.mubr.f32.gmra.mrb[0].mxu0 %v1899
        %v1901 = vpop.f32.mrb[0].mxu0
        %v1902 = vadd.f32 %v1825, %v1901
        %v1903 = vpop.f32.mrb[0].mxu0
        %1904 = vdwg.mxu0
        %1905 = vmatprep.subr.mxu0 0.0
        %v1906 = vand.u32 %v1574, 4294901760
        %v1907 = vsub.f32 %v1574, %v1906
        %v1908 = vand.u32 %v1907, 4294901760
        %1909 = vmatpush1.msra.mxu0 %v1908
        %1910 = vmatprep.subr.mxu0 0.0
        %v1911 = vand.u32 %v1575, 4294901760
        %v1912 = vsub.f32 %v1575, %v1911
        %v1913 = vand.u32 %v1912, 4294901760
        %1914 = vmatpush1.msra.mxu0 %v1913
        %1915 = vmatprep.subr.mxu0 0.0
        %v1916 = vand.u32 %v1576, 4294901760
        %v1917 = vsub.f32 %v1576, %v1916
        %v1918 = vand.u32 %v1917, 4294901760
        %1919 = vmatpush1.msra.mxu0 %v1918
        %1920 = vmatprep.subr.mxu0 0.0
        %v1921 = vand.u32 %v1577, 4294901760
        %v1922 = vsub.f32 %v1577, %v1921
        %v1923 = vand.u32 %v1922, 4294901760
        %1924 = vmatpush1.msra.mxu0 %v1923
        %1925 = vmatprep.subr.mxu0 0.0
        %1926 = vmatpush1.msra.mxu0 0.0
        %1927 = vmatprep.subr.mxu0 0.0
        %1928 = vmatpush1.msra.mxu0 0.0
        %1929 = vmatprep.subr.mxu0 0.0
        %1930 = vmatpush1.msra.mxu0 0.0
        %1931 = vmatprep.subr.mxu0 0.0
        %1932 = vmatpush1.msra.mxu0 0.0
        %1933 = vmatprep.subr.mxu0 0.0
        %1934 = vmatpush1.msra.mxu0 0.0
        %1935 = vmatprep.subr.mxu0 0.0
        %1936 = vmatpush1.msra.mxu0 0.0
        %1937 = vmatprep.subr.mxu0 0.0
        %1938 = vmatpush1.msra.mxu0 0.0
        %1939 = vmatprep.subr.mxu0 0.0
        %1940 = vmatpush1.msra.mxu0 0.0
        %1941 = vmatprep.subr.mxu0 0.0
        %1942 = vmatpush1.msra.mxu0 0.0
        %1943 = vmatprep.subr.mxu0 0.0
        %1944 = vmatpush1.msra.mxu0 0.0
        %1945 = vmatprep.subr.mxu0 0.0
        %1946 = vmatpush1.msra.mxu0 0.0
        %1947 = vmatprep.subr.mxu0 0.0
        %1948 = vmatpush1.msra.mxu0 0.0
        %1949 = vmatprep.subr.mxu0 0.0
        %1950 = vmatpush1.msra.mxu0 0.0
        %1951 = vmatprep.subr.mxu0 0.0
        %1952 = vmatpush1.msra.mxu0 0.0
        %1953 = vmatprep.subr.mxu0 0.0
        %1954 = vmatpush1.msra.mxu0 0.0
        %1955 = vmatprep.subr.mxu0 0.0
        %1956 = vmatpush1.msra.mxu0 0.0
        %1957 = vmatprep.subr.mxu0 0.0
        %1958 = vmatpush1.msra.mxu0 0.0
        %1959 = vmatprep.subr.mxu0 0.0
        %1960 = vmatpush1.msra.mxu0 0.0
        %1961 = vmatprep.subr.mxu0 0.0
        %1962 = vmatpush1.msra.mxu0 0.0
        %1963 = vmatprep.subr.mxu0 0.0
        %1964 = vmatpush1.msra.mxu0 0.0
        %1965 = vmatprep.subr.mxu0 0.0
        %1966 = vmatpush1.msra.mxu0 0.0
        %1967 = vmatprep.subr.mxu0 0.0
        %1968 = vmatpush1.msra.mxu0 0.0
        %1969 = vmatprep.subr.mxu0 0.0
        %1970 = vmatpush1.msra.mxu0 0.0
        %1971 = vmatprep.subr.mxu0 0.0
        %1972 = vmatpush1.msra.mxu0 0.0
        %1973 = vmatprep.subr.mxu0 0.0
        %1974 = vmatpush1.msra.mxu0 0.0
        %1975 = vmatprep.subr.mxu0 0.0
        %1976 = vmatpush1.msra.mxu0 0.0
        %1977 = vmatprep.subr.mxu0 0.0
        %1978 = vmatpush1.msra.mxu0 0.0
        %1979 = vmatprep.subr.mxu0 0.0
        %1980 = vmatpush1.msra.mxu0 0.0
        %1981 = vmatprep.mubr.f32.mxu0 0.0
        %v1982 = vand.u32 %v152, 4294901760
        %1983 = vmatmul.mubr.f32.gmra.mrb[0].mxu0 %v1982
        %v1984 = vpop.f32.mrb[0].mxu0
        %v1985 = vadd.f32 %v1902, %v1984
        %v1986 = vpop.f32.mrb[0].mxu0
        %1987 = vdwg.mxu0
        %1988 = vmatprep.subr.mxu0 0.0
        %v1989 = vand.u32 %v1574, 4294901760
        %1990 = vmatpush1.msra.mxu0 %v1989
        %1991 = vmatprep.subr.mxu0 0.0
        %v1992 = vand.u32 %v1575, 4294901760
        %1993 = vmatpush1.msra.mxu0 %v1992
        %1994 = vmatprep.subr.mxu0 0.0
        %v1995 = vand.u32 %v1576, 4294901760
        %1996 = vmatpush1.msra.mxu0 %v1995
        %1997 = vmatprep.subr.mxu0 0.0
        %v1998 = vand.u32 %v1577, 4294901760
        %1999 = vmatpush1.msra.mxu0 %v1998
        %2000 = vmatprep.subr.mxu0 0.0
        %2001 = vmatpush1.msra.mxu0 0.0
        %2002 = vmatprep.subr.mxu0 0.0
        %2003 = vmatpush1.msra.mxu0 0.0
        %2004 = vmatprep.subr.mxu0 0.0
        %2005 = vmatpush1.msra.mxu0 0.0
        %2006 = vmatprep.subr.mxu0 0.0
        %2007 = vmatpush1.msra.mxu0 0.0
        %2008 = vmatprep.subr.mxu0 0.0
        %2009 = vmatpush1.msra.mxu0 0.0
        %2010 = vmatprep.subr.mxu0 0.0
        %2011 = vmatpush1.msra.mxu0 0.0
        %2012 = vmatprep.subr.mxu0 0.0
        %2013 = vmatpush1.msra.mxu0 0.0
        %2014 = vmatprep.subr.mxu0 0.0
        %2015 = vmatpush1.msra.mxu0 0.0
        %2016 = vmatprep.subr.mxu0 0.0
        %2017 = vmatpush1.msra.mxu0 0.0
        %2018 = vmatprep.subr.mxu0 0.0
        %2019 = vmatpush1.msra.mxu0 0.0
        %2020 = vmatprep.subr.mxu0 0.0
        %2021 = vmatpush1.msra.mxu0 0.0
        %2022 = vmatprep.subr.mxu0 0.0
        %2023 = vmatpush1.msra.mxu0 0.0
        %2024 = vmatprep.subr.mxu0 0.0
        %2025 = vmatpush1.msra.mxu0 0.0
        %2026 = vmatprep.subr.mxu0 0.0
        %2027 = vmatpush1.msra.mxu0 0.0
        %2028 = vmatprep.subr.mxu0 0.0
        %2029 = vmatpush1.msra.mxu0 0.0
        %2030 = vmatprep.subr.mxu0 0.0
        %2031 = vmatpush1.msra.mxu0 0.0
        %2032 = vmatprep.subr.mxu0 0.0
        %2033 = vmatpush1.msra.mxu0 0.0
        %2034 = vmatprep.subr.mxu0 0.0
        %2035 = vmatpush1.msra.mxu0 0.0
        %2036 = vmatprep.subr.mxu0 0.0
        %2037 = vmatpush1.msra.mxu0 0.0
        %2038 = vmatprep.subr.mxu0 0.0
        %2039 = vmatpush1.msra.mxu0 0.0
        %2040 = vmatprep.subr.mxu0 0.0
        %2041 = vmatpush1.msra.mxu0 0.0
        %2042 = vmatprep.subr.mxu0 0.0
        %2043 = vmatpush1.msra.mxu0 0.0
        %2044 = vmatprep.subr.mxu0 0.0
        %2045 = vmatpush1.msra.mxu0 0.0
        %2046 = vmatprep.subr.mxu0 0.0
        %2047 = vmatpush1.msra.mxu0 0.0
        %2048 = vmatprep.subr.mxu0 0.0
        %2049 = vmatpush1.msra.mxu0 0.0
        %2050 = vmatprep.subr.mxu0 0.0
        %2051 = vmatpush1.msra.mxu0 0.0
        %2052 = vmatprep.subr.mxu0 0.0
        %2053 = vmatpush1.msra.mxu0 0.0
        %2054 = vmatprep.subr.mxu0 0.0
        %2055 = vmatpush1.msra.mxu0 0.0
        %2056 = vmatprep.mubr.f32.mxu0 0.0
        %v2057 = vand.u32 %v152, 4294901760
        %2058 = vmatmul.mubr.f32.gmra.mrb[0].mxu0 %v2057
        %v2059 = vpop.f32.mrb[0].mxu0
        %v2060 = vadd.f32 %v1985, %v2059
        %v2061 = vpop.f32.mrb[0].mxu0
        %2062 = vdwg.mxu0
        %v2063 = vld [vmem:[%s1 + $0x1a0] sm:$0xff]
        %v2064 = vsub.f32 0.0, %v2060
        %2066 = vrot.lane.b32.xlu0 %v2064, 64
        %v2067 = vpop.permute.xlu0 %2066
        %2070 = vrot.lane.b32.xlu0 %v2060, 64
        %v2071 = vpop.permute.xlu0 %2070
        %v2073 = vsel %vm673, %v2067, %v2071
        %vm2074 = vcmask 130048
        %v2076 = vsel %vm2074, %v2063, 0
        %2078 = vmatprep.subr.mxu0 0.0
        %v2079 = vand.u32 %v2060, 4294901760
        %2080 = vmatpush1.msra.mxu0 %v2079
        %2081 = vmatprep.subr.mxu0 0.0
        %v2082 = vand.u32 %v2073, 4294901760
        %2083 = vmatpush1.msra.mxu0 %v2082
        %2084 = vmatprep.subr.mxu0 0.0
        %2085 = vmatpush1.msra.mxu0 0.0
        %2086 = vmatprep.subr.mxu0 0.0
        %2087 = vmatpush1.msra.mxu0 0.0
        %2088 = vmatprep.subr.mxu0 0.0
        %2089 = vmatpush1.msra.mxu0 0.0
        %2090 = vmatprep.subr.mxu0 0.0
        %2091 = vmatpush1.msra.mxu0 0.0
        %2092 = vmatprep.subr.mxu0 0.0
        %2093 = vmatpush1.msra.mxu0 0.0
        %2094 = vmatprep.subr.mxu0 0.0
        %2095 = vmatpush1.msra.mxu0 0.0
        %2096 = vmatprep.subr.mxu0 0.0
        %2097 = vmatpush1.msra.mxu0 0.0
        %2098 = vmatprep.subr.mxu0 0.0
        %2099 = vmatpush1.msra.mxu0 0.0
        %2100 = vmatprep.subr.mxu0 0.0
        %2101 = vmatpush1.msra.mxu0 0.0
        %2102 = vmatprep.subr.mxu0 0.0
        %2103 = vmatpush1.msra.mxu0 0.0
        %2104 = vmatprep.subr.mxu0 0.0
        %2105 = vmatpush1.msra.mxu0 0.0
        %2106 = vmatprep.subr.mxu0 0.0
        %2107 = vmatpush1.msra.mxu0 0.0
        %2108 = vmatprep.subr.mxu0 0.0
        %2109 = vmatpush1.msra.mxu0 0.0
        %2110 = vmatprep.subr.mxu0 0.0
        %2111 = vmatpush1.msra.mxu0 0.0
        %2112 = vmatprep.subr.mxu0 0.0
        %2113 = vmatpush1.msra.mxu0 0.0
        %2114 = vmatprep.subr.mxu0 0.0
        %2115 = vmatpush1.msra.mxu0 0.0
        %2116 = vmatprep.subr.mxu0 0.0
        %2117 = vmatpush1.msra.mxu0 0.0
        %2118 = vmatprep.subr.mxu0 0.0
        %2119 = vmatpush1.msra.mxu0 0.0
        %2120 = vmatprep.subr.mxu0 0.0
        %2121 = vmatpush1.msra.mxu0 0.0
        %2122 = vmatprep.subr.mxu0 0.0
        %2123 = vmatpush1.msra.mxu0 0.0
        %2124 = vmatprep.subr.mxu0 0.0
        %2125 = vmatpush1.msra.mxu0 0.0
        %2126 = vmatprep.subr.mxu0 0.0
        %2127 = vmatpush1.msra.mxu0 0.0
        %2128 = vmatprep.subr.mxu0 0.0
        %2129 = vmatpush1.msra.mxu0 0.0
        %2130 = vmatprep.subr.mxu0 0.0
        %2131 = vmatpush1.msra.mxu0 0.0
        %2132 = vmatprep.subr.mxu0 0.0
        %2133 = vmatpush1.msra.mxu0 0.0
        %2134 = vmatprep.subr.mxu0 0.0
        %2135 = vmatpush1.msra.mxu0 0.0
        %2136 = vmatprep.subr.mxu0 0.0
        %2137 = vmatpush1.msra.mxu0 0.0
        %2138 = vmatprep.subr.mxu0 0.0
        %2139 = vmatpush1.msra.mxu0 0.0
        %2140 = vmatprep.subr.mxu0 0.0
        %2141 = vmatpush1.msra.mxu0 0.0
        %2142 = vmatprep.subr.mxu0 0.0
        %2143 = vmatpush1.msra.mxu0 0.0
        %2144 = vmatprep.mubr.f32.mxu0 0.0
        %v2145 = vand.u32 %v2076, 4294901760
        %v2146 = vsub.f32 %v2076, %v2145
        %v2147 = vand.u32 %v2146, 4294901760
        %v2148 = vsub.f32 %v2146, %v2147
        %v2149 = vand.u32 %v2148, 4294901760
        %2150 = vmatmul.mubr.f32.gmra.mrb[0].mxu0 %v2149
        %v2151 = vpop.f32.mrb[0].mxu0
        %v2152 = vadd.f32 0.0, %v2151
        %v2153 = vpop.f32.mrb[0].mxu0
        %2154 = vdwg.mxu0
        %2155 = vmatprep.subr.mxu0 0.0
        %v2156 = vand.u32 %v2060, 4294901760
        %v2157 = vsub.f32 %v2060, %v2156
        %v2158 = vand.u32 %v2157, 4294901760
        %v2159 = vsub.f32 %v2157, %v2158
        %v2160 = vand.u32 %v2159, 4294901760
        %2161 = vmatpush1.msra.mxu0 %v2160
        %2162 = vmatprep.subr.mxu0 0.0
        %v2163 = vand.u32 %v2073, 4294901760
        %v2164 = vsub.f32 %v2073, %v2163
        %v2165 = vand.u32 %v2164, 4294901760
        %v2166 = vsub.f32 %v2164, %v2165
        %v2167 = vand.u32 %v2166, 4294901760
        %2168 = vmatpush1.msra.mxu0 %v2167
        %2169 = vmatprep.subr.mxu0 0.0
        %2170 = vmatpush1.msra.mxu0 0.0
        %2171 = vmatprep.subr.mxu0 0.0
        %2172 = vmatpush1.msra.mxu0 0.0
        %2173 = vmatprep.subr.mxu0 0.0
        %2174 = vmatpush1.msra.mxu0 0.0
        %2175 = vmatprep.subr.mxu0 0.0
        %2176 = vmatpush1.msra.mxu0 0.0
        %2177 = vmatprep.subr.mxu0 0.0
        %2178 = vmatpush1.msra.mxu0 0.0
        %2179 = vmatprep.subr.mxu0 0.0
        %2180 = vmatpush1.msra.mxu0 0.0
        %2181 = vmatprep.subr.mxu0 0.0
        %2182 = vmatpush1.msra.mxu0 0.0
        %2183 = vmatprep.subr.mxu0 0.0
        %2184 = vmatpush1.msra.mxu0 0.0
        %2185 = vmatprep.subr.mxu0 0.0
        %2186 = vmatpush1.msra.mxu0 0.0
        %2187 = vmatprep.subr.mxu0 0.0
        %2188 = vmatpush1.msra.mxu0 0.0
        %2189 = vmatprep.subr.mxu0 0.0
        %2190 = vmatpush1.msra.mxu0 0.0
        %2191 = vmatprep.subr.mxu0 0.0
        %2192 = vmatpush1.msra.mxu0 0.0
        %2193 = vmatprep.subr.mxu0 0.0
        %2194 = vmatpush1.msra.mxu0 0.0
        %2195 = vmatprep.subr.mxu0 0.0
        %2196 = vmatpush1.msra.mxu0 0.0
        %2197 = vmatprep.subr.mxu0 0.0
        %2198 = vmatpush1.msra.mxu0 0.0
        %2199 = vmatprep.subr.mxu0 0.0
        %2200 = vmatpush1.msra.mxu0 0.0
        %2201 = vmatprep.subr.mxu0 0.0
        %2202 = vmatpush1.msra.mxu0 0.0
        %2203 = vmatprep.subr.mxu0 0.0
        %2204 = vmatpush1.msra.mxu0 0.0
        %2205 = vmatprep.subr.mxu0 0.0
        %2206 = vmatpush1.msra.mxu0 0.0
        %2207 = vmatprep.subr.mxu0 0.0
        %2208 = vmatpush1.msra.mxu0 0.0
        %2209 = vmatprep.subr.mxu0 0.0
        %2210 = vmatpush1.msra.mxu0 0.0
        %2211 = vmatprep.subr.mxu0 0.0
        %2212 = vmatpush1.msra.mxu0 0.0
        %2213 = vmatprep.subr.mxu0 0.0
        %2214 = vmatpush1.msra.mxu0 0.0
        %2215 = vmatprep.subr.mxu0 0.0
        %2216 = vmatpush1.msra.mxu0 0.0
        %2217 = vmatprep.subr.mxu0 0.0
        %2218 = vmatpush1.msra.mxu0 0.0
        %2219 = vmatprep.subr.mxu0 0.0
        %2220 = vmatpush1.msra.mxu0 0.0
        %2221 = vmatprep.subr.mxu0 0.0
        %2222 = vmatpush1.msra.mxu0 0.0
        %2223 = vmatprep.subr.mxu0 0.0
        %2224 = vmatpush1.msra.mxu0 0.0
        %2225 = vmatprep.subr.mxu0 0.0
        %2226 = vmatpush1.msra.mxu0 0.0
        %2227 = vmatprep.subr.mxu0 0.0
        %2228 = vmatpush1.msra.mxu0 0.0
        %2229 = vmatprep.mubr.f32.mxu0 0.0
        %v2230 = vand.u32 %v2076, 4294901760
        %2231 = vmatmul.mubr.f32.gmra.mrb[0].mxu0 %v2230
        %v2232 = vpop.f32.mrb[0].mxu0
        %v2233 = vadd.f32 %v2152, %v2232
        %v2234 = vpop.f32.mrb[0].mxu0
        %2235 = vdwg.mxu0
        %2236 = vmatprep.subr.mxu0 0.0
        %v2237 = vand.u32 %v2060, 4294901760
        %v2238 = vsub.f32 %v2060, %v2237
        %2239 = vmatpush1.msra.mxu0 %v2238
        %2240 = vmatprep.subr.mxu0 0.0
        %v2241 = vand.u32 %v2073, 4294901760
        %v2242 = vsub.f32 %v2073, %v2241
        %2243 = vmatpush1.msra.mxu0 %v2242
        %2244 = vmatprep.subr.mxu0 0.0
        %2245 = vmatpush1.msra.mxu0 0.0
        %2246 = vmatprep.subr.mxu0 0.0
        %2247 = vmatpush1.msra.mxu0 0.0
        %2248 = vmatprep.subr.mxu0 0.0
        %2249 = vmatpush1.msra.mxu0 0.0
        %2250 = vmatprep.subr.mxu0 0.0
        %2251 = vmatpush1.msra.mxu0 0.0
        %2252 = vmatprep.subr.mxu0 0.0
        %2253 = vmatpush1.msra.mxu0 0.0
        %2254 = vmatprep.subr.mxu0 0.0
        %2255 = vmatpush1.msra.mxu0 0.0
        %2256 = vmatprep.subr.mxu0 0.0
        %2257 = vmatpush1.msra.mxu0 0.0
        %2258 = vmatprep.subr.mxu0 0.0
        %2259 = vmatpush1.msra.mxu0 0.0
        %2260 = vmatprep.subr.mxu0 0.0
        %2261 = vmatpush1.msra.mxu0 0.0
        %2262 = vmatprep.subr.mxu0 0.0
        %2263 = vmatpush1.msra.mxu0 0.0
        %2264 = vmatprep.subr.mxu0 0.0
        %2265 = vmatpush1.msra.mxu0 0.0
        %2266 = vmatprep.subr.mxu0 0.0
        %2267 = vmatpush1.msra.mxu0 0.0
        %2268 = vmatprep.subr.mxu0 0.0
        %2269 = vmatpush1.msra.mxu0 0.0
        %2270 = vmatprep.subr.mxu0 0.0
        %2271 = vmatpush1.msra.mxu0 0.0
        %2272 = vmatprep.subr.mxu0 0.0
        %2273 = vmatpush1.msra.mxu0 0.0
        %2274 = vmatprep.subr.mxu0 0.0
        %2275 = vmatpush1.msra.mxu0 0.0
        %2276 = vmatprep.subr.mxu0 0.0
        %2277 = vmatpush1.msra.mxu0 0.0
        %2278 = vmatprep.subr.mxu0 0.0
        %2279 = vmatpush1.msra.mxu0 0.0
        %2280 = vmatprep.subr.mxu0 0.0
        %2281 = vmatpush1.msra.mxu0 0.0
        %2282 = vmatprep.subr.mxu0 0.0
        %2283 = vmatpush1.msra.mxu0 0.0
        %2284 = vmatprep.subr.mxu0 0.0
        %2285 = vmatpush1.msra.mxu0 0.0
        %2286 = vmatprep.subr.mxu0 0.0
        %2287 = vmatpush1.msra.mxu0 0.0
        %2288 = vmatprep.subr.mxu0 0.0
        %2289 = vmatpush1.msra.mxu0 0.0
        %2290 = vmatprep.subr.mxu0 0.0
        %2291 = vmatpush1.msra.mxu0 0.0
        %2292 = vmatprep.subr.mxu0 0.0
        %2293 = vmatpush1.msra.mxu0 0.0
        %2294 = vmatprep.subr.mxu0 0.0
        %2295 = vmatpush1.msra.mxu0 0.0
        %2296 = vmatprep.subr.mxu0 0.0
        %2297 = vmatpush1.msra.mxu0 0.0
        %2298 = vmatprep.subr.mxu0 0.0
        %2299 = vmatpush1.msra.mxu0 0.0
        %2300 = vmatprep.subr.mxu0 0.0
        %2301 = vmatpush1.msra.mxu0 0.0
        %2302 = vmatprep.subr.mxu0 0.0
        %2303 = vmatpush1.msra.mxu0 0.0
        %2304 = vmatprep.mubr.f32.mxu0 0.0
        %v2305 = vand.u32 %v2076, 4294901760
        %v2306 = vsub.f32 %v2076, %v2305
        %2307 = vmatmul.mubr.f32.gmra.mrb[0].mxu0 %v2306
        %v2308 = vpop.f32.mrb[0].mxu0
        %v2309 = vadd.f32 %v2233, %v2308
        %v2310 = vpop.f32.mrb[0].mxu0
        %2311 = vdwg.mxu0
        %2312 = vmatprep.subr.mxu0 0.0
        %v2313 = vand.u32 %v2060, 4294901760
        %2314 = vmatpush1.msra.mxu0 %v2313
        %2315 = vmatprep.subr.mxu0 0.0
        %v2316 = vand.u32 %v2073, 4294901760
        %2317 = vmatpush1.msra.mxu0 %v2316
        %2318 = vmatprep.subr.mxu0 0.0
        %2319 = vmatpush1.msra.mxu0 0.0
        %2320 = vmatprep.subr.mxu0 0.0
        %2321 = vmatpush1.msra.mxu0 0.0
        %2322 = vmatprep.subr.mxu0 0.0
        %2323 = vmatpush1.msra.mxu0 0.0
        %2324 = vmatprep.subr.mxu0 0.0
        %2325 = vmatpush1.msra.mxu0 0.0
        %2326 = vmatprep.subr.mxu0 0.0
        %2327 = vmatpush1.msra.mxu0 0.0
        %2328 = vmatprep.subr.mxu0 0.0
        %2329 = vmatpush1.msra.mxu0 0.0
        %2330 = vmatprep.subr.mxu0 0.0
        %2331 = vmatpush1.msra.mxu0 0.0
        %2332 = vmatprep.subr.mxu0 0.0
        %2333 = vmatpush1.msra.mxu0 0.0
        %2334 = vmatprep.subr.mxu0 0.0
        %2335 = vmatpush1.msra.mxu0 0.0
        %2336 = vmatprep.subr.mxu0 0.0
        %2337 = vmatpush1.msra.mxu0 0.0
        %2338 = vmatprep.subr.mxu0 0.0
        %2339 = vmatpush1.msra.mxu0 0.0
        %2340 = vmatprep.subr.mxu0 0.0
        %2341 = vmatpush1.msra.mxu0 0.0
        %2342 = vmatprep.subr.mxu0 0.0
        %2343 = vmatpush1.msra.mxu0 0.0
        %2344 = vmatprep.subr.mxu0 0.0
        %2345 = vmatpush1.msra.mxu0 0.0
        %2346 = vmatprep.subr.mxu0 0.0
        %2347 = vmatpush1.msra.mxu0 0.0
        %2348 = vmatprep.subr.mxu0 0.0
        %2349 = vmatpush1.msra.mxu0 0.0
        %2350 = vmatprep.subr.mxu0 0.0
        %2351 = vmatpush1.msra.mxu0 0.0
        %2352 = vmatprep.subr.mxu0 0.0
        %2353 = vmatpush1.msra.mxu0 0.0
        %2354 = vmatprep.subr.mxu0 0.0
        %2355 = vmatpush1.msra.mxu0 0.0
        %2356 = vmatprep.subr.mxu0 0.0
        %2357 = vmatpush1.msra.mxu0 0.0
        %2358 = vmatprep.subr.mxu0 0.0
        %2359 = vmatpush1.msra.mxu0 0.0
        %2360 = vmatprep.subr.mxu0 0.0
        %2361 = vmatpush1.msra.mxu0 0.0
        %2362 = vmatprep.subr.mxu0 0.0
        %2363 = vmatpush1.msra.mxu0 0.0
        %2364 = vmatprep.subr.mxu0 0.0
        %2365 = vmatpush1.msra.mxu0 0.0
        %2366 = vmatprep.subr.mxu0 0.0
        %2367 = vmatpush1.msra.mxu0 0.0
        %2368 = vmatprep.subr.mxu0 0.0
        %2369 = vmatpush1.msra.mxu0 0.0
        %2370 = vmatprep.subr.mxu0 0.0
        %2371 = vmatpush1.msra.mxu0 0.0
        %2372 = vmatprep.subr.mxu0 0.0
        %2373 = vmatpush1.msra.mxu0 0.0
        %2374 = vmatprep.subr.mxu0 0.0
        %2375 = vmatpush1.msra.mxu0 0.0
        %2376 = vmatprep.subr.mxu0 0.0
        %2377 = vmatpush1.msra.mxu0 0.0
        %2378 = vmatprep.mubr.f32.mxu0 0.0
        %v2379 = vand.u32 %v2076, 4294901760
        %v2380 = vsub.f32 %v2076, %v2379
        %v2381 = vand.u32 %v2380, 4294901760
        %2382 = vmatmul.mubr.f32.gmra.mrb[0].mxu0 %v2381
        %v2383 = vpop.f32.mrb[0].mxu0
        %v2384 = vadd.f32 %v2309, %v2383
        %v2385 = vpop.f32.mrb[0].mxu0
        %2386 = vdwg.mxu0
        %2387 = vmatprep.subr.mxu0 0.0
        %v2388 = vand.u32 %v2060, 4294901760
        %v2389 = vsub.f32 %v2060, %v2388
        %v2390 = vand.u32 %v2389, 4294901760
        %2391 = vmatpush1.msra.mxu0 %v2390
        %2392 = vmatprep.subr.mxu0 0.0
        %v2393 = vand.u32 %v2073, 4294901760
        %v2394 = vsub.f32 %v2073, %v2393
        %v2395 = vand.u32 %v2394, 4294901760
        %2396 = vmatpush1.msra.mxu0 %v2395
        %2397 = vmatprep.subr.mxu0 0.0
        %2398 = vmatpush1.msra.mxu0 0.0
        %2399 = vmatprep.subr.mxu0 0.0
        %2400 = vmatpush1.msra.mxu0 0.0
        %2401 = vmatprep.subr.mxu0 0.0
        %2402 = vmatpush1.msra.mxu0 0.0
        %2403 = vmatprep.subr.mxu0 0.0
        %2404 = vmatpush1.msra.mxu0 0.0
        %2405 = vmatprep.subr.mxu0 0.0
        %2406 = vmatpush1.msra.mxu0 0.0
        %2407 = vmatprep.subr.mxu0 0.0
        %2408 = vmatpush1.msra.mxu0 0.0
        %2409 = vmatprep.subr.mxu0 0.0
        %2410 = vmatpush1.msra.mxu0 0.0
        %2411 = vmatprep.subr.mxu0 0.0
        %2412 = vmatpush1.msra.mxu0 0.0
        %2413 = vmatprep.subr.mxu0 0.0
        %2414 = vmatpush1.msra.mxu0 0.0
        %2415 = vmatprep.subr.mxu0 0.0
        %2416 = vmatpush1.msra.mxu0 0.0
        %2417 = vmatprep.subr.mxu0 0.0
        %2418 = vmatpush1.msra.mxu0 0.0
        %2419 = vmatprep.subr.mxu0 0.0
        %2420 = vmatpush1.msra.mxu0 0.0
        %2421 = vmatprep.subr.mxu0 0.0
        %2422 = vmatpush1.msra.mxu0 0.0
        %2423 = vmatprep.subr.mxu0 0.0
        %2424 = vmatpush1.msra.mxu0 0.0
        %2425 = vmatprep.subr.mxu0 0.0
        %2426 = vmatpush1.msra.mxu0 0.0
        %2427 = vmatprep.subr.mxu0 0.0
        %2428 = vmatpush1.msra.mxu0 0.0
        %2429 = vmatprep.subr.mxu0 0.0
        %2430 = vmatpush1.msra.mxu0 0.0
        %2431 = vmatprep.subr.mxu0 0.0
        %2432 = vmatpush1.msra.mxu0 0.0
        %2433 = vmatprep.subr.mxu0 0.0
        %2434 = vmatpush1.msra.mxu0 0.0
        %2435 = vmatprep.subr.mxu0 0.0
        %2436 = vmatpush1.msra.mxu0 0.0
        %2437 = vmatprep.subr.mxu0 0.0
        %2438 = vmatpush1.msra.mxu0 0.0
        %2439 = vmatprep.subr.mxu0 0.0
        %2440 = vmatpush1.msra.mxu0 0.0
        %2441 = vmatprep.subr.mxu0 0.0
        %2442 = vmatpush1.msra.mxu0 0.0
        %2443 = vmatprep.subr.mxu0 0.0
        %2444 = vmatpush1.msra.mxu0 0.0
        %2445 = vmatprep.subr.mxu0 0.0
        %2446 = vmatpush1.msra.mxu0 0.0
        %2447 = vmatprep.subr.mxu0 0.0
        %2448 = vmatpush1.msra.mxu0 0.0
        %2449 = vmatprep.subr.mxu0 0.0
        %2450 = vmatpush1.msra.mxu0 0.0
        %2451 = vmatprep.subr.mxu0 0.0
        %2452 = vmatpush1.msra.mxu0 0.0
        %2453 = vmatprep.subr.mxu0 0.0
        %2454 = vmatpush1.msra.mxu0 0.0
        %2455 = vmatprep.subr.mxu0 0.0
        %2456 = vmatpush1.msra.mxu0 0.0
        %2457 = vmatprep.mubr.f32.mxu0 0.0
        %v2458 = vand.u32 %v2076, 4294901760
        %2459 = vmatmul.mubr.f32.gmra.mrb[0].mxu0 %v2458
        %v2460 = vpop.f32.mrb[0].mxu0
        %v2461 = vadd.f32 %v2384, %v2460
        %v2462 = vpop.f32.mrb[0].mxu0
        %2463 = vdwg.mxu0
        %2464 = vmatprep.subr.mxu0 0.0
        %v2465 = vand.u32 %v2060, 4294901760
        %2466 = vmatpush1.msra.mxu0 %v2465
        %2467 = vmatprep.subr.mxu0 0.0
        %v2468 = vand.u32 %v2073, 4294901760
        %2469 = vmatpush1.msra.mxu0 %v2468
        %2470 = vmatprep.subr.mxu0 0.0
        %2471 = vmatpush1.msra.mxu0 0.0
        %2472 = vmatprep.subr.mxu0 0.0
        %2473 = vmatpush1.msra.mxu0 0.0
        %2474 = vmatprep.subr.mxu0 0.0
        %2475 = vmatpush1.msra.mxu0 0.0
        %2476 = vmatprep.subr.mxu0 0.0
        %2477 = vmatpush1.msra.mxu0 0.0
        %2478 = vmatprep.subr.mxu0 0.0
        %2479 = vmatpush1.msra.mxu0 0.0
        %2480 = vmatprep.subr.mxu0 0.0
        %2481 = vmatpush1.msra.mxu0 0.0
        %2482 = vmatprep.subr.mxu0 0.0
        %2483 = vmatpush1.msra.mxu0 0.0
        %2484 = vmatprep.subr.mxu0 0.0
        %2485 = vmatpush1.msra.mxu0 0.0
        %2486 = vmatprep.subr.mxu0 0.0
        %2487 = vmatpush1.msra.mxu0 0.0
        %2488 = vmatprep.subr.mxu0 0.0
        %2489 = vmatpush1.msra.mxu0 0.0
        %2490 = vmatprep.subr.mxu0 0.0
        %2491 = vmatpush1.msra.mxu0 0.0
        %2492 = vmatprep.subr.mxu0 0.0
        %2493 = vmatpush1.msra.mxu0 0.0
        %2494 = vmatprep.subr.mxu0 0.0
        %2495 = vmatpush1.msra.mxu0 0.0
        %2496 = vmatprep.subr.mxu0 0.0
        %2497 = vmatpush1.msra.mxu0 0.0
        %2498 = vmatprep.subr.mxu0 0.0
        %2499 = vmatpush1.msra.mxu0 0.0
        %2500 = vmatprep.subr.mxu0 0.0
        %2501 = vmatpush1.msra.mxu0 0.0
        %2502 = vmatprep.subr.mxu0 0.0
        %2503 = vmatpush1.msra.mxu0 0.0
        %2504 = vmatprep.subr.mxu0 0.0
        %2505 = vmatpush1.msra.mxu0 0.0
        %2506 = vmatprep.subr.mxu0 0.0
        %2507 = vmatpush1.msra.mxu0 0.0
        %2508 = vmatprep.subr.mxu0 0.0
        %2509 = vmatpush1.msra.mxu0 0.0
        %2510 = vmatprep.subr.mxu0 0.0
        %2511 = vmatpush1.msra.mxu0 0.0
        %2512 = vmatprep.subr.mxu0 0.0
        %2513 = vmatpush1.msra.mxu0 0.0
        %2514 = vmatprep.subr.mxu0 0.0
        %2515 = vmatpush1.msra.mxu0 0.0
        %2516 = vmatprep.subr.mxu0 0.0
        %2517 = vmatpush1.msra.mxu0 0.0
        %2518 = vmatprep.subr.mxu0 0.0
        %2519 = vmatpush1.msra.mxu0 0.0
        %2520 = vmatprep.subr.mxu0 0.0
        %2521 = vmatpush1.msra.mxu0 0.0
        %2522 = vmatprep.subr.mxu0 0.0
        %2523 = vmatpush1.msra.mxu0 0.0
        %2524 = vmatprep.subr.mxu0 0.0
        %2525 = vmatpush1.msra.mxu0 0.0
        %2526 = vmatprep.subr.mxu0 0.0
        %2527 = vmatpush1.msra.mxu0 0.0
        %2528 = vmatprep.subr.mxu0 0.0
        %2529 = vmatpush1.msra.mxu0 0.0
        %2530 = vmatprep.mubr.f32.mxu0 0.0
        %v2531 = vand.u32 %v2076, 4294901760
        %2532 = vmatmul.mubr.f32.gmra.mrb[0].mxu0 %v2531
        %v2533 = vpop.f32.mrb[0].mxu0
        %v2534 = vadd.f32 %v2461, %v2533
        %v2535 = vpop.f32.mrb[0].mxu0
        %2536 = vdwg.mxu0
        %v2538 = vrot.slane %v2534, 6
        %v2540 = vsel %vm657, 0.0, %v2538
        %v2541 = vsel %vm657, %v2538, 0.0
        %v2544 = vrot.slane %v2540, 1
        %v2545 = vrot.slane %v2541, 1
        %v2546 = vsel %vm667, %v2544, %v2545
        %v2548 = vrot.slane %v2540, 2
        %v2549 = vrot.slane %v2541, 2
        %v2550 = vsel %vm665, %v2548, %v2549
        %v2552 = vrot.slane %v2540, 3
        %v2553 = vrot.slane %v2541, 3
        %v2554 = vsel %vm663, %v2552, %v2553
        %v2556 = vrot.slane %v2540, 4
        %v2557 = vrot.slane %v2541, 4
        %v2558 = vsel %vm661, %v2556, %v2557
        %v2560 = vld [vmem:[%s1 + $0x11b] sm:$0x1]
        %v2561 = vld [vmem:[%s1 + $0x1a8] sm:$0xff]
        %v2562 = vld [vmem:[%s1 + $0x1b0] sm:$0xff]
        %v2563 = vld [vmem:[%s1 + $0x1b8] sm:$0xff]
        %v2564 = vld [vmem:[%s1 + $0x1c0] sm:$0xff]
        %v2565 = vld [vmem:[%s1 + $0x1c8] sm:$0xff]
        %v2566 = vld [vmem:[%s1 + $0x1d0] sm:$0xff]
        %v2567 = vld [vmem:[%s1 + $0x1d8] sm:$0xff]
        %v2568 = vld [vmem:[%s1 + $0x1e0] sm:$0xff]
        %v2569 = vld [vmem:[%s1 + $0x1e8] sm:$0xff]
        %v2570 = vld [vmem:[%s1 + $0x1f0] sm:$0xff]
        %v2571 = vld [vmem:[%s1 + $0x1f8] sm:$0xff]
        %v2572 = vld [vmem:[%s1 + $0x200] sm:$0xff]
        %v2573 = vld [vmem:[%s1 + $0x208] sm:$0xff]
        %v2574 = vld [vmem:[%s1 + $0x210] sm:$0xff]
        %v2575 = vld [vmem:[%s1 + $0x218] sm:$0xff]
        %v2576 = vld [vmem:[%s1 + $0x220] sm:$0xff]
        %v2577 = vld [vmem:[%s1 + $0x228] sm:$0xff]
        %v2578 = vld [vmem:[%s1 + $0x230] sm:$0xff]
        %v2579 = vld [vmem:[%s1 + $0x238] sm:$0xff]
        %v2580 = vld [vmem:[%s1 + $0x240] sm:$0xff]
        %v2581 = vld [vmem:[%s1 + $0x248] sm:$0xff]
        %v2582 = vld [vmem:[%s1 + $0x250] sm:$0xff]
        %v2583 = vld [vmem:[%s1 + $0x258] sm:$0xff]
        %v2584 = vld [vmem:[%s1 + $0x260] sm:$0xff]
        %v2585 = vld [vmem:[%s1 + $0x268] sm:$0xff]
        %v2586 = vld [vmem:[%s1 + $0x270] sm:$0xff]
        %v2587 = vld [vmem:[%s1 + $0x278] sm:$0xff]
        %v2588 = vld [vmem:[%s1 + $0x280] sm:$0xff]
        %v2589 = vld [vmem:[%s1 + $0x288] sm:$0xff]
        %v2590 = vld [vmem:[%s1 + $0x290] sm:$0xff]
        %v2591 = vld [vmem:[%s1 + $0x298] sm:$0xff]
        %v2592 = vld [vmem:[%s1 + $0x2a0] sm:$0xff]
        %v2593 = vld [vmem:[%s1 + $0x2a8] sm:$0xff]
        %v2594 = vld [vmem:[%s1 + $0x2b0] sm:$0xff]
        %v2595 = vld [vmem:[%s1 + $0x2b8] sm:$0xff]
        %v2596 = vld [vmem:[%s1 + $0x2c0] sm:$0xff]
        %v2597 = vld [vmem:[%s1 + $0x2c8] sm:$0xff]
        %v2598 = vld [vmem:[%s1 + $0x2d0] sm:$0xff]
        %v2599 = vld [vmem:[%s1 + $0x2d8] sm:$0xff]
        %v2600 = vld [vmem:[%s1 + $0x2e0] sm:$0xff]
        %v2601 = vld [vmem:[%s1 + $0x2e8] sm:$0xff]
        %v2602 = vld [vmem:[%s1 + $0x2f0] sm:$0xff]
        %v2603 = vld [vmem:[%s1 + $0x2f8] sm:$0xff]
        %v2604 = vld [vmem:[%s1 + $0x300] sm:$0xff]
        %v2605 = vld [vmem:[%s1 + $0x308] sm:$0xff]
        %v2606 = vld [vmem:[%s1 + $0x310] sm:$0xff]
        %v2607 = vld [vmem:[%s1 + $0x318] sm:$0xff]
        %v2608 = vld [vmem:[%s1 + $0x320] sm:$0xff]
        %v2609 = vld [vmem:[%s1 + $0x328] sm:$0xff]
        %v2610 = vld [vmem:[%s1 + $0x330] sm:$0xff]
        %v2611 = vld [vmem:[%s1 + $0x338] sm:$0xff]
        %v2612 = vld [vmem:[%s1 + $0x340] sm:$0xff]
        %v2613 = vld [vmem:[%s1 + $0x348] sm:$0xff]
        %v2614 = vld [vmem:[%s1 + $0x350] sm:$0xff]
        %v2615 = vld [vmem:[%s1 + $0x358] sm:$0xff]
        %v2616 = vld [vmem:[%s1 + $0x360] sm:$0xff]
        %v2617 = vld [vmem:[%s1 + $0x368] sm:$0xff]
        %v2618 = vld [vmem:[%s1 + $0x370] sm:$0xff]
        %v2619 = vld [vmem:[%s1 + $0x378] sm:$0xff]
        %v2620 = vld [vmem:[%s1 + $0x380] sm:$0xff]
        %v2621 = vld [vmem:[%s1 + $0x388] sm:$0xff]
        %v2622 = vld [vmem:[%s1 + $0x390] sm:$0xff]
        %v2623 = vld [vmem:[%s1 + $0x398] sm:$0xff]
        %v2624 = vld [vmem:[%s1 + $0x3a0] sm:$0xff]
        %v2625 = vld [vmem:[%s1 + $0x3a8] sm:$0xff]
        %v2626 = vld [vmem:[%s1 + $0x3b0] sm:$0xff]
        %v2627 = vld [vmem:[%s1 + $0x3b8] sm:$0xff]
        %v2628 = vld [vmem:[%s1 + $0x3c0] sm:$0xff]
        %v2629 = vld [vmem:[%s1 + $0x3c8] sm:$0xff]
        %v2630 = vld [vmem:[%s1 + $0x3d0] sm:$0xff]
        %v2631 = vld [vmem:[%s1 + $0x3d8] sm:$0xff]
        %v2632 = vld [vmem:[%s1 + $0x3e0] sm:$0xff]
        %v2633 = vld [vmem:[%s1 + $0x3e8] sm:$0xff]
        %v2634 = vld [vmem:[%s1 + $0x3f0] sm:$0xff]
        %v2635 = vld [vmem:[%s1 + $0x3f8] sm:$0xff]
        %v2636 = vld [vmem:[%s1 + $0x400] sm:$0xff]
        %v2637 = vld [vmem:[%s1 + $0x408] sm:$0xff]
        %v2638 = vld [vmem:[%s1 + $0x410] sm:$0xff]
        %v2639 = vld [vmem:[%s1 + $0x418] sm:$0xff]
        %v2640 = vld [vmem:[%s1 + $0x420] sm:$0xff]
        %2641 = vmatprep.subr.mxu0 0.0
        %2642 = vmatpush1.msra.mxu0 %v2561
        %2643 = vmatprep.subr.mxu0 0.0
        %2644 = vmatpush1.msra.mxu0 %v2562
        %2645 = vmatprep.subr.mxu0 0.0
        %2646 = vmatpush1.msra.mxu0 %v2563
        %2647 = vmatprep.subr.mxu0 0.0
        %2648 = vmatpush1.msra.mxu0 %v2564
        %2649 = vmatprep.subr.mxu0 0.0
        %2650 = vmatpush1.msra.mxu0 %v2565
        %2651 = vmatprep.subr.mxu0 0.0
        %2652 = vmatpush1.msra.mxu0 %v2566
        %2653 = vmatprep.subr.mxu0 0.0
        %2654 = vmatpush1.msra.mxu0 %v2567
        %2655 = vmatprep.subr.mxu0 0.0
        %2656 = vmatpush1.msra.mxu0 %v2568
        %2657 = vmatprep.subr.mxu0 0.0
        %2658 = vmatpush1.msra.mxu0 %v2569
        %2659 = vmatprep.subr.mxu0 0.0
        %2660 = vmatpush1.msra.mxu0 %v2570
        %2661 = vmatprep.subr.mxu0 0.0
        %2662 = vmatpush1.msra.mxu0 %v2571
        %2663 = vmatprep.subr.mxu0 0.0
        %2664 = vmatpush1.msra.mxu0 %v2572
        %2665 = vmatprep.subr.mxu0 0.0
        %2666 = vmatpush1.msra.mxu0 %v2573
        %2667 = vmatprep.subr.mxu0 0.0
        %2668 = vmatpush1.msra.mxu0 %v2574
        %2669 = vmatprep.subr.mxu0 0.0
        %2670 = vmatpush1.msra.mxu0 %v2575
        %2671 = vmatprep.subr.mxu0 0.0
        %2672 = vmatpush1.msra.mxu0 %v2576
        %2673 = vmatprep.subr.mxu0 0.0
        %2674 = vmatpush1.msra.mxu0 %v2577
        %2675 = vmatprep.subr.mxu0 0.0
        %2676 = vmatpush1.msra.mxu0 %v2578
        %2677 = vmatprep.subr.mxu0 0.0
        %2678 = vmatpush1.msra.mxu0 %v2579
        %2679 = vmatprep.subr.mxu0 0.0
        %2680 = vmatpush1.msra.mxu0 %v2580
        %2681 = vmatprep.subr.mxu0 0.0
        %2682 = vmatpush1.msra.mxu0 %v2581
        %2683 = vmatprep.subr.mxu0 0.0
        %2684 = vmatpush1.msra.mxu0 %v2582
        %2685 = vmatprep.subr.mxu0 0.0
        %2686 = vmatpush1.msra.mxu0 %v2583
        %2687 = vmatprep.subr.mxu0 0.0
        %2688 = vmatpush1.msra.mxu0 %v2584
        %2689 = vmatprep.subr.mxu0 0.0
        %2690 = vmatpush1.msra.mxu0 %v2585
        %2691 = vmatprep.subr.mxu0 0.0
        %2692 = vmatpush1.msra.mxu0 %v2586
        %2693 = vmatprep.subr.mxu0 0.0
        %2694 = vmatpush1.msra.mxu0 %v2587
        %2695 = vmatprep.subr.mxu0 0.0
        %2696 = vmatpush1.msra.mxu0 %v2588
        %2697 = vmatprep.subr.mxu0 0.0
        %2698 = vmatpush1.msra.mxu0 %v2589
        %2699 = vmatprep.subr.mxu0 0.0
        %2700 = vmatpush1.msra.mxu0 %v2590
        %2701 = vmatprep.subr.mxu0 0.0
        %2702 = vmatpush1.msra.mxu0 %v2591
        %2703 = vmatprep.subr.mxu0 0.0
        %2704 = vmatpush1.msra.mxu0 %v2592
        %2705 = vmatprep.mubr.f32.mxu0 %v2546
        %2706 = vmatmul.mubr.f32.gmra.mrb[0].mxu0 %v2540
        %v2707 = vpop.f32.mrb[0].mxu0
        %v2708 = vadd.f32 0.0, %v2707
        %v2709 = vpop.f32.mrb[0].mxu0
        %2710 = vdwg.mxu0
        %2711 = vmatprep.subr.mxu0 0.0
        %2712 = vmatpush1.msra.mxu0 %v2593
        %2713 = vmatprep.subr.mxu0 0.0
        %2714 = vmatpush1.msra.mxu0 %v2594
        %2715 = vmatprep.subr.mxu0 0.0
        %2716 = vmatpush1.msra.mxu0 %v2595
        %2717 = vmatprep.subr.mxu0 0.0
        %2718 = vmatpush1.msra.mxu0 %v2596
        %2719 = vmatprep.subr.mxu0 0.0
        %2720 = vmatpush1.msra.mxu0 %v2597
        %2721 = vmatprep.subr.mxu0 0.0
        %2722 = vmatpush1.msra.mxu0 %v2598
        %2723 = vmatprep.subr.mxu0 0.0
        %2724 = vmatpush1.msra.mxu0 %v2599
        %2725 = vmatprep.subr.mxu0 0.0
        %2726 = vmatpush1.msra.mxu0 %v2600
        %2727 = vmatprep.subr.mxu0 0.0
        %2728 = vmatpush1.msra.mxu0 %v2601
        %2729 = vmatprep.subr.mxu0 0.0
        %2730 = vmatpush1.msra.mxu0 %v2602
        %2731 = vmatprep.subr.mxu0 0.0
        %2732 = vmatpush1.msra.mxu0 %v2603
        %2733 = vmatprep.subr.mxu0 0.0
        %2734 = vmatpush1.msra.mxu0 %v2604
        %2735 = vmatprep.subr.mxu0 0.0
        %2736 = vmatpush1.msra.mxu0 %v2605
        %2737 = vmatprep.subr.mxu0 0.0
        %2738 = vmatpush1.msra.mxu0 %v2606
        %2739 = vmatprep.subr.mxu0 0.0
        %2740 = vmatpush1.msra.mxu0 %v2607
        %2741 = vmatprep.subr.mxu0 0.0
        %2742 = vmatpush1.msra.mxu0 %v2608
        %2743 = vmatprep.subr.mxu0 0.0
        %2744 = vmatpush1.msra.mxu0 %v2609
        %2745 = vmatprep.subr.mxu0 0.0
        %2746 = vmatpush1.msra.mxu0 %v2610
        %2747 = vmatprep.subr.mxu0 0.0
        %2748 = vmatpush1.msra.mxu0 %v2611
        %2749 = vmatprep.subr.mxu0 0.0
        %2750 = vmatpush1.msra.mxu0 %v2612
        %2751 = vmatprep.subr.mxu0 0.0
        %2752 = vmatpush1.msra.mxu0 %v2613
        %2753 = vmatprep.subr.mxu0 0.0
        %2754 = vmatpush1.msra.mxu0 %v2614
        %2755 = vmatprep.subr.mxu0 0.0
        %2756 = vmatpush1.msra.mxu0 %v2615
        %2757 = vmatprep.subr.mxu0 0.0
        %2758 = vmatpush1.msra.mxu0 %v2616
        %2759 = vmatprep.subr.mxu0 0.0
        %2760 = vmatpush1.msra.mxu0 %v2617
        %2761 = vmatprep.subr.mxu0 0.0
        %2762 = vmatpush1.msra.mxu0 %v2618
        %2763 = vmatprep.subr.mxu0 0.0
        %2764 = vmatpush1.msra.mxu0 %v2619
        %2765 = vmatprep.subr.mxu0 0.0
        %2766 = vmatpush1.msra.mxu0 %v2620
        %2767 = vmatprep.subr.mxu0 0.0
        %2768 = vmatpush1.msra.mxu0 %v2621
        %2769 = vmatprep.subr.mxu0 0.0
        %2770 = vmatpush1.msra.mxu0 %v2622
        %2771 = vmatprep.subr.mxu0 0.0
        %2772 = vmatpush1.msra.mxu0 %v2623
        %2773 = vmatprep.subr.mxu0 0.0
        %2774 = vmatpush1.msra.mxu0 %v2624
        %2775 = vmatprep.mubr.f32.mxu0 %v2554
        %2776 = vmatmul.mubr.f32.gmra.mrb[0].mxu0 %v2550
        %v2777 = vpop.f32.mrb[0].mxu0
        %v2778 = vadd.f32 %v2708, %v2777
        %v2779 = vpop.f32.mrb[0].mxu0
        %2780 = vdwg.mxu0
        %2781 = vmatprep.subr.mxu0 0.0
        %2782 = vmatpush1.msra.mxu0 %v2625
        %2783 = vmatprep.subr.mxu0 0.0
        %2784 = vmatpush1.msra.mxu0 %v2626
        %2785 = vmatprep.subr.mxu0 0.0
        %2786 = vmatpush1.msra.mxu0 %v2627
        %2787 = vmatprep.subr.mxu0 0.0
        %2788 = vmatpush1.msra.mxu0 %v2628
        %2789 = vmatprep.subr.mxu0 0.0
        %2790 = vmatpush1.msra.mxu0 %v2629
        %2791 = vmatprep.subr.mxu0 0.0
        %2792 = vmatpush1.msra.mxu0 %v2630
        %2793 = vmatprep.subr.mxu0 0.0
        %2794 = vmatpush1.msra.mxu0 %v2631
        %2795 = vmatprep.subr.mxu0 0.0
        %2796 = vmatpush1.msra.mxu0 %v2632
        %2797 = vmatprep.subr.mxu0 0.0
        %2798 = vmatpush1.msra.mxu0 %v2633
        %2799 = vmatprep.subr.mxu0 0.0
        %2800 = vmatpush1.msra.mxu0 %v2634
        %2801 = vmatprep.subr.mxu0 0.0
        %2802 = vmatpush1.msra.mxu0 %v2635
        %2803 = vmatprep.subr.mxu0 0.0
        %2804 = vmatpush1.msra.mxu0 %v2636
        %2805 = vmatprep.subr.mxu0 0.0
        %2806 = vmatpush1.msra.mxu0 %v2637
        %2807 = vmatprep.subr.mxu0 0.0
        %2808 = vmatpush1.msra.mxu0 %v2638
        %2809 = vmatprep.subr.mxu0 0.0
        %2810 = vmatpush1.msra.mxu0 %v2639
        %2811 = vmatprep.subr.mxu0 0.0
        %2812 = vmatpush1.msra.mxu0 %v2640
        %2813 = vmatprep.subr.mxu0 0.0
        %2814 = vmatpush1.msra.mxu0 0.0
        %2815 = vmatprep.subr.mxu0 0.0
        %2816 = vmatpush1.msra.mxu0 0.0
        %2817 = vmatprep.subr.mxu0 0.0
        %2818 = vmatpush1.msra.mxu0 0.0
        %2819 = vmatprep.subr.mxu0 0.0
        %2820 = vmatpush1.msra.mxu0 0.0
        %2821 = vmatprep.subr.mxu0 0.0
        %2822 = vmatpush1.msra.mxu0 0.0
        %2823 = vmatprep.subr.mxu0 0.0
        %2824 = vmatpush1.msra.mxu0 0.0
        %2825 = vmatprep.subr.mxu0 0.0
        %2826 = vmatpush1.msra.mxu0 0.0
        %2827 = vmatprep.subr.mxu0 0.0
        %2828 = vmatpush1.msra.mxu0 0.0
        %2829 = vmatprep.subr.mxu0 0.0
        %2830 = vmatpush1.msra.mxu0 0.0
        %2831 = vmatprep.subr.mxu0 0.0
        %2832 = vmatpush1.msra.mxu0 0.0
        %2833 = vmatprep.subr.mxu0 0.0
        %2834 = vmatpush1.msra.mxu0 0.0
        %2835 = vmatprep.subr.mxu0 0.0
        %2836 = vmatpush1.msra.mxu0 0.0
        %2837 = vmatprep.subr.mxu0 0.0
        %2838 = vmatpush1.msra.mxu0 0.0
        %2839 = vmatprep.subr.mxu0 0.0
        %2840 = vmatpush1.msra.mxu0 0.0
        %2841 = vmatprep.subr.mxu0 0.0
        %2842 = vmatpush1.msra.mxu0 0.0
        %2843 = vmatprep.subr.mxu0 0.0
        %2844 = vmatpush1.msra.mxu0 0.0
        %2845 = vmatprep.mubr.f32.mxu0 0.0
        %2846 = vmatmul.mubr.f32.gmra.mrb[0].mxu0 %v2558
        %v2847 = vpop.f32.mrb[0].mxu0
        %v2848 = vadd.f32 %v2778, %v2847
        %v2849 = vpop.f32.mrb[0].mxu0
        %2850 = vdwg.mxu0
        %v2851 = vlaneseq
        %v2852 = vshrl.u32 %v2851, 7
        %v2853 = vsub.s32 0, %v2852
        %v2854 = vrot.slane %v2560, %v2853
        %v2855 = vadd.f32 %v2854, %v2848
        %v2856 = vxor.u32 %v2855, 2147483648
        %v2857 = vmul.f32 %v2856, 1.442695
        %v2858 = vpow.pop %v2857
        %v2859 = vadd.f32 %v2858, 1.0
        %v2860 = vrcp.pop %v2859
        %v2861 = vmul.f32 1.0, %v2860
        %v2862 = vmul.f32 %v2855, %v2861
        %v2863 = vld [vmem:[%s1 + $0x120] sm:$0xff]
        %v2864 = vld [vmem:[%s1 + $0x128] sm:$0xff]
        %v2865 = vld [vmem:[%s1 + $0x130] sm:$0xff]
        %v2866 = vld [vmem:[%s1 + $0x138] sm:$0xff]
        %v2867 = vld [vmem:[%s1 + $0x140] sm:$0xff]
        %v2868 = vld [vmem:[%s1 + $0x148] sm:$0xff]
        %v2869 = vld [vmem:[%s1 + $0x150] sm:$0xff]
        %v2870 = vld [vmem:[%s1 + $0x158] sm:$0xff]
        %v2871 = vld [vmem:[%s1 + $0x160] sm:$0xff]
        %v2872 = vld [vmem:[%s1 + $0x168] sm:$0xff]
        %v2873 = vld [vmem:[%s1 + $0x170] sm:$0xff]
        %v2874 = vld [vmem:[%s1 + $0x178] sm:$0xff]
        %v2875 = vld [vmem:[%s1 + $0x180] sm:$0xff]
        %v2876 = vld [vmem:[%s1 + $0x188] sm:$0xff]
        %v2877 = vld [vmem:[%s1 + $0x190] sm:$0xff]
        %v2878 = vld [vmem:[%s1 + $0x198] sm:$0xff]
        %2879 = vmatprep.subr.mxu0 0.0
        %v2880 = vand.u32 %v2863, 4294901760
        %2881 = vmatpush1.msra.mxu0 %v2880
        %2882 = vmatprep.subr.mxu0 0.0
        %v2883 = vand.u32 %v2864, 4294901760
        %2884 = vmatpush1.msra.mxu0 %v2883
        %2885 = vmatprep.subr.mxu0 0.0
        %v2886 = vand.u32 %v2865, 4294901760
        %2887 = vmatpush1.msra.mxu0 %v2886
        %2888 = vmatprep.subr.mxu0 0.0
        %v2889 = vand.u32 %v2866, 4294901760
        %2890 = vmatpush1.msra.mxu0 %v2889
        %2891 = vmatprep.subr.mxu0 0.0
        %v2892 = vand.u32 %v2867, 4294901760
        %2893 = vmatpush1.msra.mxu0 %v2892
        %2894 = vmatprep.subr.mxu0 0.0
        %v2895 = vand.u32 %v2868, 4294901760
        %2896 = vmatpush1.msra.mxu0 %v2895
        %2897 = vmatprep.subr.mxu0 0.0
        %v2898 = vand.u32 %v2869, 4294901760
        %2899 = vmatpush1.msra.mxu0 %v2898
        %2900 = vmatprep.subr.mxu0 0.0
        %v2901 = vand.u32 %v2870, 4294901760
        %2902 = vmatpush1.msra.mxu0 %v2901
        %2903 = vmatprep.subr.mxu0 0.0
        %v2904 = vand.u32 %v2871, 4294901760
        %2905 = vmatpush1.msra.mxu0 %v2904
        %2906 = vmatprep.subr.mxu0 0.0
        %v2907 = vand.u32 %v2872, 4294901760
        %2908 = vmatpush1.msra.mxu0 %v2907
        %2909 = vmatprep.subr.mxu0 0.0
        %v2910 = vand.u32 %v2873, 4294901760
        %2911 = vmatpush1.msra.mxu0 %v2910
        %2912 = vmatprep.subr.mxu0 0.0
        %v2913 = vand.u32 %v2874, 4294901760
        %2914 = vmatpush1.msra.mxu0 %v2913
        %2915 = vmatprep.subr.mxu0 0.0
        %v2916 = vand.u32 %v2875, 4294901760
        %2917 = vmatpush1.msra.mxu0 %v2916
        %2918 = vmatprep.subr.mxu0 0.0
        %v2919 = vand.u32 %v2876, 4294901760
        %2920 = vmatpush1.msra.mxu0 %v2919
        %2921 = vmatprep.subr.mxu0 0.0
        %v2922 = vand.u32 %v2877, 4294901760
        %2923 = vmatpush1.msra.mxu0 %v2922
        %2924 = vmatprep.subr.mxu0 0.0
        %v2925 = vand.u32 %v2878, 4294901760
        %2926 = vmatpush1.msra.mxu0 %v2925
        %2927 = vmatprep.subr.mxu0 0.0
        %2928 = vmatpush1.msra.mxu0 0.0
        %2929 = vmatprep.subr.mxu0 0.0
        %2930 = vmatpush1.msra.mxu0 0.0
        %2931 = vmatprep.subr.mxu0 0.0
        %2932 = vmatpush1.msra.mxu0 0.0
        %2933 = vmatprep.subr.mxu0 0.0
        %2934 = vmatpush1.msra.mxu0 0.0
        %2935 = vmatprep.subr.mxu0 0.0
        %2936 = vmatpush1.msra.mxu0 0.0
        %2937 = vmatprep.subr.mxu0 0.0
        %2938 = vmatpush1.msra.mxu0 0.0
        %2939 = vmatprep.subr.mxu0 0.0
        %2940 = vmatpush1.msra.mxu0 0.0
        %2941 = vmatprep.subr.mxu0 0.0
        %2942 = vmatpush1.msra.mxu0 0.0
        %2943 = vmatprep.subr.mxu0 0.0
        %2944 = vmatpush1.msra.mxu0 0.0
        %2945 = vmatprep.subr.mxu0 0.0
        %2946 = vmatpush1.msra.mxu0 0.0
        %2947 = vmatprep.subr.mxu0 0.0
        %2948 = vmatpush1.msra.mxu0 0.0
        %2949 = vmatprep.subr.mxu0 0.0
        %2950 = vmatpush1.msra.mxu0 0.0
        %2951 = vmatprep.subr.mxu0 0.0
        %2952 = vmatpush1.msra.mxu0 0.0
        %2953 = vmatprep.subr.mxu0 0.0
        %2954 = vmatpush1.msra.mxu0 0.0
        %2955 = vmatprep.subr.mxu0 0.0
        %2956 = vmatpush1.msra.mxu0 0.0
        %2957 = vmatprep.subr.mxu0 0.0
        %2958 = vmatpush1.msra.mxu0 0.0
        %2959 = vmatprep.mubr.f32.mxu0 0.0
        %v2960 = vand.u32 %v2862, 4294901760
        %v2961 = vsub.f32 %v2862, %v2960
        %v2962 = vand.u32 %v2961, 4294901760
        %v2963 = vsub.f32 %v2961, %v2962
        %v2964 = vand.u32 %v2963, 4294901760
        %2965 = vmatmul.mubr.f32.gmra.mrb[0].mxu0 %v2964
        %v2966 = vpop.f32.mrb[0].mxu0
        %v2967 = vadd.f32 0.0, %v2966
        %v2968 = vpop.f32.mrb[0].mxu0
        %2969 = vdwg.mxu0
        %2970 = vmatprep.subr.mxu0 0.0
        %v2971 = vand.u32 %v2863, 4294901760
        %v2972 = vsub.f32 %v2863, %v2971
        %v2973 = vand.u32 %v2972, 4294901760
        %v2974 = vsub.f32 %v2972, %v2973
        %v2975 = vand.u32 %v2974, 4294901760
        %2976 = vmatpush1.msra.mxu0 %v2975
        %2977 = vmatprep.subr.mxu0 0.0
        %v2978 = vand.u32 %v2864, 4294901760
        %v2979 = vsub.f32 %v2864, %v2978
        %v2980 = vand.u32 %v2979, 4294901760
        %v2981 = vsub.f32 %v2979, %v2980
        %v2982 = vand.u32 %v2981, 4294901760
        %2983 = vmatpush1.msra.mxu0 %v2982
        %2984 = vmatprep.subr.mxu0 0.0
        %v2985 = vand.u32 %v2865, 4294901760
        %v2986 = vsub.f32 %v2865, %v2985
        %v2987 = vand.u32 %v2986, 4294901760
        %v2988 = vsub.f32 %v2986, %v2987
        %v2989 = vand.u32 %v2988, 4294901760
        %2990 = vmatpush1.msra.mxu0 %v2989
        %2991 = vmatprep.subr.mxu0 0.0
        %v2992 = vand.u32 %v2866, 4294901760
        %v2993 = vsub.f32 %v2866, %v2992
        %v2994 = vand.u32 %v2993, 4294901760
        %v2995 = vsub.f32 %v2993, %v2994
        %v2996 = vand.u32 %v2995, 4294901760
        %2997 = vmatpush1.msra.mxu0 %v2996
        %2998 = vmatprep.subr.mxu0 0.0
        %v2999 = vand.u32 %v2867, 4294901760
        %v3000 = vsub.f32 %v2867, %v2999
        %v3001 = vand.u32 %v3000, 4294901760
        %v3002 = vsub.f32 %v3000, %v3001
        %v3003 = vand.u32 %v3002, 4294901760
        %3004 = vmatpush1.msra.mxu0 %v3003
        %3005 = vmatprep.subr.mxu0 0.0
        %v3006 = vand.u32 %v2868, 4294901760
        %v3007 = vsub.f32 %v2868, %v3006
        %v3008 = vand.u32 %v3007, 4294901760
        %v3009 = vsub.f32 %v3007, %v3008
        %v3010 = vand.u32 %v3009, 4294901760
        %3011 = vmatpush1.msra.mxu0 %v3010
        %3012 = vmatprep.subr.mxu0 0.0
        %v3013 = vand.u32 %v2869, 4294901760
        %v3014 = vsub.f32 %v2869, %v3013
        %v3015 = vand.u32 %v3014, 4294901760
        %v3016 = vsub.f32 %v3014, %v3015
        %v3017 = vand.u32 %v3016, 4294901760
        %3018 = vmatpush1.msra.mxu0 %v3017
        %3019 = vmatprep.subr.mxu0 0.0
        %v3020 = vand.u32 %v2870, 4294901760
        %v3021 = vsub.f32 %v2870, %v3020
        %v3022 = vand.u32 %v3021, 4294901760
        %v3023 = vsub.f32 %v3021, %v3022
        %v3024 = vand.u32 %v3023, 4294901760
        %3025 = vmatpush1.msra.mxu0 %v3024
        %3026 = vmatprep.subr.mxu0 0.0
        %v3027 = vand.u32 %v2871, 4294901760
        %v3028 = vsub.f32 %v2871, %v3027
        %v3029 = vand.u32 %v3028, 4294901760
        %v3030 = vsub.f32 %v3028, %v3029
        %v3031 = vand.u32 %v3030, 4294901760
        %3032 = vmatpush1.msra.mxu0 %v3031
        %3033 = vmatprep.subr.mxu0 0.0
        %v3034 = vand.u32 %v2872, 4294901760
        %v3035 = vsub.f32 %v2872, %v3034
        %v3036 = vand.u32 %v3035, 4294901760
        %v3037 = vsub.f32 %v3035, %v3036
        %v3038 = vand.u32 %v3037, 4294901760
        %3039 = vmatpush1.msra.mxu0 %v3038
        %3040 = vmatprep.subr.mxu0 0.0
        %v3041 = vand.u32 %v2873, 4294901760
        %v3042 = vsub.f32 %v2873, %v3041
        %v3043 = vand.u32 %v3042, 4294901760
        %v3044 = vsub.f32 %v3042, %v3043
        %v3045 = vand.u32 %v3044, 4294901760
        %3046 = vmatpush1.msra.mxu0 %v3045
        %3047 = vmatprep.subr.mxu0 0.0
        %v3048 = vand.u32 %v2874, 4294901760
        %v3049 = vsub.f32 %v2874, %v3048
        %v3050 = vand.u32 %v3049, 4294901760
        %v3051 = vsub.f32 %v3049, %v3050
        %v3052 = vand.u32 %v3051, 4294901760
        %3053 = vmatpush1.msra.mxu0 %v3052
        %3054 = vmatprep.subr.mxu0 0.0
        %v3055 = vand.u32 %v2875, 4294901760
        %v3056 = vsub.f32 %v2875, %v3055
        %v3057 = vand.u32 %v3056, 4294901760
        %v3058 = vsub.f32 %v3056, %v3057
        %v3059 = vand.u32 %v3058, 4294901760
        %3060 = vmatpush1.msra.mxu0 %v3059
        %3061 = vmatprep.subr.mxu0 0.0
        %v3062 = vand.u32 %v2876, 4294901760
        %v3063 = vsub.f32 %v2876, %v3062
        %v3064 = vand.u32 %v3063, 4294901760
        %v3065 = vsub.f32 %v3063, %v3064
        %v3066 = vand.u32 %v3065, 4294901760
        %3067 = vmatpush1.msra.mxu0 %v3066
        %3068 = vmatprep.subr.mxu0 0.0
        %v3069 = vand.u32 %v2877, 4294901760
        %v3070 = vsub.f32 %v2877, %v3069
        %v3071 = vand.u32 %v3070, 4294901760
        %v3072 = vsub.f32 %v3070, %v3071
        %v3073 = vand.u32 %v3072, 4294901760
        %3074 = vmatpush1.msra.mxu0 %v3073
        %3075 = vmatprep.subr.mxu0 0.0
        %v3076 = vand.u32 %v2878, 4294901760
        %v3077 = vsub.f32 %v2878, %v3076
        %v3078 = vand.u32 %v3077, 4294901760
        %v3079 = vsub.f32 %v3077, %v3078
        %v3080 = vand.u32 %v3079, 4294901760
        %3081 = vmatpush1.msra.mxu0 %v3080
        %3082 = vmatprep.subr.mxu0 0.0
        %3083 = vmatpush1.msra.mxu0 0.0
        %3084 = vmatprep.subr.mxu0 0.0
        %3085 = vmatpush1.msra.mxu0 0.0
        %3086 = vmatprep.subr.mxu0 0.0
        %3087 = vmatpush1.msra.mxu0 0.0
        %3088 = vmatprep.subr.mxu0 0.0
        %3089 = vmatpush1.msra.mxu0 0.0
        %3090 = vmatprep.subr.mxu0 0.0
        %3091 = vmatpush1.msra.mxu0 0.0
        %3092 = vmatprep.subr.mxu0 0.0
        %3093 = vmatpush1.msra.mxu0 0.0
        %3094 = vmatprep.subr.mxu0 0.0
        %3095 = vmatpush1.msra.mxu0 0.0
        %3096 = vmatprep.subr.mxu0 0.0
        %3097 = vmatpush1.msra.mxu0 0.0
        %3098 = vmatprep.subr.mxu0 0.0
        %3099 = vmatpush1.msra.mxu0 0.0
        %3100 = vmatprep.subr.mxu0 0.0
        %3101 = vmatpush1.msra.mxu0 0.0
        %3102 = vmatprep.subr.mxu0 0.0
        %3103 = vmatpush1.msra.mxu0 0.0
        %3104 = vmatprep.subr.mxu0 0.0
        %3105 = vmatpush1.msra.mxu0 0.0
        %3106 = vmatprep.subr.mxu0 0.0
        %3107 = vmatpush1.msra.mxu0 0.0
        %3108 = vmatprep.subr.mxu0 0.0
        %3109 = vmatpush1.msra.mxu0 0.0
        %3110 = vmatprep.subr.mxu0 0.0
        %3111 = vmatpush1.msra.mxu0 0.0
        %3112 = vmatprep.subr.mxu0 0.0
        %3113 = vmatpush1.msra.mxu0 0.0
        %3114 = vmatprep.mubr.f32.mxu0 0.0
        %v3115 = vand.u32 %v2862, 4294901760
        %3116 = vmatmul.mubr.f32.gmra.mrb[0].mxu0 %v3115
        %v3117 = vpop.f32.mrb[0].mxu0
        %v3118 = vadd.f32 %v2967, %v3117
        %v3119 = vpop.f32.mrb[0].mxu0
        %3120 = vdwg.mxu0
        %3121 = vmatprep.subr.mxu0 0.0
        %v3122 = vand.u32 %v2863, 4294901760
        %v3123 = vsub.f32 %v2863, %v3122
        %3124 = vmatpush1.msra.mxu0 %v3123
        %3125 = vmatprep.subr.mxu0 0.0
        %v3126 = vand.u32 %v2864, 4294901760
        %v3127 = vsub.f32 %v2864, %v3126
        %3128 = vmatpush1.msra.mxu0 %v3127
        %3129 = vmatprep.subr.mxu0 0.0
        %v3130 = vand.u32 %v2865, 4294901760
        %v3131 = vsub.f32 %v2865, %v3130
        %3132 = vmatpush1.msra.mxu0 %v3131
        %3133 = vmatprep.subr.mxu0 0.0
        %v3134 = vand.u32 %v2866, 4294901760
        %v3135 = vsub.f32 %v2866, %v3134
        %3136 = vmatpush1.msra.mxu0 %v3135
        %3137 = vmatprep.subr.mxu0 0.0
        %v3138 = vand.u32 %v2867, 4294901760
        %v3139 = vsub.f32 %v2867, %v3138
        %3140 = vmatpush1.msra.mxu0 %v3139
        %3141 = vmatprep.subr.mxu0 0.0
        %v3142 = vand.u32 %v2868, 4294901760
        %v3143 = vsub.f32 %v2868, %v3142
        %3144 = vmatpush1.msra.mxu0 %v3143
        %3145 = vmatprep.subr.mxu0 0.0
        %v3146 = vand.u32 %v2869, 4294901760
        %v3147 = vsub.f32 %v2869, %v3146
        %3148 = vmatpush1.msra.mxu0 %v3147
        %3149 = vmatprep.subr.mxu0 0.0
        %v3150 = vand.u32 %v2870, 4294901760
        %v3151 = vsub.f32 %v2870, %v3150
        %3152 = vmatpush1.msra.mxu0 %v3151
        %3153 = vmatprep.subr.mxu0 0.0
        %v3154 = vand.u32 %v2871, 4294901760
        %v3155 = vsub.f32 %v2871, %v3154
        %3156 = vmatpush1.msra.mxu0 %v3155
        %3157 = vmatprep.subr.mxu0 0.0
        %v3158 = vand.u32 %v2872, 4294901760
        %v3159 = vsub.f32 %v2872, %v3158
        %3160 = vmatpush1.msra.mxu0 %v3159
        %3161 = vmatprep.subr.mxu0 0.0
        %v3162 = vand.u32 %v2873, 4294901760
        %v3163 = vsub.f32 %v2873, %v3162
        %3164 = vmatpush1.msra.mxu0 %v3163
        %3165 = vmatprep.subr.mxu0 0.0
        %v3166 = vand.u32 %v2874, 4294901760
        %v3167 = vsub.f32 %v2874, %v3166
        %3168 = vmatpush1.msra.mxu0 %v3167
        %3169 = vmatprep.subr.mxu0 0.0
        %v3170 = vand.u32 %v2875, 4294901760
        %v3171 = vsub.f32 %v2875, %v3170
        %3172 = vmatpush1.msra.mxu0 %v3171
        %3173 = vmatprep.subr.mxu0 0.0
        %v3174 = vand.u32 %v2876, 4294901760
        %v3175 = vsub.f32 %v2876, %v3174
        %3176 = vmatpush1.msra.mxu0 %v3175
        %3177 = vmatprep.subr.mxu0 0.0
        %v3178 = vand.u32 %v2877, 4294901760
        %v3179 = vsub.f32 %v2877, %v3178
        %3180 = vmatpush1.msra.mxu0 %v3179
        %3181 = vmatprep.subr.mxu0 0.0
        %v3182 = vand.u32 %v2878, 4294901760
        %v3183 = vsub.f32 %v2878, %v3182
        %3184 = vmatpush1.msra.mxu0 %v3183
        %3185 = vmatprep.subr.mxu0 0.0
        %3186 = vmatpush1.msra.mxu0 0.0
        %3187 = vmatprep.subr.mxu0 0.0
        %3188 = vmatpush1.msra.mxu0 0.0
        %3189 = vmatprep.subr.mxu0 0.0
        %3190 = vmatpush1.msra.mxu0 0.0
        %3191 = vmatprep.subr.mxu0 0.0
        %3192 = vmatpush1.msra.mxu0 0.0
        %3193 = vmatprep.subr.mxu0 0.0
        %3194 = vmatpush1.msra.mxu0 0.0
        %3195 = vmatprep.subr.mxu0 0.0
        %3196 = vmatpush1.msra.mxu0 0.0
        %3197 = vmatprep.subr.mxu0 0.0
        %3198 = vmatpush1.msra.mxu0 0.0
        %3199 = vmatprep.subr.mxu0 0.0
        %3200 = vmatpush1.msra.mxu0 0.0
        %3201 = vmatprep.subr.mxu0 0.0
        %3202 = vmatpush1.msra.mxu0 0.0
        %3203 = vmatprep.subr.mxu0 0.0
        %3204 = vmatpush1.msra.mxu0 0.0
        %3205 = vmatprep.subr.mxu0 0.0
        %3206 = vmatpush1.msra.mxu0 0.0
        %3207 = vmatprep.subr.mxu0 0.0
        %3208 = vmatpush1.msra.mxu0 0.0
        %3209 = vmatprep.subr.mxu0 0.0
        %3210 = vmatpush1.msra.mxu0 0.0
        %3211 = vmatprep.subr.mxu0 0.0
        %3212 = vmatpush1.msra.mxu0 0.0
        %3213 = vmatprep.subr.mxu0 0.0
        %3214 = vmatpush1.msra.mxu0 0.0
        %3215 = vmatprep.subr.mxu0 0.0
        %3216 = vmatpush1.msra.mxu0 0.0
        %3217 = vmatprep.mubr.f32.mxu0 0.0
        %v3218 = vand.u32 %v2862, 4294901760
        %v3219 = vsub.f32 %v2862, %v3218
        %3220 = vmatmul.mubr.f32.gmra.mrb[0].mxu0 %v3219
        %v3221 = vpop.f32.mrb[0].mxu0
        %v3222 = vadd.f32 %v3118, %v3221
        %v3223 = vpop.f32.mrb[0].mxu0
        %3224 = vdwg.mxu0
        %3225 = vmatprep.subr.mxu0 0.0
        %v3226 = vand.u32 %v2863, 4294901760
        %3227 = vmatpush1.msra.mxu0 %v3226
        %3228 = vmatprep.subr.mxu0 0.0
        %v3229 = vand.u32 %v2864, 4294901760
        %3230 = vmatpush1.msra.mxu0 %v3229
        %3231 = vmatprep.subr.mxu0 0.0
        %v3232 = vand.u32 %v2865, 4294901760
        %3233 = vmatpush1.msra.mxu0 %v3232
        %3234 = vmatprep.subr.mxu0 0.0
        %v3235 = vand.u32 %v2866, 4294901760
        %3236 = vmatpush1.msra.mxu0 %v3235
        %3237 = vmatprep.subr.mxu0 0.0
        %v3238 = vand.u32 %v2867, 4294901760
        %3239 = vmatpush1.msra.mxu0 %v3238
        %3240 = vmatprep.subr.mxu0 0.0
        %v3241 = vand.u32 %v2868, 4294901760
        %3242 = vmatpush1.msra.mxu0 %v3241
        %3243 = vmatprep.subr.mxu0 0.0
        %v3244 = vand.u32 %v2869, 4294901760
        %3245 = vmatpush1.msra.mxu0 %v3244
        %3246 = vmatprep.subr.mxu0 0.0
        %v3247 = vand.u32 %v2870, 4294901760
        %3248 = vmatpush1.msra.mxu0 %v3247
        %3249 = vmatprep.subr.mxu0 0.0
        %v3250 = vand.u32 %v2871, 4294901760
        %3251 = vmatpush1.msra.mxu0 %v3250
        %3252 = vmatprep.subr.mxu0 0.0
        %v3253 = vand.u32 %v2872, 4294901760
        %3254 = vmatpush1.msra.mxu0 %v3253
        %3255 = vmatprep.subr.mxu0 0.0
        %v3256 = vand.u32 %v2873, 4294901760
        %3257 = vmatpush1.msra.mxu0 %v3256
        %3258 = vmatprep.subr.mxu0 0.0
        %v3259 = vand.u32 %v2874, 4294901760
        %3260 = vmatpush1.msra.mxu0 %v3259
        %3261 = vmatprep.subr.mxu0 0.0
        %v3262 = vand.u32 %v2875, 4294901760
        %3263 = vmatpush1.msra.mxu0 %v3262
        %3264 = vmatprep.subr.mxu0 0.0
        %v3265 = vand.u32 %v2876, 4294901760
        %3266 = vmatpush1.msra.mxu0 %v3265
        %3267 = vmatprep.subr.mxu0 0.0
        %v3268 = vand.u32 %v2877, 4294901760
        %3269 = vmatpush1.msra.mxu0 %v3268
        %3270 = vmatprep.subr.mxu0 0.0
        %v3271 = vand.u32 %v2878, 4294901760
        %3272 = vmatpush1.msra.mxu0 %v3271
        %3273 = vmatprep.subr.mxu0 0.0
        %3274 = vmatpush1.msra.mxu0 0.0
        %3275 = vmatprep.subr.mxu0 0.0
        %3276 = vmatpush1.msra.mxu0 0.0
        %3277 = vmatprep.subr.mxu0 0.0
        %3278 = vmatpush1.msra.mxu0 0.0
        %3279 = vmatprep.subr.mxu0 0.0
        %3280 = vmatpush1.msra.mxu0 0.0
        %3281 = vmatprep.subr.mxu0 0.0
        %3282 = vmatpush1.msra.mxu0 0.0
        %3283 = vmatprep.subr.mxu0 0.0
        %3284 = vmatpush1.msra.mxu0 0.0
        %3285 = vmatprep.subr.mxu0 0.0
        %3286 = vmatpush1.msra.mxu0 0.0
        %3287 = vmatprep.subr.mxu0 0.0
        %3288 = vmatpush1.msra.mxu0 0.0
        %3289 = vmatprep.subr.mxu0 0.0
        %3290 = vmatpush1.msra.mxu0 0.0
        %3291 = vmatprep.subr.mxu0 0.0
        %3292 = vmatpush1.msra.mxu0 0.0
        %3293 = vmatprep.subr.mxu0 0.0
        %3294 = vmatpush1.msra.mxu0 0.0
        %3295 = vmatprep.subr.mxu0 0.0
        %3296 = vmatpush1.msra.mxu0 0.0
        %3297 = vmatprep.subr.mxu0 0.0
        %3298 = vmatpush1.msra.mxu0 0.0
        %3299 = vmatprep.subr.mxu0 0.0
        %3300 = vmatpush1.msra.mxu0 0.0
        %3301 = vmatprep.subr.mxu0 0.0
        %3302 = vmatpush1.msra.mxu0 0.0
        %3303 = vmatprep.subr.mxu0 0.0
        %3304 = vmatpush1.msra.mxu0 0.0
        %3305 = vmatprep.mubr.f32.mxu0 0.0
        %v3306 = vand.u32 %v2862, 4294901760
        %v3307 = vsub.f32 %v2862, %v3306
        %v3308 = vand.u32 %v3307, 4294901760
        %3309 = vmatmul.mubr.f32.gmra.mrb[0].mxu0 %v3308
        %v3310 = vpop.f32.mrb[0].mxu0
        %v3311 = vadd.f32 %v3222, %v3310
        %v3312 = vpop.f32.mrb[0].mxu0
        %3313 = vdwg.mxu0
        %3314 = vmatprep.subr.mxu0 0.0
        %v3315 = vand.u32 %v2863, 4294901760
        %v3316 = vsub.f32 %v2863, %v3315
        %v3317 = vand.u32 %v3316, 4294901760
        %3318 = vmatpush1.msra.mxu0 %v3317
        %3319 = vmatprep.subr.mxu0 0.0
        %v3320 = vand.u32 %v2864, 4294901760
        %v3321 = vsub.f32 %v2864, %v3320
        %v3322 = vand.u32 %v3321, 4294901760
        %3323 = vmatpush1.msra.mxu0 %v3322
        %3324 = vmatprep.subr.mxu0 0.0
        %v3325 = vand.u32 %v2865, 4294901760
        %v3326 = vsub.f32 %v2865, %v3325
        %v3327 = vand.u32 %v3326, 4294901760
        %3328 = vmatpush1.msra.mxu0 %v3327
        %3329 = vmatprep.subr.mxu0 0.0
        %v3330 = vand.u32 %v2866, 4294901760
        %v3331 = vsub.f32 %v2866, %v3330
        %v3332 = vand.u32 %v3331, 4294901760
        %3333 = vmatpush1.msra.mxu0 %v3332
        %3334 = vmatprep.subr.mxu0 0.0
        %v3335 = vand.u32 %v2867, 4294901760
        %v3336 = vsub.f32 %v2867, %v3335
        %v3337 = vand.u32 %v3336, 4294901760
        %3338 = vmatpush1.msra.mxu0 %v3337
        %3339 = vmatprep.subr.mxu0 0.0
        %v3340 = vand.u32 %v2868, 4294901760
        %v3341 = vsub.f32 %v2868, %v3340
        %v3342 = vand.u32 %v3341, 4294901760
        %3343 = vmatpush1.msra.mxu0 %v3342
        %3344 = vmatprep.subr.mxu0 0.0
        %v3345 = vand.u32 %v2869, 4294901760
        %v3346 = vsub.f32 %v2869, %v3345
        %v3347 = vand.u32 %v3346, 4294901760
        %3348 = vmatpush1.msra.mxu0 %v3347
        %3349 = vmatprep.subr.mxu0 0.0
        %v3350 = vand.u32 %v2870, 4294901760
        %v3351 = vsub.f32 %v2870, %v3350
        %v3352 = vand.u32 %v3351, 4294901760
        %3353 = vmatpush1.msra.mxu0 %v3352
        %3354 = vmatprep.subr.mxu0 0.0
        %v3355 = vand.u32 %v2871, 4294901760
        %v3356 = vsub.f32 %v2871, %v3355
        %v3357 = vand.u32 %v3356, 4294901760
        %3358 = vmatpush1.msra.mxu0 %v3357
        %3359 = vmatprep.subr.mxu0 0.0
        %v3360 = vand.u32 %v2872, 4294901760
        %v3361 = vsub.f32 %v2872, %v3360
        %v3362 = vand.u32 %v3361, 4294901760
        %3363 = vmatpush1.msra.mxu0 %v3362
        %3364 = vmatprep.subr.mxu0 0.0
        %v3365 = vand.u32 %v2873, 4294901760
        %v3366 = vsub.f32 %v2873, %v3365
        %v3367 = vand.u32 %v3366, 4294901760
        %3368 = vmatpush1.msra.mxu0 %v3367
        %3369 = vmatprep.subr.mxu0 0.0
        %v3370 = vand.u32 %v2874, 4294901760
        %v3371 = vsub.f32 %v2874, %v3370
        %v3372 = vand.u32 %v3371, 4294901760
        %3373 = vmatpush1.msra.mxu0 %v3372
        %3374 = vmatprep.subr.mxu0 0.0
        %v3375 = vand.u32 %v2875, 4294901760
        %v3376 = vsub.f32 %v2875, %v3375
        %v3377 = vand.u32 %v3376, 4294901760
        %3378 = vmatpush1.msra.mxu0 %v3377
        %3379 = vmatprep.subr.mxu0 0.0
        %v3380 = vand.u32 %v2876, 4294901760
        %v3381 = vsub.f32 %v2876, %v3380
        %v3382 = vand.u32 %v3381, 4294901760
        %3383 = vmatpush1.msra.mxu0 %v3382
        %3384 = vmatprep.subr.mxu0 0.0
        %v3385 = vand.u32 %v2877, 4294901760
        %v3386 = vsub.f32 %v2877, %v3385
        %v3387 = vand.u32 %v3386, 4294901760
        %3388 = vmatpush1.msra.mxu0 %v3387
        %3389 = vmatprep.subr.mxu0 0.0
        %v3390 = vand.u32 %v2878, 4294901760
        %v3391 = vsub.f32 %v2878, %v3390
        %v3392 = vand.u32 %v3391, 4294901760
        %3393 = vmatpush1.msra.mxu0 %v3392
        %3394 = vmatprep.subr.mxu0 0.0
        %3395 = vmatpush1.msra.mxu0 0.0
        %3396 = vmatprep.subr.mxu0 0.0
        %3397 = vmatpush1.msra.mxu0 0.0
        %3398 = vmatprep.subr.mxu0 0.0
        %3399 = vmatpush1.msra.mxu0 0.0
        %3400 = vmatprep.subr.mxu0 0.0
        %3401 = vmatpush1.msra.mxu0 0.0
        %3402 = vmatprep.subr.mxu0 0.0
        %3403 = vmatpush1.msra.mxu0 0.0
        %3404 = vmatprep.subr.mxu0 0.0
        %3405 = vmatpush1.msra.mxu0 0.0
        %3406 = vmatprep.subr.mxu0 0.0
        %3407 = vmatpush1.msra.mxu0 0.0
        %3408 = vmatprep.subr.mxu0 0.0
        %3409 = vmatpush1.msra.mxu0 0.0
        %3410 = vmatprep.subr.mxu0 0.0
        %3411 = vmatpush1.msra.mxu0 0.0
        %3412 = vmatprep.subr.mxu0 0.0
        %3413 = vmatpush1.msra.mxu0 0.0
        %3414 = vmatprep.subr.mxu0 0.0
        %3415 = vmatpush1.msra.mxu0 0.0
        %3416 = vmatprep.subr.mxu0 0.0
        %3417 = vmatpush1.msra.mxu0 0.0
        %3418 = vmatprep.subr.mxu0 0.0
        %3419 = vmatpush1.msra.mxu0 0.0
        %3420 = vmatprep.subr.mxu0 0.0
        %3421 = vmatpush1.msra.mxu0 0.0
        %3422 = vmatprep.subr.mxu0 0.0
        %3423 = vmatpush1.msra.mxu0 0.0
        %3424 = vmatprep.subr.mxu0 0.0
        %3425 = vmatpush1.msra.mxu0 0.0
        %3426 = vmatprep.mubr.f32.mxu0 0.0
        %v3427 = vand.u32 %v2862, 4294901760
        %3428 = vmatmul.mubr.f32.gmra.mrb[0].mxu0 %v3427
        %v3429 = vpop.f32.mrb[0].mxu0
        %v3430 = vadd.f32 %v3311, %v3429
        %v3431 = vpop.f32.mrb[0].mxu0
        %3432 = vdwg.mxu0
        %3433 = vmatprep.subr.mxu0 0.0
        %v3434 = vand.u32 %v2863, 4294901760
        %3435 = vmatpush1.msra.mxu0 %v3434
        %3436 = vmatprep.subr.mxu0 0.0
        %v3437 = vand.u32 %v2864, 4294901760
        %3438 = vmatpush1.msra.mxu0 %v3437
        %3439 = vmatprep.subr.mxu0 0.0
        %v3440 = vand.u32 %v2865, 4294901760
        %3441 = vmatpush1.msra.mxu0 %v3440
        %3442 = vmatprep.subr.mxu0 0.0
        %v3443 = vand.u32 %v2866, 4294901760
        %3444 = vmatpush1.msra.mxu0 %v3443
        %3445 = vmatprep.subr.mxu0 0.0
        %v3446 = vand.u32 %v2867, 4294901760
        %3447 = vmatpush1.msra.mxu0 %v3446
        %3448 = vmatprep.subr.mxu0 0.0
        %v3449 = vand.u32 %v2868, 4294901760
        %3450 = vmatpush1.msra.mxu0 %v3449
        %3451 = vmatprep.subr.mxu0 0.0
        %v3452 = vand.u32 %v2869, 4294901760
        %3453 = vmatpush1.msra.mxu0 %v3452
        %3454 = vmatprep.subr.mxu0 0.0
        %v3455 = vand.u32 %v2870, 4294901760
        %3456 = vmatpush1.msra.mxu0 %v3455
        %3457 = vmatprep.subr.mxu0 0.0
        %v3458 = vand.u32 %v2871, 4294901760
        %3459 = vmatpush1.msra.mxu0 %v3458
        %3460 = vmatprep.subr.mxu0 0.0
        %v3461 = vand.u32 %v2872, 4294901760
        %3462 = vmatpush1.msra.mxu0 %v3461
        %3463 = vmatprep.subr.mxu0 0.0
        %v3464 = vand.u32 %v2873, 4294901760
        %3465 = vmatpush1.msra.mxu0 %v3464
        %3466 = vmatprep.subr.mxu0 0.0
        %v3467 = vand.u32 %v2874, 4294901760
        %3468 = vmatpush1.msra.mxu0 %v3467
        %3469 = vmatprep.subr.mxu0 0.0
        %v3470 = vand.u32 %v2875, 4294901760
        %3471 = vmatpush1.msra.mxu0 %v3470
        %3472 = vmatprep.subr.mxu0 0.0
        %v3473 = vand.u32 %v2876, 4294901760
        %3474 = vmatpush1.msra.mxu0 %v3473
        %3475 = vmatprep.subr.mxu0 0.0
        %v3476 = vand.u32 %v2877, 4294901760
        %3477 = vmatpush1.msra.mxu0 %v3476
        %3478 = vmatprep.subr.mxu0 0.0
        %v3479 = vand.u32 %v2878, 4294901760
        %3480 = vmatpush1.msra.mxu0 %v3479
        %3481 = vmatprep.subr.mxu0 0.0
        %3482 = vmatpush1.msra.mxu0 0.0
        %3483 = vmatprep.subr.mxu0 0.0
        %3484 = vmatpush1.msra.mxu0 0.0
        %3485 = vmatprep.subr.mxu0 0.0
        %3486 = vmatpush1.msra.mxu0 0.0
        %3487 = vmatprep.subr.mxu0 0.0
        %3488 = vmatpush1.msra.mxu0 0.0
        %3489 = vmatprep.subr.mxu0 0.0
        %3490 = vmatpush1.msra.mxu0 0.0
        %3491 = vmatprep.subr.mxu0 0.0
        %3492 = vmatpush1.msra.mxu0 0.0
        %3493 = vmatprep.subr.mxu0 0.0
        %3494 = vmatpush1.msra.mxu0 0.0
        %3495 = vmatprep.subr.mxu0 0.0
        %3496 = vmatpush1.msra.mxu0 0.0
        %3497 = vmatprep.subr.mxu0 0.0
        %3498 = vmatpush1.msra.mxu0 0.0
        %3499 = vmatprep.subr.mxu0 0.0
        %3500 = vmatpush1.msra.mxu0 0.0
        %3501 = vmatprep.subr.mxu0 0.0
        %3502 = vmatpush1.msra.mxu0 0.0
        %3503 = vmatprep.subr.mxu0 0.0
        %3504 = vmatpush1.msra.mxu0 0.0
        %3505 = vmatprep.subr.mxu0 0.0
        %3506 = vmatpush1.msra.mxu0 0.0
        %3507 = vmatprep.subr.mxu0 0.0
        %3508 = vmatpush1.msra.mxu0 0.0
        %3509 = vmatprep.subr.mxu0 0.0
        %3510 = vmatpush1.msra.mxu0 0.0
        %3511 = vmatprep.subr.mxu0 0.0
        %3512 = vmatpush1.msra.mxu0 0.0
        %3513 = vmatprep.mubr.f32.mxu0 0.0
        %v3514 = vand.u32 %v2862, 4294901760
        %3515 = vmatmul.mubr.f32.gmra.mrb[0].mxu0 %v3514
        %v3516 = vpop.f32.mrb[0].mxu0
        %v3517 = vadd.f32 %v3430, %v3516
        %v3518 = vpop.f32.mrb[0].mxu0
        %3519 = vdwg.mxu0
        %v3520 = vsub.f32 0.0, %v3517
        %3522 = vrot.lane.b32.xlu0 %v3517, 64
        %v3523 = vpop.permute.xlu0 %3522
        %3526 = vrot.lane.b32.xlu0 %v3520, 64
        %v3527 = vpop.permute.xlu0 %3526
        %v3529 = vsel %vm673, %v3523, %v3527
        %3530 = vmatprep.subr.mxu0 0.0
        %v3531 = vand.u32 %v3517, 4294901760
        %3532 = vmatpush1.msra.mxu0 %v3531
        %3533 = vmatprep.subr.mxu0 0.0
        %v3534 = vand.u32 %v3529, 4294901760
        %3535 = vmatpush1.msra.mxu0 %v3534
        %3536 = vmatprep.subr.mxu0 0.0
        %3537 = vmatpush1.msra.mxu0 0.0
        %3538 = vmatprep.subr.mxu0 0.0
        %3539 = vmatpush1.msra.mxu0 0.0
        %3540 = vmatprep.subr.mxu0 0.0
        %3541 = vmatpush1.msra.mxu0 0.0
        %3542 = vmatprep.subr.mxu0 0.0
        %3543 = vmatpush1.msra.mxu0 0.0
        %3544 = vmatprep.subr.mxu0 0.0
        %3545 = vmatpush1.msra.mxu0 0.0
        %3546 = vmatprep.subr.mxu0 0.0
        %3547 = vmatpush1.msra.mxu0 0.0
        %3548 = vmatprep.subr.mxu0 0.0
        %3549 = vmatpush1.msra.mxu0 0.0
        %3550 = vmatprep.subr.mxu0 0.0
        %3551 = vmatpush1.msra.mxu0 0.0
        %3552 = vmatprep.subr.mxu0 0.0
        %3553 = vmatpush1.msra.mxu0 0.0
        %3554 = vmatprep.subr.mxu0 0.0
        %3555 = vmatpush1.msra.mxu0 0.0
        %3556 = vmatprep.subr.mxu0 0.0
        %3557 = vmatpush1.msra.mxu0 0.0
        %3558 = vmatprep.subr.mxu0 0.0
        %3559 = vmatpush1.msra.mxu0 0.0
        %3560 = vmatprep.subr.mxu0 0.0
        %3561 = vmatpush1.msra.mxu0 0.0
        %3562 = vmatprep.subr.mxu0 0.0
        %3563 = vmatpush1.msra.mxu0 0.0
        %3564 = vmatprep.subr.mxu0 0.0
        %3565 = vmatpush1.msra.mxu0 0.0
        %3566 = vmatprep.subr.mxu0 0.0
        %3567 = vmatpush1.msra.mxu0 0.0
        %3568 = vmatprep.subr.mxu0 0.0
        %3569 = vmatpush1.msra.mxu0 0.0
        %3570 = vmatprep.subr.mxu0 0.0
        %3571 = vmatpush1.msra.mxu0 0.0
        %3572 = vmatprep.subr.mxu0 0.0
        %3573 = vmatpush1.msra.mxu0 0.0
        %3574 = vmatprep.subr.mxu0 0.0
        %3575 = vmatpush1.msra.mxu0 0.0
        %3576 = vmatprep.subr.mxu0 0.0
        %3577 = vmatpush1.msra.mxu0 0.0
        %3578 = vmatprep.subr.mxu0 0.0
        %3579 = vmatpush1.msra.mxu0 0.0
        %3580 = vmatprep.subr.mxu0 0.0
        %3581 = vmatpush1.msra.mxu0 0.0
        %3582 = vmatprep.subr.mxu0 0.0
        %3583 = vmatpush1.msra.mxu0 0.0
        %3584 = vmatprep.subr.mxu0 0.0
        %3585 = vmatpush1.msra.mxu0 0.0
        %3586 = vmatprep.subr.mxu0 0.0
        %3587 = vmatpush1.msra.mxu0 0.0
        %3588 = vmatprep.subr.mxu0 0.0
        %3589 = vmatpush1.msra.mxu0 0.0
        %3590 = vmatprep.subr.mxu0 0.0
        %3591 = vmatpush1.msra.mxu0 0.0
        %3592 = vmatprep.subr.mxu0 0.0
        %3593 = vmatpush1.msra.mxu0 0.0
        %3594 = vmatprep.subr.mxu0 0.0
        %3595 = vmatpush1.msra.mxu0 0.0
        %3596 = vmatprep.mubr.f32.mxu0 0.0
        %v3597 = vand.u32 %v2076, 4294901760
        %v3598 = vsub.f32 %v2076, %v3597
        %v3599 = vand.u32 %v3598, 4294901760
        %v3600 = vsub.f32 %v3598, %v3599
        %v3601 = vand.u32 %v3600, 4294901760
        %3602 = vmatmul.mubr.f32.gmra.mrb[0].mxu0 %v3601
        %v3603 = vpop.f32.mrb[0].mxu0
        %v3604 = vadd.f32 0.0, %v3603
        %v3605 = vpop.f32.mrb[0].mxu0
        %3606 = vdwg.mxu0
        %3607 = vmatprep.subr.mxu0 0.0
        %v3608 = vand.u32 %v3517, 4294901760
        %v3609 = vsub.f32 %v3517, %v3608
        %v3610 = vand.u32 %v3609, 4294901760
        %v3611 = vsub.f32 %v3609, %v3610
        %v3612 = vand.u32 %v3611, 4294901760
        %3613 = vmatpush1.msra.mxu0 %v3612
        %3614 = vmatprep.subr.mxu0 0.0
        %v3615 = vand.u32 %v3529, 4294901760
        %v3616 = vsub.f32 %v3529, %v3615
        %v3617 = vand.u32 %v3616, 4294901760
        %v3618 = vsub.f32 %v3616, %v3617
        %v3619 = vand.u32 %v3618, 4294901760
        %3620 = vmatpush1.msra.mxu0 %v3619
        %3621 = vmatprep.subr.mxu0 0.0
        %3622 = vmatpush1.msra.mxu0 0.0
        %3623 = vmatprep.subr.mxu0 0.0
        %3624 = vmatpush1.msra.mxu0 0.0
        %3625 = vmatprep.subr.mxu0 0.0
        %3626 = vmatpush1.msra.mxu0 0.0
        %3627 = vmatprep.subr.mxu0 0.0
        %3628 = vmatpush1.msra.mxu0 0.0
        %3629 = vmatprep.subr.mxu0 0.0
        %3630 = vmatpush1.msra.mxu0 0.0
        %3631 = vmatprep.subr.mxu0 0.0
        %3632 = vmatpush1.msra.mxu0 0.0
        %3633 = vmatprep.subr.mxu0 0.0
        %3634 = vmatpush1.msra.mxu0 0.0
        %3635 = vmatprep.subr.mxu0 0.0
        %3636 = vmatpush1.msra.mxu0 0.0
        %3637 = vmatprep.subr.mxu0 0.0
        %3638 = vmatpush1.msra.mxu0 0.0
        %3639 = vmatprep.subr.mxu0 0.0
        %3640 = vmatpush1.msra.mxu0 0.0
        %3641 = vmatprep.subr.mxu0 0.0
        %3642 = vmatpush1.msra.mxu0 0.0
        %3643 = vmatprep.subr.mxu0 0.0
        %3644 = vmatpush1.msra.mxu0 0.0
        %3645 = vmatprep.subr.mxu0 0.0
        %3646 = vmatpush1.msra.mxu0 0.0
        %3647 = vmatprep.subr.mxu0 0.0
        %3648 = vmatpush1.msra.mxu0 0.0
        %3649 = vmatprep.subr.mxu0 0.0
        %3650 = vmatpush1.msra.mxu0 0.0
        %3651 = vmatprep.subr.mxu0 0.0
        %3652 = vmatpush1.msra.mxu0 0.0
        %3653 = vmatprep.subr.mxu0 0.0
        %3654 = vmatpush1.msra.mxu0 0.0
        %3655 = vmatprep.subr.mxu0 0.0
        %3656 = vmatpush1.msra.mxu0 0.0
        %3657 = vmatprep.subr.mxu0 0.0
        %3658 = vmatpush1.msra.mxu0 0.0
        %3659 = vmatprep.subr.mxu0 0.0
        %3660 = vmatpush1.msra.mxu0 0.0
        %3661 = vmatprep.subr.mxu0 0.0
        %3662 = vmatpush1.msra.mxu0 0.0
        %3663 = vmatprep.subr.mxu0 0.0
        %3664 = vmatpush1.msra.mxu0 0.0
        %3665 = vmatprep.subr.mxu0 0.0
        %3666 = vmatpush1.msra.mxu0 0.0
        %3667 = vmatprep.subr.mxu0 0.0
        %3668 = vmatpush1.msra.mxu0 0.0
        %3669 = vmatprep.subr.mxu0 0.0
        %3670 = vmatpush1.msra.mxu0 0.0
        %3671 = vmatprep.subr.mxu0 0.0
        %3672 = vmatpush1.msra.mxu0 0.0
        %3673 = vmatprep.subr.mxu0 0.0
        %3674 = vmatpush1.msra.mxu0 0.0
        %3675 = vmatprep.subr.mxu0 0.0
        %3676 = vmatpush1.msra.mxu0 0.0
        %3677 = vmatprep.subr.mxu0 0.0
        %3678 = vmatpush1.msra.mxu0 0.0
        %3679 = vmatprep.subr.mxu0 0.0
        %3680 = vmatpush1.msra.mxu0 0.0
        %3681 = vmatprep.mubr.f32.mxu0 0.0
        %v3682 = vand.u32 %v2076, 4294901760
        %3683 = vmatmul.mubr.f32.gmra.mrb[0].mxu0 %v3682
        %v3684 = vpop.f32.mrb[0].mxu0
        %v3685 = vadd.f32 %v3604, %v3684
        %v3686 = vpop.f32.mrb[0].mxu0
        %3687 = vdwg.mxu0
        %3688 = vmatprep.subr.mxu0 0.0
        %v3689 = vand.u32 %v3517, 4294901760
        %v3690 = vsub.f32 %v3517, %v3689
        %3691 = vmatpush1.msra.mxu0 %v3690
        %3692 = vmatprep.subr.mxu0 0.0
        %v3693 = vand.u32 %v3529, 4294901760
        %v3694 = vsub.f32 %v3529, %v3693
        %3695 = vmatpush1.msra.mxu0 %v3694
        %3696 = vmatprep.subr.mxu0 0.0
        %3697 = vmatpush1.msra.mxu0 0.0
        %3698 = vmatprep.subr.mxu0 0.0
        %3699 = vmatpush1.msra.mxu0 0.0
        %3700 = vmatprep.subr.mxu0 0.0
        %3701 = vmatpush1.msra.mxu0 0.0
        %3702 = vmatprep.subr.mxu0 0.0
        %3703 = vmatpush1.msra.mxu0 0.0
        %3704 = vmatprep.subr.mxu0 0.0
        %3705 = vmatpush1.msra.mxu0 0.0
        %3706 = vmatprep.subr.mxu0 0.0
        %3707 = vmatpush1.msra.mxu0 0.0
        %3708 = vmatprep.subr.mxu0 0.0
        %3709 = vmatpush1.msra.mxu0 0.0
        %3710 = vmatprep.subr.mxu0 0.0
        %3711 = vmatpush1.msra.mxu0 0.0
        %3712 = vmatprep.subr.mxu0 0.0
        %3713 = vmatpush1.msra.mxu0 0.0
        %3714 = vmatprep.subr.mxu0 0.0
        %3715 = vmatpush1.msra.mxu0 0.0
        %3716 = vmatprep.subr.mxu0 0.0
        %3717 = vmatpush1.msra.mxu0 0.0
        %3718 = vmatprep.subr.mxu0 0.0
        %3719 = vmatpush1.msra.mxu0 0.0
        %3720 = vmatprep.subr.mxu0 0.0
        %3721 = vmatpush1.msra.mxu0 0.0
        %3722 = vmatprep.subr.mxu0 0.0
        %3723 = vmatpush1.msra.mxu0 0.0
        %3724 = vmatprep.subr.mxu0 0.0
        %3725 = vmatpush1.msra.mxu0 0.0
        %3726 = vmatprep.subr.mxu0 0.0
        %3727 = vmatpush1.msra.mxu0 0.0
        %3728 = vmatprep.subr.mxu0 0.0
        %3729 = vmatpush1.msra.mxu0 0.0
        %3730 = vmatprep.subr.mxu0 0.0
        %3731 = vmatpush1.msra.mxu0 0.0
        %3732 = vmatprep.subr.mxu0 0.0
        %3733 = vmatpush1.msra.mxu0 0.0
        %3734 = vmatprep.subr.mxu0 0.0
        %3735 = vmatpush1.msra.mxu0 0.0
        %3736 = vmatprep.subr.mxu0 0.0
        %3737 = vmatpush1.msra.mxu0 0.0
        %3738 = vmatprep.subr.mxu0 0.0
        %3739 = vmatpush1.msra.mxu0 0.0
        %3740 = vmatprep.subr.mxu0 0.0
        %3741 = vmatpush1.msra.mxu0 0.0
        %3742 = vmatprep.subr.mxu0 0.0
        %3743 = vmatpush1.msra.mxu0 0.0
        %3744 = vmatprep.subr.mxu0 0.0
        %3745 = vmatpush1.msra.mxu0 0.0
        %3746 = vmatprep.subr.mxu0 0.0
        %3747 = vmatpush1.msra.mxu0 0.0
        %3748 = vmatprep.subr.mxu0 0.0
        %3749 = vmatpush1.msra.mxu0 0.0
        %3750 = vmatprep.subr.mxu0 0.0
        %3751 = vmatpush1.msra.mxu0 0.0
        %3752 = vmatprep.subr.mxu0 0.0
        %3753 = vmatpush1.msra.mxu0 0.0
        %3754 = vmatprep.subr.mxu0 0.0
        %3755 = vmatpush1.msra.mxu0 0.0
        %3756 = vmatprep.mubr.f32.mxu0 0.0
        %v3757 = vand.u32 %v2076, 4294901760
        %v3758 = vsub.f32 %v2076, %v3757
        %3759 = vmatmul.mubr.f32.gmra.mrb[0].mxu0 %v3758
        %v3760 = vpop.f32.mrb[0].mxu0
        %v3761 = vadd.f32 %v3685, %v3760
        %v3762 = vpop.f32.mrb[0].mxu0
        %3763 = vdwg.mxu0
        %3764 = vmatprep.subr.mxu0 0.0
        %v3765 = vand.u32 %v3517, 4294901760
        %3766 = vmatpush1.msra.mxu0 %v3765
        %3767 = vmatprep.subr.mxu0 0.0
        %v3768 = vand.u32 %v3529, 4294901760
        %3769 = vmatpush1.msra.mxu0 %v3768
        %3770 = vmatprep.subr.mxu0 0.0
        %3771 = vmatpush1.msra.mxu0 0.0
        %3772 = vmatprep.subr.mxu0 0.0
        %3773 = vmatpush1.msra.mxu0 0.0
        %3774 = vmatprep.subr.mxu0 0.0
        %3775 = vmatpush1.msra.mxu0 0.0
        %3776 = vmatprep.subr.mxu0 0.0
        %3777 = vmatpush1.msra.mxu0 0.0
        %3778 = vmatprep.subr.mxu0 0.0
        %3779 = vmatpush1.msra.mxu0 0.0
        %3780 = vmatprep.subr.mxu0 0.0
        %3781 = vmatpush1.msra.mxu0 0.0
        %3782 = vmatprep.subr.mxu0 0.0
        %3783 = vmatpush1.msra.mxu0 0.0
        %3784 = vmatprep.subr.mxu0 0.0
        %3785 = vmatpush1.msra.mxu0 0.0
        %3786 = vmatprep.subr.mxu0 0.0
        %3787 = vmatpush1.msra.mxu0 0.0
        %3788 = vmatprep.subr.mxu0 0.0
        %3789 = vmatpush1.msra.mxu0 0.0
        %3790 = vmatprep.subr.mxu0 0.0
        %3791 = vmatpush1.msra.mxu0 0.0
        %3792 = vmatprep.subr.mxu0 0.0
        %3793 = vmatpush1.msra.mxu0 0.0
        %3794 = vmatprep.subr.mxu0 0.0
        %3795 = vmatpush1.msra.mxu0 0.0
        %3796 = vmatprep.subr.mxu0 0.0
        %3797 = vmatpush1.msra.mxu0 0.0
        %3798 = vmatprep.subr.mxu0 0.0
        %3799 = vmatpush1.msra.mxu0 0.0
        %3800 = vmatprep.subr.mxu0 0.0
        %3801 = vmatpush1.msra.mxu0 0.0
        %3802 = vmatprep.subr.mxu0 0.0
        %3803 = vmatpush1.msra.mxu0 0.0
        %3804 = vmatprep.subr.mxu0 0.0
        %3805 = vmatpush1.msra.mxu0 0.0
        %3806 = vmatprep.subr.mxu0 0.0
        %3807 = vmatpush1.msra.mxu0 0.0
        %3808 = vmatprep.subr.mxu0 0.0
        %3809 = vmatpush1.msra.mxu0 0.0
        %3810 = vmatprep.subr.mxu0 0.0
        %3811 = vmatpush1.msra.mxu0 0.0
        %3812 = vmatprep.subr.mxu0 0.0
        %3813 = vmatpush1.msra.mxu0 0.0
        %3814 = vmatprep.subr.mxu0 0.0
        %3815 = vmatpush1.msra.mxu0 0.0
        %3816 = vmatprep.subr.mxu0 0.0
        %3817 = vmatpush1.msra.mxu0 0.0
        %3818 = vmatprep.subr.mxu0 0.0
        %3819 = vmatpush1.msra.mxu0 0.0
        %3820 = vmatprep.subr.mxu0 0.0
        %3821 = vmatpush1.msra.mxu0 0.0
        %3822 = vmatprep.subr.mxu0 0.0
        %3823 = vmatpush1.msra.mxu0 0.0
        %3824 = vmatprep.subr.mxu0 0.0
        %3825 = vmatpush1.msra.mxu0 0.0
        %3826 = vmatprep.subr.mxu0 0.0
        %3827 = vmatpush1.msra.mxu0 0.0
        %3828 = vmatprep.subr.mxu0 0.0
        %3829 = vmatpush1.msra.mxu0 0.0
        %3830 = vmatprep.mubr.f32.mxu0 0.0
        %v3831 = vand.u32 %v2076, 4294901760
        %v3832 = vsub.f32 %v2076, %v3831
        %v3833 = vand.u32 %v3832, 4294901760
        %3834 = vmatmul.mubr.f32.gmra.mrb[0].mxu0 %v3833
        %v3835 = vpop.f32.mrb[0].mxu0
        %v3836 = vadd.f32 %v3761, %v3835
        %v3837 = vpop.f32.mrb[0].mxu0
        %3838 = vdwg.mxu0
        %3839 = vmatprep.subr.mxu0 0.0
        %v3840 = vand.u32 %v3517, 4294901760
        %v3841 = vsub.f32 %v3517, %v3840
        %v3842 = vand.u32 %v3841, 4294901760
        %3843 = vmatpush1.msra.mxu0 %v3842
        %3844 = vmatprep.subr.mxu0 0.0
        %v3845 = vand.u32 %v3529, 4294901760
        %v3846 = vsub.f32 %v3529, %v3845
        %v3847 = vand.u32 %v3846, 4294901760
        %3848 = vmatpush1.msra.mxu0 %v3847
        %3849 = vmatprep.subr.mxu0 0.0
        %3850 = vmatpush1.msra.mxu0 0.0
        %3851 = vmatprep.subr.mxu0 0.0
        %3852 = vmatpush1.msra.mxu0 0.0
        %3853 = vmatprep.subr.mxu0 0.0
        %3854 = vmatpush1.msra.mxu0 0.0
        %3855 = vmatprep.subr.mxu0 0.0
        %3856 = vmatpush1.msra.mxu0 0.0
        %3857 = vmatprep.subr.mxu0 0.0
        %3858 = vmatpush1.msra.mxu0 0.0
        %3859 = vmatprep.subr.mxu0 0.0
        %3860 = vmatpush1.msra.mxu0 0.0
        %3861 = vmatprep.subr.mxu0 0.0
        %3862 = vmatpush1.msra.mxu0 0.0
        %3863 = vmatprep.subr.mxu0 0.0
        %3864 = vmatpush1.msra.mxu0 0.0
        %3865 = vmatprep.subr.mxu0 0.0
        %3866 = vmatpush1.msra.mxu0 0.0
        %3867 = vmatprep.subr.mxu0 0.0
        %3868 = vmatpush1.msra.mxu0 0.0
        %3869 = vmatprep.subr.mxu0 0.0
        %3870 = vmatpush1.msra.mxu0 0.0
        %3871 = vmatprep.subr.mxu0 0.0
        %3872 = vmatpush1.msra.mxu0 0.0
        %3873 = vmatprep.subr.mxu0 0.0
        %3874 = vmatpush1.msra.mxu0 0.0
        %3875 = vmatprep.subr.mxu0 0.0
        %3876 = vmatpush1.msra.mxu0 0.0
        %3877 = vmatprep.subr.mxu0 0.0
        %3878 = vmatpush1.msra.mxu0 0.0
        %3879 = vmatprep.subr.mxu0 0.0
        %3880 = vmatpush1.msra.mxu0 0.0
        %3881 = vmatprep.subr.mxu0 0.0
        %3882 = vmatpush1.msra.mxu0 0.0
        %3883 = vmatprep.subr.mxu0 0.0
        %3884 = vmatpush1.msra.mxu0 0.0
        %3885 = vmatprep.subr.mxu0 0.0
        %3886 = vmatpush1.msra.mxu0 0.0
        %3887 = vmatprep.subr.mxu0 0.0
        %3888 = vmatpush1.msra.mxu0 0.0
        %3889 = vmatprep.subr.mxu0 0.0
        %3890 = vmatpush1.msra.mxu0 0.0
        %3891 = vmatprep.subr.mxu0 0.0
        %3892 = vmatpush1.msra.mxu0 0.0
        %3893 = vmatprep.subr.mxu0 0.0
        %3894 = vmatpush1.msra.mxu0 0.0
        %3895 = vmatprep.subr.mxu0 0.0
        %3896 = vmatpush1.msra.mxu0 0.0
        %3897 = vmatprep.subr.mxu0 0.0
        %3898 = vmatpush1.msra.mxu0 0.0
        %3899 = vmatprep.subr.mxu0 0.0
        %3900 = vmatpush1.msra.mxu0 0.0
        %3901 = vmatprep.subr.mxu0 0.0
        %3902 = vmatpush1.msra.mxu0 0.0
        %3903 = vmatprep.subr.mxu0 0.0
        %3904 = vmatpush1.msra.mxu0 0.0
        %3905 = vmatprep.subr.mxu0 0.0
        %3906 = vmatpush1.msra.mxu0 0.0
        %3907 = vmatprep.subr.mxu0 0.0
        %3908 = vmatpush1.msra.mxu0 0.0
        %3909 = vmatprep.mubr.f32.mxu0 0.0
        %v3910 = vand.u32 %v2076, 4294901760
        %3911 = vmatmul.mubr.f32.gmra.mrb[0].mxu0 %v3910
        %v3912 = vpop.f32.mrb[0].mxu0
        %v3913 = vadd.f32 %v3836, %v3912
        %v3914 = vpop.f32.mrb[0].mxu0
        %3915 = vdwg.mxu0
        %3916 = vmatprep.subr.mxu0 0.0
        %v3917 = vand.u32 %v3517, 4294901760
        %3918 = vmatpush1.msra.mxu0 %v3917
        %3919 = vmatprep.subr.mxu0 0.0
        %v3920 = vand.u32 %v3529, 4294901760
        %3921 = vmatpush1.msra.mxu0 %v3920
        %3922 = vmatprep.subr.mxu0 0.0
        %3923 = vmatpush1.msra.mxu0 0.0
        %3924 = vmatprep.subr.mxu0 0.0
        %3925 = vmatpush1.msra.mxu0 0.0
        %3926 = vmatprep.subr.mxu0 0.0
        %3927 = vmatpush1.msra.mxu0 0.0
        %3928 = vmatprep.subr.mxu0 0.0
        %3929 = vmatpush1.msra.mxu0 0.0
        %3930 = vmatprep.subr.mxu0 0.0
        %3931 = vmatpush1.msra.mxu0 0.0
        %3932 = vmatprep.subr.mxu0 0.0
        %3933 = vmatpush1.msra.mxu0 0.0
        %3934 = vmatprep.subr.mxu0 0.0
        %3935 = vmatpush1.msra.mxu0 0.0
        %3936 = vmatprep.subr.mxu0 0.0
        %3937 = vmatpush1.msra.mxu0 0.0
        %3938 = vmatprep.subr.mxu0 0.0
        %3939 = vmatpush1.msra.mxu0 0.0
        %3940 = vmatprep.subr.mxu0 0.0
        %3941 = vmatpush1.msra.mxu0 0.0
        %3942 = vmatprep.subr.mxu0 0.0
        %3943 = vmatpush1.msra.mxu0 0.0
        %3944 = vmatprep.subr.mxu0 0.0
        %3945 = vmatpush1.msra.mxu0 0.0
        %3946 = vmatprep.subr.mxu0 0.0
        %3947 = vmatpush1.msra.mxu0 0.0
        %3948 = vmatprep.subr.mxu0 0.0
        %3949 = vmatpush1.msra.mxu0 0.0
        %3950 = vmatprep.subr.mxu0 0.0
        %3951 = vmatpush1.msra.mxu0 0.0
        %3952 = vmatprep.subr.mxu0 0.0
        %3953 = vmatpush1.msra.mxu0 0.0
        %3954 = vmatprep.subr.mxu0 0.0
        %3955 = vmatpush1.msra.mxu0 0.0
        %3956 = vmatprep.subr.mxu0 0.0
        %3957 = vmatpush1.msra.mxu0 0.0
        %3958 = vmatprep.subr.mxu0 0.0
        %3959 = vmatpush1.msra.mxu0 0.0
        %3960 = vmatprep.subr.mxu0 0.0
        %3961 = vmatpush1.msra.mxu0 0.0
        %3962 = vmatprep.subr.mxu0 0.0
        %3963 = vmatpush1.msra.mxu0 0.0
        %3964 = vmatprep.subr.mxu0 0.0
        %3965 = vmatpush1.msra.mxu0 0.0
        %3966 = vmatprep.subr.mxu0 0.0
        %3967 = vmatpush1.msra.mxu0 0.0
        %3968 = vmatprep.subr.mxu0 0.0
        %3969 = vmatpush1.msra.mxu0 0.0
        %3970 = vmatprep.subr.mxu0 0.0
        %3971 = vmatpush1.msra.mxu0 0.0
        %3972 = vmatprep.subr.mxu0 0.0
        %3973 = vmatpush1.msra.mxu0 0.0
        %3974 = vmatprep.subr.mxu0 0.0
        %3975 = vmatpush1.msra.mxu0 0.0
        %3976 = vmatprep.subr.mxu0 0.0
        %3977 = vmatpush1.msra.mxu0 0.0
        %3978 = vmatprep.subr.mxu0 0.0
        %3979 = vmatpush1.msra.mxu0 0.0
        %3980 = vmatprep.subr.mxu0 0.0
        %3981 = vmatpush1.msra.mxu0 0.0
        %3982 = vmatprep.mubr.f32.mxu0 0.0
        %v3983 = vand.u32 %v2076, 4294901760
        %3984 = vmatmul.mubr.f32.gmra.mrb[0].mxu0 %v3983
        %v3985 = vpop.f32.mrb[0].mxu0
        %v3986 = vadd.f32 %v3913, %v3985
        %v3987 = vpop.f32.mrb[0].mxu0
        %3988 = vdwg.mxu0
        %v3989 = vmul.f32 %v3986, %v3986
        %3991 = vrot.lane.b32.xlu0 %v3989, 64
        %v3992 = vpop.permute.xlu0 %3991
        %v3994 = vadd.f32 %v3989, %v3992
        %v3995 = vrsqrt.pop %v3994
        %v3996 = vmul.f32 %v3994, %v3995
        %vm3997 = vcmp.eq.f32.partialorder %v3994, inf
        %v3998 = vsel %vm3997, %v3994, %v3996
        %vm3999 = vcmp.eq.f32.partialorder %v3994, 0.0
        %v4000 = vand.u32 %v3994, 2147483648
        %v4001 = vsel %vm3999, %v4000, %v3998
        %v4002 = vmul.f32 %v4001, 0.001953125
        %vm4003 = vcmask 1048064
        %v4004 = vsel %vm4003, %v645, -inf
        %v4005 = vrot.slane %v4004, 4
        %v4006 = vmax.f32 %v4004, %v4005
        %v4007 = vrot.slane %v4006, 2
        %v4008 = vmax.f32 %v4006, %v4007
        %v4009 = vrot.slane %v4008, 1
        %v4010 = vmax.f32 %v4008, %v4009
        %v4011 = vand.u32 2147483647, %v4010
        %4013 = vrot.lane.b32.xlu0 %v4011, 64
        %v4014 = vpop.permute.xlu0 %4013
        %v4016 = vmul.f32 %v4002, %v4014
        %v4017 = vsel %vm673, %v4016, 0.0
        %v4018 = vrot.slane %v4017, 4
        %v4019 = vadd.f32 %v4017, %v4018
        %v4020 = vrot.slane %v4019, 2
        %v4021 = vadd.f32 %v4019, %v4020
        %v4022 = vrot.slane %v4021, 1
        %v4023 = vadd.f32 %v4021, %v4022
        %v4024 = vrcp.pop 8.0
        %v4025 = vmul.f32 %v4023, %v4024
        %v4026 = vsub.f32 %v4016, %v4025
        %v4027 = vmul.f32 %v4026, %v4026
        %v4028 = vsel %vm673, %v4027, 0.0
        %v4029 = vrot.slane %v4028, 4
        %v4030 = vadd.f32 %v4028, %v4029
        %v4031 = vrot.slane %v4030, 2
        %v4032 = vadd.f32 %v4030, %v4031
        %v4033 = vrot.slane %v4032, 1
        %v4034 = vadd.f32 %v4032, %v4033
        %v4035 = vmul.f32 %v4034, %v4024
        %v4036 = vadd.f32 %v4035, 1e-05
        %v4037 = vrsqrt.pop %v4036
        %v4038 = vmul.f32 %v4026, %v4037
        %v4039 = vadd.f32 %v1573, %v4038
        %v4040 = vld [vmem:[%s1 + $0x428] sm:$0xff]
        %v4041 = vld [vmem:[%s1 + $0x430] sm:$0xff]
        %v4042 = vld [vmem:[%s1 + $0x438] sm:$0xff]
        %v4043 = vld [vmem:[%s1 + $0x440] sm:$0xff]
        %v4044 = vld [vmem:[%s1 + $0x448] sm:$0xff]
        %v4045 = vld [vmem:[%s1 + $0x450] sm:$0xff]
        %v4046 = vld [vmem:[%s1 + $0x458] sm:$0xff]
        %v4047 = vld [vmem:[%s1 + $0x460] sm:$0xff]
        %v4049 = vsel %vm673, %v4039, 0
        %4051 = vmatprep.subr.mxu0 0.0
        %4052 = vmatpush1.msra.mxu0 %v4040
        %4053 = vmatprep.subr.mxu0 0.0
        %4054 = vmatpush1.msra.mxu0 %v4041
        %4055 = vmatprep.subr.mxu0 0.0
        %4056 = vmatpush1.msra.mxu0 %v4042
        %4057 = vmatprep.subr.mxu0 0.0
        %4058 = vmatpush1.msra.mxu0 %v4043
        %4059 = vmatprep.subr.mxu0 0.0
        %4060 = vmatpush1.msra.mxu0 %v4044
        %4061 = vmatprep.subr.mxu0 0.0
        %4062 = vmatpush1.msra.mxu0 %v4045
        %4063 = vmatprep.subr.mxu0 0.0
        %4064 = vmatpush1.msra.mxu0 %v4046
        %4065 = vmatprep.subr.mxu0 0.0
        %4066 = vmatpush1.msra.mxu0 %v4047
        %4067 = vmatprep.subr.mxu0 0.0
        %4068 = vmatpush1.msra.mxu0 0.0
        %4069 = vmatprep.subr.mxu0 0.0
        %4070 = vmatpush1.msra.mxu0 0.0
        %4071 = vmatprep.subr.mxu0 0.0
        %4072 = vmatpush1.msra.mxu0 0.0
        %4073 = vmatprep.subr.mxu0 0.0
        %4074 = vmatpush1.msra.mxu0 0.0
        %4075 = vmatprep.subr.mxu0 0.0
        %4076 = vmatpush1.msra.mxu0 0.0
        %4077 = vmatprep.subr.mxu0 0.0
        %4078 = vmatpush1.msra.mxu0 0.0
        %4079 = vmatprep.subr.mxu0 0.0
        %4080 = vmatpush1.msra.mxu0 0.0
        %4081 = vmatprep.subr.mxu0 0.0
        %4082 = vmatpush1.msra.mxu0 0.0
        %4083 = vmatprep.subr.mxu0 0.0
        %4084 = vmatpush1.msra.mxu0 0.0
        %4085 = vmatprep.subr.mxu0 0.0
        %4086 = vmatpush1.msra.mxu0 0.0
        %4087 = vmatprep.subr.mxu0 0.0
        %4088 = vmatpush1.msra.mxu0 0.0
        %4089 = vmatprep.subr.mxu0 0.0
        %4090 = vmatpush1.msra.mxu0 0.0
        %4091 = vmatprep.subr.mxu0 0.0
        %4092 = vmatpush1.msra.mxu0 0.0
        %4093 = vmatprep.subr.mxu0 0.0
        %4094 = vmatpush1.msra.mxu0 0.0
        %4095 = vmatprep.subr.mxu0 0.0
        %4096 = vmatpush1.msra.mxu0 0.0
        %4097 = vmatprep.subr.mxu0 0.0
        %4098 = vmatpush1.msra.mxu0 0.0
        %4099 = vmatprep.subr.mxu0 0.0
        %4100 = vmatpush1.msra.mxu0 0.0
        %4101 = vmatprep.subr.mxu0 0.0
        %4102 = vmatpush1.msra.mxu0 0.0
        %4103 = vmatprep.subr.mxu0 0.0
        %4104 = vmatpush1.msra.mxu0 0.0
        %4105 = vmatprep.subr.mxu0 0.0
        %4106 = vmatpush1.msra.mxu0 0.0
        %4107 = vmatprep.subr.mxu0 0.0
        %4108 = vmatpush1.msra.mxu0 0.0
        %4109 = vmatprep.subr.mxu0 0.0
        %4110 = vmatpush1.msra.mxu0 0.0
        %4111 = vmatprep.subr.mxu0 0.0
        %4112 = vmatpush1.msra.mxu0 0.0
        %4113 = vmatprep.subr.mxu0 0.0
        %4114 = vmatpush1.msra.mxu0 0.0
        %4115 = vmatprep.mubr.f32.mxu0 0.0
        %4116 = vmatmul.mubr.f32.gmra.mrb[0].mxu0 %v4049
        %v4117 = vpop.f32.mrb[0].mxu0
        %v4118 = vadd.f32 0.0, %v4117
        %v4119 = vpop.f32.mrb[0].mxu0
        %4120 = vdwg.mxu0
        %4121 = vst [vmem:[%s134] sm:$0xff] %v4118
        %s4122 = sand.u32 %s71, 1
        %s4123 = scalar_lea.sflag [#allocation3], %s4122
        %s4124 = sand.u32 %s71, 1
        %s4125 = smul.addr %s4124, 8
        %s4126 = scalar_lea.vmem [#allocation2], %s4125
        // Predicated region
        $region29: #{mamba_fft_forward.1} parent=27 // pred_check
          %p4127 = pneg %p81
        $region30: #{mamba_fft_forward.1} parent=27 // pred_check_branch
          %4129 = sbr.rel (%p4127) target = $region32
        $region31: #{mamba_fft_forward.1} parent=27 // pred_region
          %s4131 = ssub.s32 128, 128
          %4132 = vsyncadd %s4123, %s4131
          %s4133 = smul.addr %s16, 128
          %s4134 = scalar_lea.hbm %s2, %s4133
          %s4136 = sshll.u32 %s4126, 4
          %s4137 = int_to_ptr.vmem [resolvable:$true] %s4136
          %4139 = dma.vmem_to_hbm [thread:$0]  %s4137, 128, %s4134, %s4123
        $region32: #{mamba_fft_forward.1} parent=27 // pred_fallthru
          _
      $region28: #{mamba_fft_forward.1} parent=5 // pred_fallthru
        _
      %p4140 = scmp.le.s32.totalorder 2, %s11
      // Predicated region
      $region33: #{mamba_fft_forward.1} parent=5 // pred_check
        %p4141 = pneg %p4140
      $region34: #{mamba_fft_forward.1} parent=5 // pred_check_branch
        %4143 = sbr.rel (%p4141) target = $region36
      $region35: #{mamba_fft_forward.1} parent=5 // pred_region
        %s4144 = ssub.s32 %s11, 2
        // Predicated region
        $region37: #{mamba_fft_forward.1} parent=35 // pred_check
          %p4145 = pneg %p87
        $region38: #{mamba_fft_forward.1} parent=35 // pred_check_branch
          %4147 = sbr.rel (%p4145) target = $region40
        $region39: #{mamba_fft_forward.1} parent=35 // pred_region
          %s4148 = sand.u32 %s72, 1
          %s4149 = scalar_lea.sflag [#allocation3], %s4148
          %s4150 = sand.u32 %s72, 1
          %s4151 = smul.addr %s4150, 8
          %s4152 = scalar_lea.vmem [#allocation2], %s4151
          %4153 = dma.done %s4149, 128
        $region40: #{mamba_fft_forward.1} parent=35 // pred_fallthru
          _
      $region36: #{mamba_fft_forward.1} parent=5 // pred_fallthru
        _
    $region6: #{mamba_fft_forward.1} parent=1 // loop_footer
      %s15 = sadd.s32 1, %s11
    $region7: #{mamba_fft_forward.1} parent=1 // loop_footer_branch
      %10 = sbr.rel target = $region3
    $region8: #{mamba_fft_forward.1} parent=1 // loop_exit
      _
    %4154 = vsyncpa [#allocation3], 1
    %s4155 = scalar_lea.sflag [#allocation3], 1
    %4156 = vsyncpa %s4155, 1

</llo_original>
